<compile_context>
chip_gen: v7x
topology: tpu7x:2x2x1
jax: 0.10.0
libtpu: 0.0.40
codegen_flags: <defaults>
</compile_context>

<pallas_src>
import functools

import numpy as np
import jax
import jax.numpy as jnp
from jax import lax
from jax.experimental import pallas as pl
from jax.experimental.pallas import tpu as pltpu

EPS = 1e-5
VMEM_LIMIT = 48 * 1024 * 1024   # explicit scoped-VMEM budget (fits v5e/v6e/v7x)


def _round_up(x, m):
    return (x + m - 1) // m * m


def _pick_tm(m, target=1024):
    """Row tile for the fused-1x1 kernel: multiple of 8, prefer >=2 grid steps."""
    hi = max(8, min(target, (m // 2 // 8) * 8))
    for cand in range(hi, 7, -8):
        if m % cand == 0:
            return cand
    return hi                      # falls back to padding M


def _pick_rows(ho, wo, mid, out_ch, target_px=2048, vmem_budget=20 * 1024 * 1024):
    """Row tile R for the fused-3x3 kernel: R | Ho, 128-aligned output tiles,
    VMEM-bounded (re-derived for v7x's 64 MiB)."""
    def ok(r):
        t = ho // r
        pq = r * wo
        if t > 1 and pq % 128 != 0:          # keep output tiles lane-aligned
            return False
        vmem = (2 * (r + 2) * wo * mid * 2   # h tile (double-buffered)
                + 2 * pq * out_ch * 2        # residual tile
                + 2 * pq * out_ch * 4        # output tile
                + 2 * pq * 9 * mid * 2       # im2col patch scratch + live value
                + pq * out_ch * 4)           # f32 epilogue value
        return vmem <= vmem_budget
    cands = [r for r in range(1, ho + 1) if ho % r == 0 and ok(r)]
    if not cands:
        return ho
    return min(cands, key=lambda r: (abs(r * wo - target_px), r))


# ----------------------------------------------------------------------------
# Kernel 1: skip-add + conv1_1 (BN, ReLU) + conv3_2 (BN)  -- one pass over x
# ----------------------------------------------------------------------------
def _fuse1_kernel(xu_ref, x2_ref, w11_ref, s11_ref, w32_ref, s32_ref,
                  h_ref, r_ref):
    xb = xu_ref[...] + x2_ref[...]                                   # bf16 skip add
    h = jnp.dot(xb, w11_ref[...], preferred_element_type=jnp.float32) + s11_ref[...]
    h_ref[...] = jnp.maximum(h, 0.0).astype(h_ref.dtype)
    r = jnp.dot(xb, w32_ref[...], preferred_element_type=jnp.float32) + s32_ref[...]
    r_ref[...] = r.astype(r_ref.dtype)


def fuse1(xu, x2, p11, p32, mid, out_ch, target_tm=1024):
    M, Cin = xu.shape
    tm = _pick_tm(M, target_tm)
    Mp = _round_up(M, tm)
    if Mp != M:
        xu = jnp.pad(xu, ((0, Mp - M), (0, 0)))
        x2 = jnp.pad(x2, ((0, Mp - M), (0, 0)))

    h, r = pl.pallas_call(
        _fuse1_kernel,
        out_shape=(jax.ShapeDtypeStruct((Mp, mid), jnp.bfloat16),
                   jax.ShapeDtypeStruct((Mp, out_ch), jnp.bfloat16)),
        grid_spec=pltpu.PrefetchScalarGridSpec(
            num_scalar_prefetch=0,
            grid=(Mp // tm,),
            in_specs=[
                pl.BlockSpec((tm, Cin), lambda i: (i, 0)),      # upsampled x1 tile
                pl.BlockSpec((tm, Cin), lambda i: (i, 0)),      # x2 tile
                pl.BlockSpec((Cin, mid), lambda i: (0, 0)),     # W c11 (resident)
                pl.BlockSpec((1, mid), lambda i: (0, 0)),       # shift c11
                pl.BlockSpec((Cin, out_ch), lambda i: (0, 0)),  # W c32 (resident)
                pl.BlockSpec((1, out_ch), lambda i: (0, 0)),    # shift c32
            ],
            out_specs=[
                pl.BlockSpec((tm, mid), lambda i: (i, 0)),
                pl.BlockSpec((tm, out_ch), lambda i: (i, 0)),
            ]),
        compiler_params=pltpu.CompilerParams(
            dimension_semantics=("parallel",),
            vmem_limit_bytes=VMEM_LIMIT),
    )(xu, x2, p11["w"], p11["shift"], p32["w"], p32["shift"])
    if Mp != M:
        h, r = h[:M], r[:M]
    return h, r


# ----------------------------------------------------------------------------
# Kernel 2: conv3_1 (BN, ReLU) + conv1_2 (BN) + residual add + final ReLU
#   - explicit im2col (single K = 9*mid dot), row-tiled, channel-major output
# ----------------------------------------------------------------------------
def _fuse2_kernel(ht_ref, r_ref, cm_ref, w31_ref, s31_ref, w12_ref, s12_ref,
                  o_ref, patch_ref, *, R, Wo, mid, F):
    Pq = R * Wo
    ml = cm_ref[:, 0:1]            # 0 where x == 0      (left-column taps)
    mr = cm_ref[:, 1:2]            # 0 where x == Wo - 1 (right-column taps)

    # explicit im2col into VMEM scratch: patch[:, k*mid:(k+1)*mid] = tap k
    for dy in range(3):
        for dx in range(3):
            k = dy * 3 + dx
            s = F + dy * Wo + dx - 1                      # static flat offset
            v = ht_ref[0, 0, s:s + Pq, :]
            if dx == 0:
                v = v * ml
            elif dx == 2:
                v = v * mr
            patch_ref[:, k * mid:(k + 1) * mid] = v

    # conv3_1: one MXU pass, K = 9*mid
    t = jnp.dot(patch_ref[...], w31_ref[...], preferred_element_type=jnp.float32)
    t = jnp.maximum(t + s31_ref[...], 0.0).astype(jnp.bfloat16)

    # conv1_2 + residual add + final ReLU fused into the epilogue
    y = jnp.dot(t, w12_ref[...], preferred_element_type=jnp.float32)
    y = y + s12_ref[...] + r_ref[0, 0].astype(jnp.float32)
    y = jnp.maximum(y, 0.0)

    # channel-major, lane-dense store -> output is already NCHW-flat
    o_ref[0] = jnp.transpose(y)


def fuse2(h, r, p31, p12, B, Ho, Wo, mid, out_ch):
    R = _pick_rows(Ho, Wo, mid, out_ch)
    T = Ho // R
    Pq = R * Wo

    # residual tiles (aligned with the output row tiles)
    r4 = r.reshape(B, T, Pq, out_ch)

    # h row tiles with a 1-row zero halo (the 3x3's zero padding on h)
    h4 = h.reshape(B, Ho, Wo, mid)
    hp = jnp.pad(h4, ((0, 0), (1, 1), (0, 0), (0, 0)))          # (B, Ho+2, Wo, mid)
    if T == 1:
        ht = hp[:, None]
    else:
        ht = jnp.stack([hp[:, t * R:t * R + R + 2] for t in range(T)], axis=1)
    ht = ht.reshape(B, T, (R + 2) * Wo, mid)
    F = 1                                                       # front pad (dx=-1 tap)
    Lp = _round_up(F + (R + 2) * Wo + 1, 8)
    ht = jnp.pad(ht, ((0, 0), (0, 0), (F, Lp - F - (R + 2) * Wo), (0, 0)))

    # column-validity masks for the left/right taps (constants, built once)
    col = np.arange(Pq, dtype=np.int64) % Wo
    colmask = jnp.asarray(
        np.stack([col > 0, col < Wo - 1], axis=1).astype(np.float32),
        dtype=jnp.bfloat16)                                     # (Pq, 2)

    out = pl.pallas_call(
        functools.partial(_fuse2_kernel, R=R, Wo=Wo, mid=mid, F=F),
        out_shape=jax.ShapeDtypeStruct((B, out_ch, Ho * Wo), jnp.float32),
        grid_spec=pltpu.PrefetchScalarGridSpec(
            num_scalar_prefetch=0,
            grid=(B, T),
            in_specs=[
                pl.BlockSpec((1, 1, Lp, mid), lambda b, t: (b, t, 0, 0)),      # h tile
                pl.BlockSpec((1, 1, Pq, out_ch), lambda b, t: (b, t, 0, 0)),   # residual
                pl.BlockSpec((Pq, 2), lambda b, t: (0, 0)),                    # col masks
                pl.BlockSpec((9 * mid, mid), lambda b, t: (0, 0)),             # W c31
                pl.BlockSpec((1, mid), lambda b, t: (0, 0)),                   # shift c31
                pl.BlockSpec((mid, out_ch), lambda b, t: (0, 0)),              # W c12
                pl.BlockSpec((1, out_ch), lambda b, t: (0, 0)),                # shift c12
            ],
            out_specs=pl.BlockSpec((1, out_ch, Pq), lambda b, t: (b, 0, t)),
            scratch_shapes=[pltpu.VMEM((Pq, 9 * mid), jnp.bfloat16)]),
        compiler_params=pltpu.CompilerParams(
            dimension_semantics=("parallel", "parallel"),
            vmem_limit_bytes=VMEM_LIMIT),
    )(ht, r4, colmask, p31["w"], p31["shift"], p12["w"], p12["shift"])
    return out


# ----------------------------------------------------------------------------
# Bilinear 2x upsample, align_corners=True (constant coords; gather/lerp in XLA)
# TODO(synk): the upsample gather itself stays in XLA; only the skip add +
#             bf16 cast are fused into the first Pallas kernel.
# ----------------------------------------------------------------------------
def upsample2x_bilinear_ac(x):
    B, H, W, C = x.shape

    def coords(n_in, n_out):
        if n_in == 1:
            lo = np.zeros((n_out,), np.int32)
            return lo, lo, np.zeros((n_out,), np.float32)
        src = np.arange(n_out, dtype=np.float64) * (n_in - 1) / (n_out - 1)
        lo = np.clip(np.floor(src).astype(np.int32), 0, n_in - 1)
        hi = np.clip(lo + 1, 0, n_in - 1)
        return lo, hi, (src - lo).astype(np.float32)

    hlo, hhi, hf = coords(H, 2 * H)
    wlo, whi, wf = coords(W, 2 * W)
    hf = jnp.asarray(hf)[None, :, None, None]
    wf = jnp.asarray(wf)[None, None, :, None]
    xr = x[:, hlo] * (1.0 - hf) + x[:, hhi] * hf
    xc = xr[:, :, wlo] * (1.0 - wf) + xr[:, :, whi] * wf
    return xc


# ----------------------------------------------------------------------------
# Parameters: synthetic init (PyTorch layout) + one-time fold/transpose/cast
# ----------------------------------------------------------------------------
def init_params(key, in_ch, out_ch):
    mid = out_ch // 4
    keys = iter(jax.random.split(key, 16))

    def conv(o, i, kh, kw):
        k1, k2 = jax.random.split(next(keys))
        fan_in = i * kh * kw
        w = jax.random.normal(k1, (o, i, kh, kw), jnp.float32) * jnp.sqrt(2.0 / fan_in)
        b = jax.random.normal(k2, (o,), jnp.float32) * 0.01
        return {"w": w, "b": b}

    def bn(o):
        return {"gamma": jnp.ones((o,), jnp.float32),
                "beta": jnp.zeros((o,), jnp.float32),
                "mean": jnp.zeros((o,), jnp.float32),
                "var": jnp.ones((o,), jnp.float32)}

    return {
        "c11": {"conv": conv(mid, in_ch, 1, 1), "bn": bn(mid)},        # conv1_1
        "c31": {"conv": conv(mid, mid, 3, 3), "bn": bn(mid)},          # conv3_1
        "c12": {"conv": conv(out_ch, mid, 1, 1), "bn": bn(out_ch)},    # conv1_2
        "c32": {"conv": conv(out_ch, in_ch, 1, 1), "bn": bn(out_ch)},  # conv3_2
    }


def prepare_params(raw):
    """One-time prep: (O,I,KH,KW) -> (KH*KW*I, O), fold BN scale into W,
    bias+BN into shift, cast weights to bf16."""
    def fold(layer):
        w, b, bn = layer["conv"]["w"], layer["conv"]["b"], layer["bn"]
        O, I, KH, KW = w.shape
        scale = bn["gamma"] / jnp.sqrt(bn["var"] + EPS)                  # (O,)
        shift = bn["beta"] + (b - bn["mean"]) * scale                    # (O,)
        w2 = (jnp.transpose(w, (2, 3, 1, 0)).reshape(KH * KW * I, O)
              * scale[None, :]).astype(jnp.bfloat16)
        return {"w": w2, "shift": shift.astype(jnp.float32).reshape(1, O)}
    return {k: fold(v) for k, v in raw.items()}


# ----------------------------------------------------------------------------
# decoder forward (Pallas) and pure-JAX reference
# ----------------------------------------------------------------------------
def decoder_forward(params, x1, x2):
    B, Cin, H, W = x1.shape
    Ho, Wo = 2 * H, 2 * W

    # NCHW -> NHWC (+ bf16 cast); upsample of x1 stays in XLA
    x2h = jnp.transpose(x2, (0, 2, 3, 1)).astype(jnp.bfloat16)
    x1h = jnp.transpose(x1, (0, 2, 3, 1))
    xu = upsample2x_bilinear_ac(x1h).astype(jnp.bfloat16)

    mid = params["c11"]["w"].shape[-1]
    out_ch = params["c12"]["w"].shape[-1]
    M = B * Ho * Wo

    # Kernel 1: skip add + c11(+BN+ReLU) + c32(+BN), one read of x
    # TODO(synk): r still roundtrips HBM (bf16); a fully-fused single kernel
    #             could recompute c32 inside the 3x3 kernel and drop it.
    h, r = fuse1(xu.reshape(M, Cin), x2h.reshape(M, Cin),
                 params["c11"], params["c32"], mid, out_ch)

    # Kernel 2: c31(+BN+ReLU) + c12(+BN) + residual + final ReLU, channel-major out
    out = fuse2(h, r, params["c31"], params["c12"], B, Ho, Wo, mid, out_ch)
    return out.reshape(B, out_ch, Ho, Wo)          # already NCHW, free reshape


def decoder_reference(raw, x1, x2):
    """f32 XLA reference with the exact PyTorch semantics (BN in eval mode)."""
    def cbr(x, layer, relu):
        w, b, bn = layer["conv"]["w"], layer["conv"]["b"], layer["bn"]
        pad = "SAME" if w.shape[2] == 3 else "VALID"
        y = lax.conv_general_dilated(
            x, jnp.transpose(w, (2, 3, 1, 0)), (1, 1), pad,
            dimension_numbers=("NHWC", "HWIO", "NHWC")) + b
        scale = bn["gamma"] / jnp.sqrt(bn["var"] + EPS)
        y = (y - bn["mean"]) * scale + bn["beta"]
        return jnp.maximum(y, 0.0) if relu else y

    x1h = jnp.transpose(x1, (0, 2, 3, 1))
    x2h = jnp.transpose(x2, (0, 2, 3, 1))
    x = upsample2x_bilinear_ac(x1h) + x2h
    h = cbr(x, raw["c11"], True)
    h = cbr(h, raw["c31"], True)
    h = cbr(h, raw["c12"], False)
    r = cbr(x, raw["c32"], False)
    out = jnp.maximum(h + r, 0.0)
    return jnp.transpose(out, (0, 3, 1, 2))


if __name__ == "__main__":
    key = jax.random.PRNGKey(0)
    pkey, k1, k2 = jax.random.split(key, 3)

    in_ch, out_ch = 64, 64
    B, H, W = 2, 8, 8
    raw = init_params(pkey, in_ch, out_ch)
    params = prepare_params(raw)
    x1 = jax.random.normal(k1, (B, in_ch, H, W), jnp.float32)
    x2 = jax.random.normal(k2, (B, in_ch, 2 * H, 2 * W), jnp.float32)

    fwd = jax.jit(decoder_forward)
    out = fwd(params, x1, x2)
    jax.block_until_ready(out)

    assert out.shape == (B, out_ch, 2 * H, 2 * W), out.shape
    assert bool(jnp.all(jnp.isfinite(out)))

    ref = jax.jit(decoder_reference)(raw, x1, x2)
    rel = float(jnp.linalg.norm(out - ref) / (jnp.linalg.norm(ref) + 1e-8))
    assert rel < 0.05, f"relative error too large: {rel}"

    print("KERNEL_OK")
</pallas_src>

<mosaic_0001>
module attributes {stable_mosaic.version = 11 : i64} {
  func.func @_fuse1_kernel(%arg0: i32, %arg1: memref<256x64xbf16, #tpu.memory_space<vmem>>, %arg2: memref<256x64xbf16, #tpu.memory_space<vmem>>, %arg3: memref<64x16xbf16, #tpu.memory_space<vmem>>, %arg4: memref<1x16xf32, #tpu.memory_space<vmem>>, %arg5: memref<64x64xbf16, #tpu.memory_space<vmem>>, %arg6: memref<1x64xf32, #tpu.memory_space<vmem>>, %arg7: memref<256x16xbf16, #tpu.memory_space<vmem>>, %arg8: memref<256x64xbf16, #tpu.memory_space<vmem>>) attributes {dimension_semantics = [#tpu.dimension_semantics<parallel>], iteration_bounds = array<i64: 2>, scalar_prefetch = 0 : i64, scratch_operands = 0 : i64, tpu.core_type = #tpu.core_type<tc>, window_params = [{transform_indices = @transform_0, window_bounds = array<i64: 256, 64>}, {transform_indices = @transform_1, window_bounds = array<i64: 256, 64>}, {pipeline_mode = #tpu.pipeline_mode<synchronous>, transform_indices = @transform_2, window_bounds = array<i64: 64, 16>}, {pipeline_mode = #tpu.pipeline_mode<synchronous>, transform_indices = @transform_3, window_bounds = array<i64: 1, 16>}, {pipeline_mode = #tpu.pipeline_mode<synchronous>, transform_indices = @transform_4, window_bounds = array<i64: 64, 64>}, {pipeline_mode = #tpu.pipeline_mode<synchronous>, transform_indices = @transform_5, window_bounds = array<i64: 1, 64>}, {transform_indices = @transform_6, window_bounds = array<i64: 256, 16>}, {transform_indices = @transform_7, window_bounds = array<i64: 256, 64>}]} {
    %c0 = arith.constant 0 : index
    %c0_0 = arith.constant 0 : index
    %0 = vector.load %arg1[%c0, %c0_0] : memref<256x64xbf16, #tpu.memory_space<vmem>>, vector<256x64xbf16>
    %c0_1 = arith.constant 0 : index
    %c0_2 = arith.constant 0 : index
    %1 = vector.load %arg2[%c0_1, %c0_2] : memref<256x64xbf16, #tpu.memory_space<vmem>>, vector<256x64xbf16>
    %2 = arith.addf %0, %1 : vector<256x64xbf16>
    %c0_3 = arith.constant 0 : index
    %c0_4 = arith.constant 0 : index
    %3 = vector.load %arg3[%c0_3, %c0_4] : memref<64x16xbf16, #tpu.memory_space<vmem>>, vector<64x16xbf16>
    %cst = arith.constant dense<0.000000e+00> : vector<256x16xf32>
    %4 = tpu.matmul %2, %3, %cst {dimension_numbers = #tpu.dot_dimension_numbers<[1], [0], [0], [1], [0, 0, 1, 1], [], []>} : vector<256x64xbf16>, vector<64x16xbf16>, vector<256x16xf32> -> vector<256x16xf32>
    %c0_5 = arith.constant 0 : index
    %c0_6 = arith.constant 0 : index
    %5 = vector.load %arg4[%c0_5, %c0_6] : memref<1x16xf32, #tpu.memory_space<vmem>>, vector<1x16xf32>
    %6 = vector.broadcast %5 : vector<1x16xf32> to vector<256x16xf32>
    %7 = arith.addf %4, %6 : vector<256x16xf32>
    %cst_7 = arith.constant 0.000000e+00 : f32
    %8 = vector.broadcast %cst_7 : f32 to vector<256x16xf32>
    %9 = arith.maximumf %7, %8 : vector<256x16xf32>
    %10 = arith.truncf %9 : vector<256x16xf32> to vector<256x16xbf16>
    %c0_8 = arith.constant 0 : index
    %c0_9 = arith.constant 0 : index
    %11 = vector.load %arg7[%c0_8, %c0_9] : memref<256x16xbf16, #tpu.memory_space<vmem>>, vector<256x16xbf16>
    tpu.vector_store %arg7[%c0_8, %c0_9], %10 {strides = array<i32>} : memref<256x16xbf16, #tpu.memory_space<vmem>>, vector<256x16xbf16>,
    %c0_10 = arith.constant 0 : index
    %c0_11 = arith.constant 0 : index
    %12 = vector.load %arg5[%c0_10, %c0_11] : memref<64x64xbf16, #tpu.memory_space<vmem>>, vector<64x64xbf16>
    %cst_12 = arith.constant dense<0.000000e+00> : vector<256x64xf32>
    %13 = tpu.matmul %2, %12, %cst_12 {dimension_numbers = #tpu.dot_dimension_numbers<[1], [0], [0], [1], [0, 0, 1, 1], [], []>} : vector<256x64xbf16>, vector<64x64xbf16>, vector<256x64xf32> -> vector<256x64xf32>
    %c0_13 = arith.constant 0 : index
    %c0_14 = arith.constant 0 : index
    %14 = vector.load %arg6[%c0_13, %c0_14] : memref<1x64xf32, #tpu.memory_space<vmem>>, vector<1x64xf32>
    %15 = vector.broadcast %14 : vector<1x64xf32> to vector<256x64xf32>
    %16 = arith.addf %13, %15 : vector<256x64xf32>
    %17 = arith.truncf %16 : vector<256x64xf32> to vector<256x64xbf16>
    %c0_15 = arith.constant 0 : index
    %c0_16 = arith.constant 0 : index
    %18 = vector.load %arg8[%c0_15, %c0_16] : memref<256x64xbf16, #tpu.memory_space<vmem>>, vector<256x64xbf16>
    tpu.vector_store %arg8[%c0_15, %c0_16], %17 {strides = array<i32>} : memref<256x64xbf16, #tpu.memory_space<vmem>>, vector<256x64xbf16>,
    return
  }
  func.func @transform_0(%arg0: i32) -> (i32, i32) {
    %c0_i32 = arith.constant 0 : i32
    %c0_i32_0 = arith.constant 0 : i32
    return %arg0, %c0_i32 : i32, i32
  }
  func.func @transform_1(%arg0: i32) -> (i32, i32) {
    %c0_i32 = arith.constant 0 : i32
    %c0_i32_0 = arith.constant 0 : i32
    return %arg0, %c0_i32 : i32, i32
  }
  func.func @transform_2(%arg0: i32) -> (i32, i32) {
    %c0_i32 = arith.constant 0 : i32
    %c0_i32_0 = arith.constant 0 : i32
    %c0_i32_1 = arith.constant 0 : i32
    return %c0_i32, %c0_i32_0 : i32, i32
  }
  func.func @transform_3(%arg0: i32) -> (i32, i32) {
    %c0_i32 = arith.constant 0 : i32
    %c0_i32_0 = arith.constant 0 : i32
    %c0_i32_1 = arith.constant 0 : i32
    return %c0_i32, %c0_i32_0 : i32, i32
  }
  func.func @transform_4(%arg0: i32) -> (i32, i32) {
    %c0_i32 = arith.constant 0 : i32
    %c0_i32_0 = arith.constant 0 : i32
    %c0_i32_1 = arith.constant 0 : i32
    return %c0_i32, %c0_i32_0 : i32, i32
  }
  func.func @transform_5(%arg0: i32) -> (i32, i32) {
    %c0_i32 = arith.constant 0 : i32
    %c0_i32_0 = arith.constant 0 : i32
    %c0_i32_1 = arith.constant 0 : i32
    return %c0_i32, %c0_i32_0 : i32, i32
  }
  func.func @transform_6(%arg0: i32) -> (i32, i32) {
    %c0_i32 = arith.constant 0 : i32
    %c0_i32_0 = arith.constant 0 : i32
    return %arg0, %c0_i32 : i32, i32
  }
  func.func @transform_7(%arg0: i32) -> (i32, i32) {
    %c0_i32 = arith.constant 0 : i32
    %c0_i32_0 = arith.constant 0 : i32
    return %arg0, %c0_i32 : i32, i32
  }
}

module attributes {stable_mosaic.version = 11 : i64} {
  func.func @_fuse2_kernel(%arg0: i32, %arg1: i32, %arg2: memref<1x1x296x16xbf16, #tpu.memory_space<vmem>>, %arg3: memref<1x1x256x64xbf16, #tpu.memory_space<vmem>>, %arg4: memref<256x2xbf16, #tpu.memory_space<vmem>>, %arg5: memref<144x16xbf16, #tpu.memory_space<vmem>>, %arg6: memref<1x16xf32, #tpu.memory_space<vmem>>, %arg7: memref<16x64xbf16, #tpu.memory_space<vmem>>, %arg8: memref<1x64xf32, #tpu.memory_space<vmem>>, %arg9: memref<1x64x256xf32, #tpu.memory_space<vmem>>, %arg10: memref<256x144xbf16, #tpu.memory_space<vmem>>) attributes {dimension_semantics = [#tpu.dimension_semantics<parallel>, #tpu.dimension_semantics<parallel>], iteration_bounds = array<i64: 2, 1>, scalar_prefetch = 0 : i64, scratch_operands = 1 : i64, tpu.core_type = #tpu.core_type<tc>, window_params = [{transform_indices = @transform_0, window_bounds = array<i64: 1, 1, 296, 16>}, {transform_indices = @transform_1, window_bounds = array<i64: 1, 1, 256, 64>}, {pipeline_mode = #tpu.pipeline_mode<synchronous>, transform_indices = @transform_2, window_bounds = array<i64: 256, 2>}, {pipeline_mode = #tpu.pipeline_mode<synchronous>, transform_indices = @transform_3, window_bounds = array<i64: 144, 16>}, {pipeline_mode = #tpu.pipeline_mode<synchronous>, transform_indices = @transform_4, window_bounds = array<i64: 1, 16>}, {pipeline_mode = #tpu.pipeline_mode<synchronous>, transform_indices = @transform_5, window_bounds = array<i64: 16, 64>}, {pipeline_mode = #tpu.pipeline_mode<synchronous>, transform_indices = @transform_6, window_bounds = array<i64: 1, 64>}, {transform_indices = @transform_7, window_bounds = array<i64: 1, 64, 256>}]} {
    %c0 = arith.constant 0 : index
    %c0_0 = arith.constant 0 : index
    %0 = vector.load %arg4[%c0, %c0_0] : memref<256x2xbf16, #tpu.memory_space<vmem>>, vector<256x1xbf16>
    %c0_1 = arith.constant 0 : index
    %c1 = arith.constant 1 : index
    %1 = vector.load %arg4[%c0_1, %c1] : memref<256x2xbf16, #tpu.memory_space<vmem>>, vector<256x1xbf16>
    %c0_2 = arith.constant 0 : index
    %c0_3 = arith.constant 0 : index
    %c0_4 = arith.constant 0 : index
    %c0_5 = arith.constant 0 : index
    %2 = vector.load %arg2[%c0_2, %c0_3, %c0_4, %c0_5] : memref<1x1x296x16xbf16, #tpu.memory_space<vmem>>, vector<1x1x256x16xbf16>
    %3 = vector.shape_cast %2 : vector<1x1x256x16xbf16> to vector<256x16xbf16>
    %4 = vector.broadcast %0 : vector<256x1xbf16> to vector<256x16xbf16>
    %5 = arith.mulf %3, %4 : vector<256x16xbf16>
    %c0_6 = arith.constant 0 : index
    %c0_7 = arith.constant 0 : index
    %6 = vector.load %arg10[%c0_6, %c0_7] : memref<256x144xbf16, #tpu.memory_space<vmem>>, vector<256x16xbf16>
    tpu.vector_store %arg10[%c0_6, %c0_7], %5 {strides = array<i32>} : memref<256x144xbf16, #tpu.memory_space<vmem>>, vector<256x16xbf16>,
    %c0_8 = arith.constant 0 : index
    %c0_9 = arith.constant 0 : index
    %c1_10 = arith.constant 1 : index
    %c0_11 = arith.constant 0 : index
    %7 = vector.load %arg2[%c0_8, %c0_9, %c1_10, %c0_11] : memref<1x1x296x16xbf16, #tpu.memory_space<vmem>>, vector<1x1x256x16xbf16>
    %8 = vector.shape_cast %7 : vector<1x1x256x16xbf16> to vector<256x16xbf16>
    %c0_12 = arith.constant 0 : index
    %c16 = arith.constant 16 : index
    %9 = vector.load %arg10[%c0_12, %c16] : memref<256x144xbf16, #tpu.memory_space<vmem>>, vector<256x16xbf16>
    tpu.vector_store %arg10[%c0_12, %c16], %8 {strides = array<i32>} : memref<256x144xbf16, #tpu.memory_space<vmem>>, vector<256x16xbf16>,
    %c0_13 = arith.constant 0 : index
    %c0_14 = arith.constant 0 : index
    %c2 = arith.constant 2 : index
    %c0_15 = arith.constant 0 : index
    %10 = vector.load %arg2[%c0_13, %c0_14, %c2, %c0_15] : memref<1x1x296x16xbf16, #tpu.memory_space<vmem>>, vector<1x1x256x16xbf16>
    %11 = vector.shape_cast %10 : vector<1x1x256x16xbf16> to vector<256x16xbf16>
    %12 = vector.broadcast %1 : vector<256x1xbf16> to vector<256x16xbf16>
    %13 = arith.mulf %11, %12 : vector<256x16xbf16>
    %c0_16 = arith.constant 0 : index
    %c32 = arith.constant 32 : index
    %14 = vector.load %arg10[%c0_16, %c32] : memref<256x144xbf16, #tpu.memory_space<vmem>>, vector<256x16xbf16>
    tpu.vector_store %arg10[%c0_16, %c32], %13 {strides = array<i32>} : memref<256x144xbf16, #tpu.memory_space<vmem>>, vector<256x16xbf16>,
    %c0_17 = arith.constant 0 : index
    %c0_18 = arith.constant 0 : index
    %c16_19 = arith.constant 16 : index
    %c0_20 = arith.constant 0 : index
    %15 = vector.load %arg2[%c0_17, %c0_18, %c16_19, %c0_20] : memref<1x1x296x16xbf16, #tpu.memory_space<vmem>>, vector<1x1x256x16xbf16>
    %16 = vector.shape_cast %15 : vector<1x1x256x16xbf16> to vector<256x16xbf16>
    %17 = vector.broadcast %0 : vector<256x1xbf16> to vector<256x16xbf16>
    %18 = arith.mulf %16, %17 : vector<256x16xbf16>
    %c0_21 = arith.constant 0 : index
    %c48 = arith.constant 48 : index
    %19 = vector.load %arg10[%c0_21, %c48] : memref<256x144xbf16, #tpu.memory_space<vmem>>, vector<256x16xbf16>
    tpu.vector_store %arg10[%c0_21, %c48], %18 {strides = array<i32>} : memref<256x144xbf16, #tpu.memory_space<vmem>>, vector<256x16xbf16>,
    %c0_22 = arith.constant 0 : index
    %c0_23 = arith.constant 0 : index
    %c17 = arith.constant 17 : index
    %c0_24 = arith.constant 0 : index
    %20 = vector.load %arg2[%c0_22, %c0_23, %c17, %c0_24] : memref<1x1x296x16xbf16, #tpu.memory_space<vmem>>, vector<1x1x256x16xbf16>
    %21 = vector.shape_cast %20 : vector<1x1x256x16xbf16> to vector<256x16xbf16>
    %c0_25 = arith.constant 0 : index
    %c64 = arith.constant 64 : index
    %22 = vector.load %arg10[%c0_25, %c64] : memref<256x144xbf16, #tpu.memory_space<vmem>>, vector<256x16xbf16>
    tpu.vector_store %arg10[%c0_25, %c64], %21 {strides = array<i32>} : memref<256x144xbf16, #tpu.memory_space<vmem>>, vector<256x16xbf16>,
    %c0_26 = arith.constant 0 : index
    %c0_27 = arith.constant 0 : index
    %c18 = arith.constant 18 : index
    %c0_28 = arith.constant 0 : index
    %23 = vector.load %arg2[%c0_26, %c0_27, %c18, %c0_28] : memref<1x1x296x16xbf16, #tpu.memory_space<vmem>>, vector<1x1x256x16xbf16>
    %24 = vector.shape_cast %23 : vector<1x1x256x16xbf16> to vector<256x16xbf16>
    %25 = vector.broadcast %1 : vector<256x1xbf16> to vector<256x16xbf16>
    %26 = arith.mulf %24, %25 : vector<256x16xbf16>
    %c0_29 = arith.constant 0 : index
    %c80 = arith.constant 80 : index
    %27 = vector.load %arg10[%c0_29, %c80] : memref<256x144xbf16, #tpu.memory_space<vmem>>, vector<256x16xbf16>
    tpu.vector_store %arg10[%c0_29, %c80], %26 {strides = array<i32>} : memref<256x144xbf16, #tpu.memory_space<vmem>>, vector<256x16xbf16>,
    %c0_30 = arith.constant 0 : index
    %c0_31 = arith.constant 0 : index
    %c32_32 = arith.constant 32 : index
    %c0_33 = arith.constant 0 : index
    %28 = vector.load %arg2[%c0_30, %c0_31, %c32_32, %c0_33] : memref<1x1x296x16xbf16, #tpu.memory_space<vmem>>, vector<1x1x256x16xbf16>
    %29 = vector.shape_cast %28 : vector<1x1x256x16xbf16> to vector<256x16xbf16>
    %30 = vector.broadcast %0 : vector<256x1xbf16> to vector<256x16xbf16>
    %31 = arith.mulf %29, %30 : vector<256x16xbf16>
    %c0_34 = arith.constant 0 : index
    %c96 = arith.constant 96 : index
    %32 = vector.load %arg10[%c0_34, %c96] : memref<256x144xbf16, #tpu.memory_space<vmem>>, vector<256x16xbf16>
    tpu.vector_store %arg10[%c0_34, %c96], %31 {strides = array<i32>} : memref<256x144xbf16, #tpu.memory_space<vmem>>, vector<256x16xbf16>,
    %c0_35 = arith.constant 0 : index
    %c0_36 = arith.constant 0 : index
    %c33 = arith.constant 33 : index
    %c0_37 = arith.constant 0 : index
    %33 = vector.load %arg2[%c0_35, %c0_36, %c33, %c0_37] : memref<1x1x296x16xbf16, #tpu.memory_space<vmem>>, vector<1x1x256x16xbf16>
    %34 = vector.shape_cast %33 : vector<1x1x256x16xbf16> to vector<256x16xbf16>
    %c0_38 = arith.constant 0 : index
    %c112 = arith.constant 112 : index
    %35 = vector.load %arg10[%c0_38, %c112] : memref<256x144xbf16, #tpu.memory_space<vmem>>, vector<256x16xbf16>
    tpu.vector_store %arg10[%c0_38, %c112], %34 {strides = array<i32>} : memref<256x144xbf16, #tpu.memory_space<vmem>>, vector<256x16xbf16>,
    %c0_39 = arith.constant 0 : index
    %c0_40 = arith.constant 0 : index
    %c34 = arith.constant 34 : index
    %c0_41 = arith.constant 0 : index
    %36 = vector.load %arg2[%c0_39, %c0_40, %c34, %c0_41] : memref<1x1x296x16xbf16, #tpu.memory_space<vmem>>, vector<1x1x256x16xbf16>
    %37 = vector.shape_cast %36 : vector<1x1x256x16xbf16> to vector<256x16xbf16>
    %38 = vector.broadcast %1 : vector<256x1xbf16> to vector<256x16xbf16>
    %39 = arith.mulf %37, %38 : vector<256x16xbf16>
    %c0_42 = arith.constant 0 : index
    %c128 = arith.constant 128 : index
    %40 = vector.load %arg10[%c0_42, %c128] : memref<256x144xbf16, #tpu.memory_space<vmem>>, vector<256x16xbf16>
    tpu.vector_store %arg10[%c0_42, %c128], %39 {strides = array<i32>} : memref<256x144xbf16, #tpu.memory_space<vmem>>, vector<256x16xbf16>,
    %c0_43 = arith.constant 0 : index
    %c0_44 = arith.constant 0 : index
    %41 = vector.load %arg10[%c0_43, %c0_44] : memref<256x144xbf16, #tpu.memory_space<vmem>>, vector<256x144xbf16>
    %c0_45 = arith.constant 0 : index
    %c0_46 = arith.constant 0 : index
    %42 = vector.load %arg5[%c0_45, %c0_46] : memref<144x16xbf16, #tpu.memory_space<vmem>>, vector<144x16xbf16>
    %cst = arith.constant dense<0.000000e+00> : vector<256x16xf32>
    %43 = tpu.matmul %41, %42, %cst {dimension_numbers = #tpu.dot_dimension_numbers<[1], [0], [0], [1], [0, 0, 1, 1], [], []>} : vector<256x144xbf16>, vector<144x16xbf16>, vector<256x16xf32> -> vector<256x16xf32>
    %c0_47 = arith.constant 0 : index
    %c0_48 = arith.constant 0 : index
    %44 = vector.load %arg6[%c0_47, %c0_48] : memref<1x16xf32, #tpu.memory_space<vmem>>, vector<1x16xf32>
    %45 = vector.broadcast %44 : vector<1x16xf32> to vector<256x16xf32>
    %46 = arith.addf %43, %45 : vector<256x16xf32>
    %cst_49 = arith.constant 0.000000e+00 : f32
    %47 = vector.broadcast %cst_49 : f32 to vector<256x16xf32>
    %48 = arith.maximumf %46, %47 : vector<256x16xf32>
    %49 = arith.truncf %48 : vector<256x16xf32> to vector<256x16xbf16>
    %c0_50 = arith.constant 0 : index
    %c0_51 = arith.constant 0 : index
    %50 = vector.load %arg7[%c0_50, %c0_51] : memref<16x64xbf16, #tpu.memory_space<vmem>>, vector<16x64xbf16>
    %cst_52 = arith.constant dense<0.000000e+00> : vector<256x64xf32>
    %51 = tpu.matmul %49, %50, %cst_52 {dimension_numbers = #tpu.dot_dimension_numbers<[1], [0], [0], [1], [0, 0, 1, 1], [], []>} : vector<256x16xbf16>, vector<16x64xbf16>, vector<256x64xf32> -> vector<256x64xf32>
    %c0_53 = arith.constant 0 : index
    %c0_54 = arith.constant 0 : index
    %52 = vector.load %arg8[%c0_53, %c0_54] : memref<1x64xf32, #tpu.memory_space<vmem>>, vector<1x64xf32>
    %53 = vector.broadcast %52 : vector<1x64xf32> to vector<256x64xf32>
    %54 = arith.addf %51, %53 : vector<256x64xf32>
    %c0_55 = arith.constant 0 : index
    %c0_56 = arith.constant 0 : index
    %c0_57 = arith.constant 0 : index
    %c0_58 = arith.constant 0 : index
    %55 = vector.load %arg3[%c0_55, %c0_56, %c0_57, %c0_58] : memref<1x1x256x64xbf16, #tpu.memory_space<vmem>>, vector<1x1x256x64xbf16>
    %56 = vector.shape_cast %55 : vector<1x1x256x64xbf16> to vector<256x64xbf16>
    %57 = arith.extf %56 : vector<256x64xbf16> to vector<256x64xf32>
    %58 = arith.addf %54, %57 : vector<256x64xf32>
    %cst_59 = arith.constant 0.000000e+00 : f32
    %59 = vector.broadcast %cst_59 : f32 to vector<256x64xf32>
    %60 = arith.maximumf %58, %59 : vector<256x64xf32>
    %61 = tpu.transpose %60, [1, 0] : vector<256x64xf32> -> vector<64x256xf32>
    %c0_60 = arith.constant 0 : index
    %c0_61 = arith.constant 0 : index
    %c0_62 = arith.constant 0 : index
    %62 = vector.load %arg9[%c0_60, %c0_61, %c0_62] : memref<1x64x256xf32, #tpu.memory_space<vmem>>, vector<1x64x256xf32>
    %63 = vector.shape_cast %62 : vector<1x64x256xf32> to vector<64x256xf32>
    %64 = vector.shape_cast %61 : vector<64x256xf32> to vector<1x64x256xf32>
    tpu.vector_store %arg9[%c0_60, %c0_61, %c0_62], %64 {strides = array<i32>} : memref<1x64x256xf32, #tpu.memory_space<vmem>>, vector<1x64x256xf32>,
    return
  }
  func.func @transform_0(%arg0: i32, %arg1: i32) -> (i32, i32, i32, i32) {
    %c0_i32 = arith.constant 0 : i32
    %c0_i32_0 = arith.constant 0 : i32
    %c0_i32_1 = arith.constant 0 : i32
    return %arg0, %arg1, %c0_i32, %c0_i32_0 : i32, i32, i32, i32
  }
  func.func @transform_1(%arg0: i32, %arg1: i32) -> (i32, i32, i32, i32) {
    %c0_i32 = arith.constant 0 : i32
    %c0_i32_0 = arith.constant 0 : i32
    %c0_i32_1 = arith.constant 0 : i32
    return %arg0, %arg1, %c0_i32, %c0_i32_0 : i32, i32, i32, i32
  }
  func.func @transform_2(%arg0: i32, %arg1: i32) -> (i32, i32) {
    %c0_i32 = arith.constant 0 : i32
    %c0_i32_0 = arith.constant 0 : i32
    %c0_i32_1 = arith.constant 0 : i32
    return %c0_i32, %c0_i32_0 : i32, i32
  }
  func.func @transform_3(%arg0: i32, %arg1: i32) -> (i32, i32) {
    %c0_i32 = arith.constant 0 : i32
    %c0_i32_0 = arith.constant 0 : i32
    %c0_i32_1 = arith.constant 0 : i32
    return %c0_i32, %c0_i32_0 : i32, i32
  }
  func.func @transform_4(%arg0: i32, %arg1: i32) -> (i32, i32) {
    %c0_i32 = arith.constant 0 : i32
    %c0_i32_0 = arith.constant 0 : i32
    %c0_i32_1 = arith.constant 0 : i32
    return %c0_i32, %c0_i32_0 : i32, i32
  }
  func.func @transform_5(%arg0: i32, %arg1: i32) -> (i32, i32) {
    %c0_i32 = arith.constant 0 : i32
    %c0_i32_0 = arith.constant 0 : i32
    %c0_i32_1 = arith.constant 0 : i32
    return %c0_i32, %c0_i32_0 : i32, i32
  }
  func.func @transform_6(%arg0: i32, %arg1: i32) -> (i32, i32) {
    %c0_i32 = arith.constant 0 : i32
    %c0_i32_0 = arith.constant 0 : i32
    %c0_i32_1 = arith.constant 0 : i32
    return %c0_i32, %c0_i32_0 : i32, i32
  }
  func.func @transform_7(%arg0: i32, %arg1: i32) -> (i32, i32, i32) {
    %c0_i32 = arith.constant 0 : i32
    %c0_i32_0 = arith.constant 0 : i32
    return %arg0, %c0_i32, %arg1 : i32, i32, i32
  }
}

</mosaic_0001>

<llo_original>
// kernel: decoder_forward.2
$region0: #{decoder_forward.2}
  #allocation0 [shape = 'u32[]', space=smem, size = 0x4, offset = 0x4, fixed_abs, tag = 'smem constant byte address 0x4 - core index']
  #allocation1 [shape = 'u32[144,128]{1,0:T(1,128)}', space=vmem, size = 0x12000, scoped, tag = 'internal scratch']
  %s0 = inlined_call_operand.vmem [shape: bf16[512,64], index: 0, kind: input, shape index: {}]
  %s1 = inlined_call_operand.vmem [shape: bf16[512,64], index: 1, kind: input, shape index: {}]
  %s2 = inlined_call_operand.vmem [shape: bf16[64,16], index: 2, kind: input, shape index: {}]
  %s3 = inlined_call_operand.vmem [shape: f32[1,16], index: 3, kind: input, shape index: {}]
  %s4 = inlined_call_operand.vmem [shape: bf16[64,64], index: 4, kind: input, shape index: {}]
  %s5 = inlined_call_operand.vmem [shape: f32[1,64], index: 5, kind: input, shape index: {}]
  %s6 = inlined_call_operand.vmem [shape: bf16[512,16], index: 6, kind: output, shape index: {0}]
  %s7 = inlined_call_operand.vmem [shape: bf16[512,64], index: 7, kind: output, shape index: {1}]
  %8 = xla_tuple %s6, %s7
  %s9 = sld [smem:[#allocation0]]
  $region65: #{decoder_forward.2} parent=0
    _
  %s11 = ssub.s32 1, %s9
  %s12 = scalar_select 0, %s11, %s9
  loop: start=0, step=1, limit=4
  $region2: #{decoder_forward.2} parent=0 // loop_pre_header
    _
  $region3: #{decoder_forward.2} parent=0 // loop_header
    %s14 = sphi 0, %s18
    %p15 = scmp.ge.s32.totalorder %s14, 4
    %s24 = sphi 0, %s26
    %s27 = sphi 0, %s24
    %s28 = sphi 0, %s27
    %s44 = sphi 0, %s28
    %s50 = sphi 0, %s52
    %s53 = sphi 0, %s50
    %s54 = sphi 0, %s53
    %s70 = sphi 0, %s54
    %s74 = sphi 0, %s74
    %s76 = sphi 0, %s74
    %s77 = sphi 0, %s76
    %s91 = sphi 0, %s77
    %s95 = sphi 0, %s95
    %s97 = sphi 0, %s95
    %s98 = sphi 0, %s97
    %s112 = sphi 0, %s98
    %s116 = sphi 0, %s116
    %s118 = sphi 0, %s116
    %s119 = sphi 0, %s118
    %s133 = sphi 0, %s119
    %s137 = sphi 0, %s137
    %s139 = sphi 0, %s137
    %s140 = sphi 0, %s139
    %s154 = sphi 0, %s140
    %s160 = sphi 0, %s162
    %s163 = sphi 0, %s160
    %s164 = sphi 0, %s163
    %s180 = sphi 0, %s164
    %s186 = sphi 0, %s188
    %s189 = sphi 0, %s186
    %s190 = sphi 0, %s189
    %s206 = sphi 0, %s190
  $region4: #{decoder_forward.2} parent=0 // loop_header_branch
    %17 = sbr.rel (%p15) target = $region8
  $region5: #{decoder_forward.2} parent=0 // loop_body
    %s19 = ssub.s32 %s14, 1
    %s20 = ssub.s32 %s14, 2
    %s21 = sadd.s32 %s14, 1
    %s22 = ssub.s32 %s14, %s21
    %p23 = scmp.eq.s32.totalorder %s22, 0
    %s25 = sadd.s32 %s24, 1
    %s26 = scalar_select %p23, %s24, %s25
    %p29 = pneg %p23
    %p30 = scmp.eq.s32.totalorder %s14, 1
    %p31 = por %p29, %p30
    %p32 = scmp.ne.s32.totalorder %s24, %s27
    %p33 = scmp.eq.s32.totalorder %s14, 0
    %p34 = por %p32, %p33
    %p35 = scmp.ne.s32.totalorder %s24, %s27
    %p36 = scmp.eq.s32.totalorder %s19, 1
    %p37 = por %p35, %p36
    %p38 = scmp.ne.s32.totalorder %s27, %s28
    %p39 = scmp.eq.s32.totalorder %s19, 0
    %p40 = por %p38, %p39
    %p41 = scmp.ne.s32.totalorder %s27, %s28
    %p42 = scmp.eq.s32.totalorder %s20, 1
    %p43 = por %p41, %p42
    %p45 = scmp.ne.s32.totalorder %s28, %s44
    %p46 = scmp.eq.s32.totalorder %s20, 0
    %p47 = por %p45, %p46
    %s48 = ssub.s32 %s14, %s21
    %p49 = scmp.eq.s32.totalorder %s48, 0
    %s51 = sadd.s32 %s50, 1
    %s52 = scalar_select %p49, %s50, %s51
    %p55 = pneg %p49
    %p56 = scmp.eq.s32.totalorder %s14, 1
    %p57 = por %p55, %p56
    %p58 = scmp.ne.s32.totalorder %s50, %s53
    %p59 = scmp.eq.s32.totalorder %s14, 0
    %p60 = por %p58, %p59
    %p61 = scmp.ne.s32.totalorder %s50, %s53
    %p62 = scmp.eq.s32.totalorder %s19, 1
    %p63 = por %p61, %p62
    %p64 = scmp.ne.s32.totalorder %s53, %s54
    %p65 = scmp.eq.s32.totalorder %s19, 0
    %p66 = por %p64, %p65
    %p67 = scmp.ne.s32.totalorder %s53, %s54
    %p68 = scmp.eq.s32.totalorder %s20, 1
    %p69 = por %p67, %p68
    %p71 = scmp.ne.s32.totalorder %s54, %s70
    %p72 = scmp.eq.s32.totalorder %s20, 0
    %p73 = por %p71, %p72
    %s75 = sadd.s32 %s74, 1
    %p78 = scmp.eq.s32.totalorder %s14, 1
    %p79 = scmp.ne.s32.totalorder %s74, %s76
    %p80 = scmp.eq.s32.totalorder %s14, 0
    %p81 = por %p79, %p80
    %p82 = scmp.ne.s32.totalorder %s74, %s76
    %p83 = scmp.eq.s32.totalorder %s19, 1
    %p84 = por %p82, %p83
    %p85 = scmp.ne.s32.totalorder %s76, %s77
    %p86 = scmp.eq.s32.totalorder %s19, 0
    %p87 = por %p85, %p86
    %p88 = scmp.ne.s32.totalorder %s76, %s77
    %p89 = scmp.eq.s32.totalorder %s20, 1
    %p90 = por %p88, %p89
    %p92 = scmp.ne.s32.totalorder %s77, %s91
    %p93 = scmp.eq.s32.totalorder %s20, 0
    %p94 = por %p92, %p93
    %s96 = sadd.s32 %s95, 1
    %p99 = scmp.eq.s32.totalorder %s14, 1
    %p100 = scmp.ne.s32.totalorder %s95, %s97
    %p101 = scmp.eq.s32.totalorder %s14, 0
    %p102 = por %p100, %p101
    %p103 = scmp.ne.s32.totalorder %s95, %s97
    %p104 = scmp.eq.s32.totalorder %s19, 1
    %p105 = por %p103, %p104
    %p106 = scmp.ne.s32.totalorder %s97, %s98
    %p107 = scmp.eq.s32.totalorder %s19, 0
    %p108 = por %p106, %p107
    %p109 = scmp.ne.s32.totalorder %s97, %s98
    %p110 = scmp.eq.s32.totalorder %s20, 1
    %p111 = por %p109, %p110
    %p113 = scmp.ne.s32.totalorder %s98, %s112
    %p114 = scmp.eq.s32.totalorder %s20, 0
    %p115 = por %p113, %p114
    %s117 = sadd.s32 %s116, 1
    %p120 = scmp.eq.s32.totalorder %s14, 1
    %p121 = scmp.ne.s32.totalorder %s116, %s118
    %p122 = scmp.eq.s32.totalorder %s14, 0
    %p123 = por %p121, %p122
    %p124 = scmp.ne.s32.totalorder %s116, %s118
    %p125 = scmp.eq.s32.totalorder %s19, 1
    %p126 = por %p124, %p125
    %p127 = scmp.ne.s32.totalorder %s118, %s119
    %p128 = scmp.eq.s32.totalorder %s19, 0
    %p129 = por %p127, %p128
    %p130 = scmp.ne.s32.totalorder %s118, %s119
    %p131 = scmp.eq.s32.totalorder %s20, 1
    %p132 = por %p130, %p131
    %p134 = scmp.ne.s32.totalorder %s119, %s133
    %p135 = scmp.eq.s32.totalorder %s20, 0
    %p136 = por %p134, %p135
    %s138 = sadd.s32 %s137, 1
    %p141 = scmp.eq.s32.totalorder %s14, 1
    %p142 = scmp.ne.s32.totalorder %s137, %s139
    %p143 = scmp.eq.s32.totalorder %s14, 0
    %p144 = por %p142, %p143
    %p145 = scmp.ne.s32.totalorder %s137, %s139
    %p146 = scmp.eq.s32.totalorder %s19, 1
    %p147 = por %p145, %p146
    %p148 = scmp.ne.s32.totalorder %s139, %s140
    %p149 = scmp.eq.s32.totalorder %s19, 0
    %p150 = por %p148, %p149
    %p151 = scmp.ne.s32.totalorder %s139, %s140
    %p152 = scmp.eq.s32.totalorder %s20, 1
    %p153 = por %p151, %p152
    %p155 = scmp.ne.s32.totalorder %s140, %s154
    %p156 = scmp.eq.s32.totalorder %s20, 0
    %p157 = por %p155, %p156
    %s158 = ssub.s32 %s14, %s21
    %p159 = scmp.eq.s32.totalorder %s158, 0
    %s161 = sadd.s32 %s160, 1
    %s162 = scalar_select %p159, %s160, %s161
    %p165 = pneg %p159
    %p166 = scmp.eq.s32.totalorder %s14, 1
    %p167 = por %p165, %p166
    %p168 = scmp.ne.s32.totalorder %s160, %s163
    %p169 = scmp.eq.s32.totalorder %s14, 0
    %p170 = por %p168, %p169
    %p171 = scmp.ne.s32.totalorder %s160, %s163
    %p172 = scmp.eq.s32.totalorder %s19, 1
    %p173 = por %p171, %p172
    %p174 = scmp.ne.s32.totalorder %s163, %s164
    %p175 = scmp.eq.s32.totalorder %s19, 0
    %p176 = por %p174, %p175
    %p177 = scmp.ne.s32.totalorder %s163, %s164
    %p178 = scmp.eq.s32.totalorder %s20, 1
    %p179 = por %p177, %p178
    %p181 = scmp.ne.s32.totalorder %s164, %s180
    %p182 = scmp.eq.s32.totalorder %s20, 0
    %p183 = por %p181, %p182
    %s184 = ssub.s32 %s14, %s21
    %p185 = scmp.eq.s32.totalorder %s184, 0
    %s187 = sadd.s32 %s186, 1
    %s188 = scalar_select %p185, %s186, %s187
    %p191 = pneg %p185
    %p192 = scmp.eq.s32.totalorder %s14, 1
    %p193 = por %p191, %p192
    %p194 = scmp.ne.s32.totalorder %s186, %s189
    %p195 = scmp.eq.s32.totalorder %s14, 0
    %p196 = por %p194, %p195
    %p197 = scmp.ne.s32.totalorder %s186, %s189
    %p198 = scmp.eq.s32.totalorder %s19, 1
    %p199 = por %p197, %p198
    %p200 = scmp.ne.s32.totalorder %s189, %s190
    %p201 = scmp.eq.s32.totalorder %s19, 0
    %p202 = por %p200, %p201
    %p203 = scmp.ne.s32.totalorder %s189, %s190
    %p204 = scmp.eq.s32.totalorder %s20, 1
    %p205 = por %p203, %p204
    %p207 = scmp.ne.s32.totalorder %s190, %s206
    %p208 = scmp.eq.s32.totalorder %s20, 0
    %p209 = por %p207, %p208
    %p210 = scmp.le.s32.totalorder 1, %s14
    %p211 = scmp.lt.s32.totalorder %s14, 3
    %p212 = pnand %p210, %p211
    %p213 = pneg %p212
    // Predicated region
    $region9: #{decoder_forward.2} parent=5 // pred_check
      _
    $region10: #{decoder_forward.2} parent=5 // pred_check_branch
      %215 = sbr.rel (%p212) target = $region12
    $region11: #{decoder_forward.2} parent=5 // pred_region
      %s216 = ssub.s32 %s14, 1
      // Predicated region
      $region13: #{decoder_forward.2} parent=11 // pred_check
        %p217 = pneg %p87
      $region14: #{decoder_forward.2} parent=11 // pred_check_branch
        %219 = sbr.rel (%p217) target = $region16
      $region15: #{decoder_forward.2} parent=11 // pred_region
        _
      $region16: #{decoder_forward.2} parent=11 // pred_fallthru
        _
      // Predicated region
      $region17: #{decoder_forward.2} parent=11 // pred_check
        %p220 = pneg %p108
      $region18: #{decoder_forward.2} parent=11 // pred_check_branch
        %222 = sbr.rel (%p220) target = $region20
      $region19: #{decoder_forward.2} parent=11 // pred_region
        _
      $region20: #{decoder_forward.2} parent=11 // pred_fallthru
        _
      // Predicated region
      $region21: #{decoder_forward.2} parent=11 // pred_check
        %p223 = pneg %p129
      $region22: #{decoder_forward.2} parent=11 // pred_check_branch
        %225 = sbr.rel (%p223) target = $region24
      $region23: #{decoder_forward.2} parent=11 // pred_region
        _
      $region24: #{decoder_forward.2} parent=11 // pred_fallthru
        _
      // Predicated region
      $region25: #{decoder_forward.2} parent=11 // pred_check
        %p226 = pneg %p150
      $region26: #{decoder_forward.2} parent=11 // pred_check_branch
        %228 = sbr.rel (%p226) target = $region28
      $region27: #{decoder_forward.2} parent=11 // pred_region
        _
      $region28: #{decoder_forward.2} parent=11 // pred_fallthru
        _
    $region12: #{decoder_forward.2} parent=5 // pred_fallthru
      _
    %p229 = scmp.lt.s32.totalorder %s14, 2
    // Predicated region
    $region29: #{decoder_forward.2} parent=5 // pred_check
      %p230 = pneg %p229
    $region30: #{decoder_forward.2} parent=5 // pred_check_branch
      %232 = sbr.rel (%p230) target = $region32
    $region31: #{decoder_forward.2} parent=5 // pred_region
      // Predicated region
      $region33: #{decoder_forward.2} parent=31 // pred_check
        %p233 = pneg %p34
      $region34: #{decoder_forward.2} parent=31 // pred_check_branch
        %235 = sbr.rel (%p233) target = $region36
      $region35: #{decoder_forward.2} parent=31 // pred_region
        %s236 = smul.u32 32, %s14
        %p237 = scmp.lt.s32.totalorder %s236, 63
        %s238 = scalar_select %p237, %s236, 63
        %s239 = smul.addr %s238, 4
        %s240 = scalar_lea.vmem %s0, %s239
        %s241 = smul.u32 32, %s14
      $region36: #{decoder_forward.2} parent=31 // pred_fallthru
        _
      // Predicated region
      $region37: #{decoder_forward.2} parent=31 // pred_check
        %p242 = pneg %p60
      $region38: #{decoder_forward.2} parent=31 // pred_check_branch
        %244 = sbr.rel (%p242) target = $region40
      $region39: #{decoder_forward.2} parent=31 // pred_region
        %s245 = smul.u32 32, %s14
        %p246 = scmp.lt.s32.totalorder %s245, 63
        %s247 = scalar_select %p246, %s245, 63
        %s248 = smul.addr %s247, 4
        %s249 = scalar_lea.vmem %s1, %s248
        %s250 = smul.u32 32, %s14
      $region40: #{decoder_forward.2} parent=31 // pred_fallthru
        _
    $region32: #{decoder_forward.2} parent=5 // pred_fallthru
      _
    %p251 = scmp.le.s32.totalorder 1, %s14
    %p252 = scmp.lt.s32.totalorder %s14, 3
    %p253 = pnand %p251, %p252
    %p254 = pneg %p253
    // Predicated region
    $region41: #{decoder_forward.2} parent=5 // pred_check
      _
    $region42: #{decoder_forward.2} parent=5 // pred_check_branch
      %256 = sbr.rel (%p253) target = $region44
    $region43: #{decoder_forward.2} parent=5 // pred_region
      %s257 = ssub.s32 %s14, 1
      %s258 = smul.u32 32, %s19
      %p259 = scmp.lt.s32.totalorder %s258, 63
      %s260 = scalar_select %p259, %s258, 63
      %s261 = smul.addr %s260, 4
      %s262 = scalar_lea.vmem %s0, %s261
      %p263 = pneg %p40
      %p264 = pneg %p37
      %s265 = smul.u32 32, %s19
      %p266 = scmp.lt.s32.totalorder %s265, 63
      %s267 = scalar_select %p266, %s265, 63
      %s268 = smul.addr %s267, 4
      %s269 = scalar_lea.vmem %s1, %s268
      %p270 = pneg %p66
      %p271 = pneg %p63
      %p272 = pneg %p87
      %p273 = pneg %p84
      %p274 = pneg %p108
      %p275 = pneg %p105
      %p276 = pneg %p129
      %p277 = pneg %p126
      %p278 = pneg %p150
      %p279 = pneg %p147
      %p280 = pneg %p176
      %p281 = pneg %p173
      %s282 = smul.u32 32, %s19
      %p283 = scmp.lt.s32.totalorder %s282, 63
      %s284 = scalar_select %p283, %s282, 63
      %s285 = smul.addr %s284, 4
      %s286 = scalar_lea.vmem %s6, %s285
      %p287 = pneg %p202
      %p288 = pneg %p199
      %s289 = smul.u32 32, %s19
      %p290 = scmp.lt.s32.totalorder %s289, 63
      %s291 = scalar_select %p290, %s289, 63
      %s292 = smul.addr %s291, 4
      %s293 = scalar_lea.vmem %s7, %s292
      %s294 = smul.u32 32, %s19
      %p295 = scmp.lt.s32.totalorder %s294, 63
      %s296 = scalar_select %p295, %s294, 63
      %s297 = smul.addr %s296, 4
      %s298 = scalar_lea.vmem %s0, %s297
      %s299 = smul.u32 32, %s19
      %s300 = smul.u32 32, %s19
      %p301 = scmp.lt.s32.totalorder %s300, 63
      %s302 = scalar_select %p301, %s300, 63
      %s303 = smul.addr %s302, 4
      %s304 = scalar_lea.vmem %s1, %s303
      %s305 = smul.u32 32, %s19
      %s306 = smul.u32 32, %s19
      %p307 = scmp.lt.s32.totalorder %s306, 63
      %s308 = scalar_select %p307, %s306, 63
      %s309 = smul.addr %s308, 4
      %s310 = scalar_lea.vmem %s6, %s309
      %s311 = smul.u32 32, %s19
      %s312 = smul.u32 32, %s19
      %p313 = scmp.lt.s32.totalorder %s312, 63
      %s314 = scalar_select %p313, %s312, 63
      %s315 = smul.addr %s314, 4
      %s316 = scalar_lea.vmem %s7, %s315
      %s317 = smul.u32 32, %s19
      %v319 = vld [vmem:[%s298] sm:$0xf]
      %v320 = vld [vmem:[%s298 + $0x4] sm:$0xf]
      %v321 = vld [vmem:[%s298 + $0x8] sm:$0xf]
      %v322 = vld [vmem:[%s298 + $0xc] sm:$0xf]
      %v323 = vld [vmem:[%s298 + $0x10] sm:$0xf]
      %v324 = vld [vmem:[%s298 + $0x14] sm:$0xf]
      %v325 = vld [vmem:[%s298 + $0x18] sm:$0xf]
      %v326 = vld [vmem:[%s298 + $0x1c] sm:$0xf]
      %v327 = vld [vmem:[%s298 + $0x20] sm:$0xf]
      %v328 = vld [vmem:[%s298 + $0x24] sm:$0xf]
      %v329 = vld [vmem:[%s298 + $0x28] sm:$0xf]
      %v330 = vld [vmem:[%s298 + $0x2c] sm:$0xf]
      %v331 = vld [vmem:[%s298 + $0x30] sm:$0xf]
      %v332 = vld [vmem:[%s298 + $0x34] sm:$0xf]
      %v333 = vld [vmem:[%s298 + $0x38] sm:$0xf]
      %v334 = vld [vmem:[%s298 + $0x3c] sm:$0xf]
      %v335 = vld [vmem:[%s298 + $0x40] sm:$0xf]
      %v336 = vld [vmem:[%s298 + $0x44] sm:$0xf]
      %v337 = vld [vmem:[%s298 + $0x48] sm:$0xf]
      %v338 = vld [vmem:[%s298 + $0x4c] sm:$0xf]
      %v339 = vld [vmem:[%s298 + $0x50] sm:$0xf]
      %v340 = vld [vmem:[%s298 + $0x54] sm:$0xf]
      %v341 = vld [vmem:[%s298 + $0x58] sm:$0xf]
      %v342 = vld [vmem:[%s298 + $0x5c] sm:$0xf]
      %v343 = vld [vmem:[%s298 + $0x60] sm:$0xf]
      %v344 = vld [vmem:[%s298 + $0x64] sm:$0xf]
      %v345 = vld [vmem:[%s298 + $0x68] sm:$0xf]
      %v346 = vld [vmem:[%s298 + $0x6c] sm:$0xf]
      %v347 = vld [vmem:[%s298 + $0x70] sm:$0xf]
      %v348 = vld [vmem:[%s298 + $0x74] sm:$0xf]
      %v349 = vld [vmem:[%s298 + $0x78] sm:$0xf]
      %v350 = vld [vmem:[%s298 + $0x7c] sm:$0xf]
      %v351 = vld [vmem:[%s304] sm:$0xf]
      %v352 = vld [vmem:[%s304 + $0x4] sm:$0xf]
      %v353 = vld [vmem:[%s304 + $0x8] sm:$0xf]
      %v354 = vld [vmem:[%s304 + $0xc] sm:$0xf]
      %v355 = vld [vmem:[%s304 + $0x10] sm:$0xf]
      %v356 = vld [vmem:[%s304 + $0x14] sm:$0xf]
      %v357 = vld [vmem:[%s304 + $0x18] sm:$0xf]
      %v358 = vld [vmem:[%s304 + $0x1c] sm:$0xf]
      %v359 = vld [vmem:[%s304 + $0x20] sm:$0xf]
      %v360 = vld [vmem:[%s304 + $0x24] sm:$0xf]
      %v361 = vld [vmem:[%s304 + $0x28] sm:$0xf]
      %v362 = vld [vmem:[%s304 + $0x2c] sm:$0xf]
      %v363 = vld [vmem:[%s304 + $0x30] sm:$0xf]
      %v364 = vld [vmem:[%s304 + $0x34] sm:$0xf]
      %v365 = vld [vmem:[%s304 + $0x38] sm:$0xf]
      %v366 = vld [vmem:[%s304 + $0x3c] sm:$0xf]
      %v367 = vld [vmem:[%s304 + $0x40] sm:$0xf]
      %v368 = vld [vmem:[%s304 + $0x44] sm:$0xf]
      %v369 = vld [vmem:[%s304 + $0x48] sm:$0xf]
      %v370 = vld [vmem:[%s304 + $0x4c] sm:$0xf]
      %v371 = vld [vmem:[%s304 + $0x50] sm:$0xf]
      %v372 = vld [vmem:[%s304 + $0x54] sm:$0xf]
      %v373 = vld [vmem:[%s304 + $0x58] sm:$0xf]
      %v374 = vld [vmem:[%s304 + $0x5c] sm:$0xf]
      %v375 = vld [vmem:[%s304 + $0x60] sm:$0xf]
      %v376 = vld [vmem:[%s304 + $0x64] sm:$0xf]
      %v377 = vld [vmem:[%s304 + $0x68] sm:$0xf]
      %v378 = vld [vmem:[%s304 + $0x6c] sm:$0xf]
      %v379 = vld [vmem:[%s304 + $0x70] sm:$0xf]
      %v380 = vld [vmem:[%s304 + $0x74] sm:$0xf]
      %v381 = vld [vmem:[%s304 + $0x78] sm:$0xf]
      %v382 = vld [vmem:[%s304 + $0x7c] sm:$0xf]
      %v383 = vadd.bf16 %v319, %v351
      %v384 = vadd.bf16 %v320, %v352
      %v385 = vadd.bf16 %v321, %v353
      %v386 = vadd.bf16 %v322, %v354
      %v387 = vadd.bf16 %v323, %v355
      %v388 = vadd.bf16 %v324, %v356
      %v389 = vadd.bf16 %v325, %v357
      %v390 = vadd.bf16 %v326, %v358
      %v391 = vadd.bf16 %v327, %v359
      %v392 = vadd.bf16 %v328, %v360
      %v393 = vadd.bf16 %v329, %v361
      %v394 = vadd.bf16 %v330, %v362
      %v395 = vadd.bf16 %v331, %v363
      %v396 = vadd.bf16 %v332, %v364
      %v397 = vadd.bf16 %v333, %v365
      %v398 = vadd.bf16 %v334, %v366
      %v399 = vadd.bf16 %v335, %v367
      %v400 = vadd.bf16 %v336, %v368
      %v401 = vadd.bf16 %v337, %v369
      %v402 = vadd.bf16 %v338, %v370
      %v403 = vadd.bf16 %v339, %v371
      %v404 = vadd.bf16 %v340, %v372
      %v405 = vadd.bf16 %v341, %v373
      %v406 = vadd.bf16 %v342, %v374
      %v407 = vadd.bf16 %v343, %v375
      %v408 = vadd.bf16 %v344, %v376
      %v409 = vadd.bf16 %v345, %v377
      %v410 = vadd.bf16 %v346, %v378
      %v411 = vadd.bf16 %v347, %v379
      %v412 = vadd.bf16 %v348, %v380
      %v413 = vadd.bf16 %v349, %v381
      %v414 = vadd.bf16 %v350, %v382
      %v415 = vld [vmem:[%s2] sm:$0xf]
      %v416 = vld [vmem:[%s2 + $0x4] sm:$0xf]
      %v417 = vld [vmem:[%s2 + $0x8] sm:$0xf]
      %v418 = vld [vmem:[%s2 + $0xc] sm:$0xf]
      %v419 = vld [vmem:[%s2 + $0x10] sm:$0xf]
      %v420 = vld [vmem:[%s2 + $0x14] sm:$0xf]
      %v421 = vld [vmem:[%s2 + $0x18] sm:$0xf]
      %v422 = vld [vmem:[%s2 + $0x1c] sm:$0xf]
      %v423 = vld [vmem:[%s3] sm:$0x1]
      %v425 = vlaneseq
      %v426 = vshrl.u32 %v425, 7
      %v427 = vsub.s32 0, %v426
      %v428 = vrot.slane %v423, %v427
      %v462 = vunpack.c.l.b16 %v383
      %v463 = vunpack.c.l.b16 %v384
      %v464 = vunpack.c.l.b16 %v385
      %v465 = vunpack.c.l.b16 %v386
      %v466 = vunpack.c.l.b16 %v387
      %v467 = vunpack.c.l.b16 %v388
      %v468 = vunpack.c.l.b16 %v389
      %v469 = vunpack.c.l.b16 %v390
      %v470 = vunpack.c.l.b16 %v391
      %v471 = vunpack.c.l.b16 %v392
      %v472 = vunpack.c.l.b16 %v393
      %v473 = vunpack.c.l.b16 %v394
      %v474 = vunpack.c.l.b16 %v395
      %v475 = vunpack.c.l.b16 %v396
      %v476 = vunpack.c.l.b16 %v397
      %v477 = vunpack.c.l.b16 %v398
      %v478 = vunpack.c.l.b16 %v399
      %v479 = vunpack.c.l.b16 %v400
      %v480 = vunpack.c.l.b16 %v401
      %v481 = vunpack.c.l.b16 %v402
      %v482 = vunpack.c.l.b16 %v403
      %v483 = vunpack.c.l.b16 %v404
      %v484 = vunpack.c.l.b16 %v405
      %v485 = vunpack.c.l.b16 %v406
      %v486 = vunpack.c.l.b16 %v407
      %v487 = vunpack.c.l.b16 %v408
      %v488 = vunpack.c.l.b16 %v409
      %v489 = vunpack.c.l.b16 %v410
      %v490 = vunpack.c.l.b16 %v411
      %v491 = vunpack.c.l.b16 %v412
      %v492 = vunpack.c.l.b16 %v413
      %v493 = vunpack.c.l.b16 %v414
      %v494 = vpack.c.b16 %v463, %v462
      %v495 = vpack.c.b16 %v465, %v464
      %v496 = vpack.c.b16 %v467, %v466
      %v497 = vpack.c.b16 %v469, %v468
      %v498 = vpack.c.b16 %v471, %v470
      %v499 = vpack.c.b16 %v473, %v472
      %v500 = vpack.c.b16 %v475, %v474
      %v501 = vpack.c.b16 %v477, %v476
      %v502 = vpack.c.b16 %v479, %v478
      %v503 = vpack.c.b16 %v481, %v480
      %v504 = vpack.c.b16 %v483, %v482
      %v505 = vpack.c.b16 %v485, %v484
      %v506 = vpack.c.b16 %v487, %v486
      %v507 = vpack.c.b16 %v489, %v488
      %v508 = vpack.c.b16 %v491, %v490
      %v509 = vpack.c.b16 %v493, %v492
      %v518 = vunpack.c.l.b16 %v415
      %v519 = vunpack.c.l.b16 %v416
      %v520 = vunpack.c.l.b16 %v417
      %v521 = vunpack.c.l.b16 %v418
      %v522 = vunpack.c.l.b16 %v419
      %v523 = vunpack.c.l.b16 %v420
      %v524 = vunpack.c.l.b16 %v421
      %v525 = vunpack.c.l.b16 %v422
      %v526 = vpack.c.b16 %v519, %v518
      %v527 = vpack.c.b16 %v521, %v520
      %v528 = vpack.c.b16 %v523, %v522
      %v529 = vpack.c.b16 %v525, %v524
      %vm534 = vcmask 523264
      %v536 = vsel %vm534, %v494, 0
      %v539 = vsel %vm534, %v495, 0
      %v542 = vsel %vm534, %v496, 0
      %v545 = vsel %vm534, %v497, 0
      %v548 = vsel %vm534, %v498, 0
      %v551 = vsel %vm534, %v499, 0
      %v554 = vsel %vm534, %v500, 0
      %v557 = vsel %vm534, %v501, 0
      %v560 = vsel %vm534, %v502, 0
      %v563 = vsel %vm534, %v503, 0
      %v566 = vsel %vm534, %v504, 0
      %v569 = vsel %vm534, %v505, 0
      %v572 = vsel %vm534, %v506, 0
      %v575 = vsel %vm534, %v507, 0
      %v578 = vsel %vm534, %v508, 0
      %v581 = vsel %vm534, %v509, 0
      %583 = vmatprep.subr.bf16.mxu0 0
      %584 = vmatpush1.bf16.msra.mxu0 %v526
      %585 = vmatprep.subr.bf16.mxu0 0
      %586 = vmatpush1.bf16.msra.mxu0 %v527
      %587 = vmatprep.subr.bf16.mxu0 0
      %588 = vmatpush1.bf16.msra.mxu0 %v528
      %589 = vmatprep.subr.bf16.mxu0 0
      %590 = vmatpush1.bf16.msra.mxu0 %v529
      %591 = vmatprep.subr.bf16.mxu0 0
      %592 = vmatpush1.bf16.msra.mxu0 0
      %593 = vmatprep.subr.bf16.mxu0 0
      %594 = vmatpush1.bf16.msra.mxu0 0
      %595 = vmatprep.subr.bf16.mxu0 0
      %596 = vmatpush1.bf16.msra.mxu0 0
      %597 = vmatprep.subr.bf16.mxu0 0
      %598 = vmatpush1.bf16.msra.mxu0 0
      %599 = vmatprep.subr.bf16.mxu0 0
      %600 = vmatpush1.bf16.msra.mxu0 0
      %601 = vmatprep.subr.bf16.mxu0 0
      %602 = vmatpush1.bf16.msra.mxu0 0
      %603 = vmatprep.subr.bf16.mxu0 0
      %604 = vmatpush1.bf16.msra.mxu0 0
      %605 = vmatprep.subr.bf16.mxu0 0
      %606 = vmatpush1.bf16.msra.mxu0 0
      %607 = vmatprep.subr.bf16.mxu0 0
      %608 = vmatpush1.bf16.msra.mxu0 0
      %609 = vmatprep.subr.bf16.mxu0 0
      %610 = vmatpush1.bf16.msra.mxu0 0
      %611 = vmatprep.subr.bf16.mxu0 0
      %612 = vmatpush1.bf16.msra.mxu0 0
      %613 = vmatprep.subr.bf16.mxu0 0
      %614 = vmatpush1.bf16.msra.mxu0 0
      %615 = vmatprep.mubr.bf16.mxu0 0
      %616 = vmatmul.mubr.bf16.gmra.mrb[0].mxu0 %v536
      %v617 = vpop.f32.mrb[0].mxu0
      %v618 = vadd.f32 %v428, %v617
      %v619 = vpop.f32.mrb[0].mxu0
      %v620 = vpop.f32.mrb[0].mxu0
      %v621 = vadd.f32 %v428, %v620
      %v622 = vpop.f32.mrb[0].mxu0
      %623 = vmatprep.mubr.bf16.mxu0 0
      %624 = vmatmul.mubr.bf16.gmra.mrb[0].mxu0 %v539
      %v625 = vpop.f32.mrb[0].mxu0
      %v626 = vadd.f32 %v428, %v625
      %v627 = vpop.f32.mrb[0].mxu0
      %v628 = vpop.f32.mrb[0].mxu0
      %v629 = vadd.f32 %v428, %v628
      %v630 = vpop.f32.mrb[0].mxu0
      %631 = vmatprep.mubr.bf16.mxu0 0
      %632 = vmatmul.mubr.bf16.gmra.mrb[0].mxu0 %v542
      %v633 = vpop.f32.mrb[0].mxu0
      %v634 = vadd.f32 %v428, %v633
      %v635 = vpop.f32.mrb[0].mxu0
      %v636 = vpop.f32.mrb[0].mxu0
      %v637 = vadd.f32 %v428, %v636
      %v638 = vpop.f32.mrb[0].mxu0
      %639 = vmatprep.mubr.bf16.mxu0 0
      %640 = vmatmul.mubr.bf16.gmra.mrb[0].mxu0 %v545
      %v641 = vpop.f32.mrb[0].mxu0
      %v642 = vadd.f32 %v428, %v641
      %v643 = vpop.f32.mrb[0].mxu0
      %v644 = vpop.f32.mrb[0].mxu0
      %v645 = vadd.f32 %v428, %v644
      %v646 = vpop.f32.mrb[0].mxu0
      %647 = vmatprep.mubr.bf16.mxu0 0
      %648 = vmatmul.mubr.bf16.gmra.mrb[0].mxu0 %v548
      %v649 = vpop.f32.mrb[0].mxu0
      %v650 = vadd.f32 %v428, %v649
      %v651 = vpop.f32.mrb[0].mxu0
      %v652 = vpop.f32.mrb[0].mxu0
      %v653 = vadd.f32 %v428, %v652
      %v654 = vpop.f32.mrb[0].mxu0
      %655 = vmatprep.mubr.bf16.mxu0 0
      %656 = vmatmul.mubr.bf16.gmra.mrb[0].mxu0 %v551
      %v657 = vpop.f32.mrb[0].mxu0
      %v658 = vadd.f32 %v428, %v657
      %v659 = vpop.f32.mrb[0].mxu0
      %v660 = vpop.f32.mrb[0].mxu0
      %v661 = vadd.f32 %v428, %v660
      %v662 = vpop.f32.mrb[0].mxu0
      %663 = vmatprep.mubr.bf16.mxu0 0
      %664 = vmatmul.mubr.bf16.gmra.mrb[0].mxu0 %v554
      %v665 = vpop.f32.mrb[0].mxu0
      %v666 = vadd.f32 %v428, %v665
      %v667 = vpop.f32.mrb[0].mxu0
      %v668 = vpop.f32.mrb[0].mxu0
      %v669 = vadd.f32 %v428, %v668
      %v670 = vpop.f32.mrb[0].mxu0
      %671 = vmatprep.mubr.bf16.mxu0 0
      %672 = vmatmul.mubr.bf16.gmra.mrb[0].mxu0 %v557
      %v673 = vpop.f32.mrb[0].mxu0
      %v674 = vadd.f32 %v428, %v673
      %v675 = vpop.f32.mrb[0].mxu0
      %v676 = vpop.f32.mrb[0].mxu0
      %v677 = vadd.f32 %v428, %v676
      %v678 = vpop.f32.mrb[0].mxu0
      %679 = vmatprep.mubr.bf16.mxu0 0
      %680 = vmatmul.mubr.bf16.gmra.mrb[0].mxu0 %v560
      %v681 = vpop.f32.mrb[0].mxu0
      %v682 = vadd.f32 %v428, %v681
      %v683 = vpop.f32.mrb[0].mxu0
      %v684 = vpop.f32.mrb[0].mxu0
      %v685 = vadd.f32 %v428, %v684
      %v686 = vpop.f32.mrb[0].mxu0
      %687 = vmatprep.mubr.bf16.mxu0 0
      %688 = vmatmul.mubr.bf16.gmra.mrb[0].mxu0 %v563
      %v689 = vpop.f32.mrb[0].mxu0
      %v690 = vadd.f32 %v428, %v689
      %v691 = vpop.f32.mrb[0].mxu0
      %v692 = vpop.f32.mrb[0].mxu0
      %v693 = vadd.f32 %v428, %v692
      %v694 = vpop.f32.mrb[0].mxu0
      %695 = vmatprep.mubr.bf16.mxu0 0
      %696 = vmatmul.mubr.bf16.gmra.mrb[0].mxu0 %v566
      %v697 = vpop.f32.mrb[0].mxu0
      %v698 = vadd.f32 %v428, %v697
      %v699 = vpop.f32.mrb[0].mxu0
      %v700 = vpop.f32.mrb[0].mxu0
      %v701 = vadd.f32 %v428, %v700
      %v702 = vpop.f32.mrb[0].mxu0
      %703 = vmatprep.mubr.bf16.mxu0 0
      %704 = vmatmul.mubr.bf16.gmra.mrb[0].mxu0 %v569
      %v705 = vpop.f32.mrb[0].mxu0
      %v706 = vadd.f32 %v428, %v705
      %v707 = vpop.f32.mrb[0].mxu0
      %v708 = vpop.f32.mrb[0].mxu0
      %v709 = vadd.f32 %v428, %v708
      %v710 = vpop.f32.mrb[0].mxu0
      %711 = vmatprep.mubr.bf16.mxu0 0
      %712 = vmatmul.mubr.bf16.gmra.mrb[0].mxu0 %v572
      %v713 = vpop.f32.mrb[0].mxu0
      %v714 = vadd.f32 %v428, %v713
      %v715 = vpop.f32.mrb[0].mxu0
      %v716 = vpop.f32.mrb[0].mxu0
      %v717 = vadd.f32 %v428, %v716
      %v718 = vpop.f32.mrb[0].mxu0
      %719 = vmatprep.mubr.bf16.mxu0 0
      %720 = vmatmul.mubr.bf16.gmra.mrb[0].mxu0 %v575
      %v721 = vpop.f32.mrb[0].mxu0
      %v722 = vadd.f32 %v428, %v721
      %v723 = vpop.f32.mrb[0].mxu0
      %v724 = vpop.f32.mrb[0].mxu0
      %v725 = vadd.f32 %v428, %v724
      %v726 = vpop.f32.mrb[0].mxu0
      %727 = vmatprep.mubr.bf16.mxu0 0
      %728 = vmatmul.mubr.bf16.gmra.mrb[0].mxu0 %v578
      %v729 = vpop.f32.mrb[0].mxu0
      %v730 = vadd.f32 %v428, %v729
      %v731 = vpop.f32.mrb[0].mxu0
      %v732 = vpop.f32.mrb[0].mxu0
      %v733 = vadd.f32 %v428, %v732
      %v734 = vpop.f32.mrb[0].mxu0
      %735 = vmatprep.mubr.bf16.mxu0 0
      %736 = vmatmul.mubr.bf16.gmra.mrb[0].mxu0 %v581
      %v737 = vpop.f32.mrb[0].mxu0
      %v738 = vadd.f32 %v428, %v737
      %v739 = vpop.f32.mrb[0].mxu0
      %v740 = vpop.f32.mrb[0].mxu0
      %v741 = vadd.f32 %v428, %v740
      %v742 = vpop.f32.mrb[0].mxu0
      %743 = vdwg.mxu0
      %v744 = vmax.f32 %v618, 0.0
      %v745 = vmax.f32 %v621, 0.0
      %v746 = vmax.f32 %v626, 0.0
      %v747 = vmax.f32 %v629, 0.0
      %v748 = vmax.f32 %v634, 0.0
      %v749 = vmax.f32 %v637, 0.0
      %v750 = vmax.f32 %v642, 0.0
      %v751 = vmax.f32 %v645, 0.0
      %v752 = vmax.f32 %v650, 0.0
      %v753 = vmax.f32 %v653, 0.0
      %v754 = vmax.f32 %v658, 0.0
      %v755 = vmax.f32 %v661, 0.0
      %v756 = vmax.f32 %v666, 0.0
      %v757 = vmax.f32 %v669, 0.0
      %v758 = vmax.f32 %v674, 0.0
      %v759 = vmax.f32 %v677, 0.0
      %v760 = vmax.f32 %v682, 0.0
      %v761 = vmax.f32 %v685, 0.0
      %v762 = vmax.f32 %v690, 0.0
      %v763 = vmax.f32 %v693, 0.0
      %v764 = vmax.f32 %v698, 0.0
      %v765 = vmax.f32 %v701, 0.0
      %v766 = vmax.f32 %v706, 0.0
      %v767 = vmax.f32 %v709, 0.0
      %v768 = vmax.f32 %v714, 0.0
      %v769 = vmax.f32 %v717, 0.0
      %v770 = vmax.f32 %v722, 0.0
      %v771 = vmax.f32 %v725, 0.0
      %v772 = vmax.f32 %v730, 0.0
      %v773 = vmax.f32 %v733, 0.0
      %v774 = vmax.f32 %v738, 0.0
      %v775 = vmax.f32 %v741, 0.0
      %v776 = vpack.c.bf16 %v745, %v744
      %v777 = vpack.c.bf16 %v747, %v746
      %v778 = vpack.c.bf16 %v749, %v748
      %v779 = vpack.c.bf16 %v751, %v750
      %v780 = vpack.c.bf16 %v753, %v752
      %v781 = vpack.c.bf16 %v755, %v754
      %v782 = vpack.c.bf16 %v757, %v756
      %v783 = vpack.c.bf16 %v759, %v758
      %v784 = vpack.c.bf16 %v761, %v760
      %v785 = vpack.c.bf16 %v763, %v762
      %v786 = vpack.c.bf16 %v765, %v764
      %v787 = vpack.c.bf16 %v767, %v766
      %v788 = vpack.c.bf16 %v769, %v768
      %v789 = vpack.c.bf16 %v771, %v770
      %v790 = vpack.c.bf16 %v773, %v772
      %v791 = vpack.c.bf16 %v775, %v774
      %v808 = vunpack.c.l.b16 %v776
      %v809 = vunpack.c.h.b16 %v776
      %v810 = vunpack.c.l.b16 %v777
      %v811 = vunpack.c.h.b16 %v777
      %v812 = vunpack.c.l.b16 %v778
      %v813 = vunpack.c.h.b16 %v778
      %v814 = vunpack.c.l.b16 %v779
      %v815 = vunpack.c.h.b16 %v779
      %v816 = vunpack.c.l.b16 %v780
      %v817 = vunpack.c.h.b16 %v780
      %v818 = vunpack.c.l.b16 %v781
      %v819 = vunpack.c.h.b16 %v781
      %v820 = vunpack.c.l.b16 %v782
      %v821 = vunpack.c.h.b16 %v782
      %v822 = vunpack.c.l.b16 %v783
      %v823 = vunpack.c.h.b16 %v783
      %v824 = vunpack.c.l.b16 %v784
      %v825 = vunpack.c.h.b16 %v784
      %v826 = vunpack.c.l.b16 %v785
      %v827 = vunpack.c.h.b16 %v785
      %v828 = vunpack.c.l.b16 %v786
      %v829 = vunpack.c.h.b16 %v786
      %v830 = vunpack.c.l.b16 %v787
      %v831 = vunpack.c.h.b16 %v787
      %v832 = vunpack.c.l.b16 %v788
      %v833 = vunpack.c.h.b16 %v788
      %v834 = vunpack.c.l.b16 %v789
      %v835 = vunpack.c.h.b16 %v789
      %v836 = vunpack.c.l.b16 %v790
      %v837 = vunpack.c.h.b16 %v790
      %v838 = vunpack.c.l.b16 %v791
      %v839 = vunpack.c.h.b16 %v791
      %v840 = vpack.c.b16 %v808, %v808
      %v841 = vpack.c.b16 %v809, %v809
      %v842 = vpack.c.b16 %v810, %v810
      %v843 = vpack.c.b16 %v811, %v811
      %v844 = vpack.c.b16 %v812, %v812
      %v845 = vpack.c.b16 %v813, %v813
      %v846 = vpack.c.b16 %v814, %v814
      %v847 = vpack.c.b16 %v815, %v815
      %v848 = vpack.c.b16 %v816, %v816
      %v849 = vpack.c.b16 %v817, %v817
      %v850 = vpack.c.b16 %v818, %v818
      %v851 = vpack.c.b16 %v819, %v819
      %v852 = vpack.c.b16 %v820, %v820
      %v853 = vpack.c.b16 %v821, %v821
      %v854 = vpack.c.b16 %v822, %v822
      %v855 = vpack.c.b16 %v823, %v823
      %v856 = vpack.c.b16 %v824, %v824
      %v857 = vpack.c.b16 %v825, %v825
      %v858 = vpack.c.b16 %v826, %v826
      %v859 = vpack.c.b16 %v827, %v827
      %v860 = vpack.c.b16 %v828, %v828
      %v861 = vpack.c.b16 %v829, %v829
      %v862 = vpack.c.b16 %v830, %v830
      %v863 = vpack.c.b16 %v831, %v831
      %v864 = vpack.c.b16 %v832, %v832
      %v865 = vpack.c.b16 %v833, %v833
      %v866 = vpack.c.b16 %v834, %v834
      %v867 = vpack.c.b16 %v835, %v835
      %v868 = vpack.c.b16 %v836, %v836
      %v869 = vpack.c.b16 %v837, %v837
      %v870 = vpack.c.b16 %v838, %v838
      %v871 = vpack.c.b16 %v839, %v839
      %vm904 = vcmask 125952
      %905 = vst.msk [vmem:[%s310] sm:$0xf] %vm904, %v840
      %906 = vst.msk [vmem:[%s310 + $0x4] sm:$0xf] %vm904, %v841
      %907 = vst.msk [vmem:[%s310 + $0x8] sm:$0xf] %vm904, %v842
      %908 = vst.msk [vmem:[%s310 + $0xc] sm:$0xf] %vm904, %v843
      %909 = vst.msk [vmem:[%s310 + $0x10] sm:$0xf] %vm904, %v844
      %910 = vst.msk [vmem:[%s310 + $0x14] sm:$0xf] %vm904, %v845
      %911 = vst.msk [vmem:[%s310 + $0x18] sm:$0xf] %vm904, %v846
      %912 = vst.msk [vmem:[%s310 + $0x1c] sm:$0xf] %vm904, %v847
      %913 = vst.msk [vmem:[%s310 + $0x20] sm:$0xf] %vm904, %v848
      %914 = vst.msk [vmem:[%s310 + $0x24] sm:$0xf] %vm904, %v849
      %915 = vst.msk [vmem:[%s310 + $0x28] sm:$0xf] %vm904, %v850
      %916 = vst.msk [vmem:[%s310 + $0x2c] sm:$0xf] %vm904, %v851
      %917 = vst.msk [vmem:[%s310 + $0x30] sm:$0xf] %vm904, %v852
      %918 = vst.msk [vmem:[%s310 + $0x34] sm:$0xf] %vm904, %v853
      %919 = vst.msk [vmem:[%s310 + $0x38] sm:$0xf] %vm904, %v854
      %920 = vst.msk [vmem:[%s310 + $0x3c] sm:$0xf] %vm904, %v855
      %921 = vst.msk [vmem:[%s310 + $0x40] sm:$0xf] %vm904, %v856
      %922 = vst.msk [vmem:[%s310 + $0x44] sm:$0xf] %vm904, %v857
      %923 = vst.msk [vmem:[%s310 + $0x48] sm:$0xf] %vm904, %v858
      %924 = vst.msk [vmem:[%s310 + $0x4c] sm:$0xf] %vm904, %v859
      %925 = vst.msk [vmem:[%s310 + $0x50] sm:$0xf] %vm904, %v860
      %926 = vst.msk [vmem:[%s310 + $0x54] sm:$0xf] %vm904, %v861
      %927 = vst.msk [vmem:[%s310 + $0x58] sm:$0xf] %vm904, %v862
      %928 = vst.msk [vmem:[%s310 + $0x5c] sm:$0xf] %vm904, %v863
      %929 = vst.msk [vmem:[%s310 + $0x60] sm:$0xf] %vm904, %v864
      %930 = vst.msk [vmem:[%s310 + $0x64] sm:$0xf] %vm904, %v865
      %931 = vst.msk [vmem:[%s310 + $0x68] sm:$0xf] %vm904, %v866
      %932 = vst.msk [vmem:[%s310 + $0x6c] sm:$0xf] %vm904, %v867
      %933 = vst.msk [vmem:[%s310 + $0x70] sm:$0xf] %vm904, %v868
      %934 = vst.msk [vmem:[%s310 + $0x74] sm:$0xf] %vm904, %v869
      %935 = vst.msk [vmem:[%s310 + $0x78] sm:$0xf] %vm904, %v870
      %936 = vst.msk [vmem:[%s310 + $0x7c] sm:$0xf] %vm904, %v871
      %v937 = vld [vmem:[%s4] sm:$0xf]
      %v938 = vld [vmem:[%s4 + $0x4] sm:$0xf]
      %v939 = vld [vmem:[%s4 + $0x8] sm:$0xf]
      %v940 = vld [vmem:[%s4 + $0xc] sm:$0xf]
      %v941 = vld [vmem:[%s4 + $0x10] sm:$0xf]
      %v942 = vld [vmem:[%s4 + $0x14] sm:$0xf]
      %v943 = vld [vmem:[%s4 + $0x18] sm:$0xf]
      %v944 = vld [vmem:[%s4 + $0x1c] sm:$0xf]
      %v945 = vld [vmem:[%s5] sm:$0x1]
      %v947 = vlaneseq
      %v948 = vshrl.u32 %v947, 7
      %v949 = vsub.s32 0, %v948
      %v950 = vrot.slane %v945, %v949
      %v960 = vunpack.c.l.b16 %v937
      %v961 = vunpack.c.l.b16 %v938
      %v962 = vunpack.c.l.b16 %v939
      %v963 = vunpack.c.l.b16 %v940
      %v964 = vunpack.c.l.b16 %v941
      %v965 = vunpack.c.l.b16 %v942
      %v966 = vunpack.c.l.b16 %v943
      %v967 = vunpack.c.l.b16 %v944
      %v968 = vpack.c.b16 %v961, %v960
      %v969 = vpack.c.b16 %v963, %v962
      %v970 = vpack.c.b16 %v965, %v964
      %v971 = vpack.c.b16 %v967, %v966
      %976 = vmatprep.subr.bf16.mxu0 0
      %977 = vmatpush1.bf16.msra.mxu0 %v968
      %978 = vmatprep.subr.bf16.mxu0 0
      %979 = vmatpush1.bf16.msra.mxu0 %v969
      %980 = vmatprep.subr.bf16.mxu0 0
      %981 = vmatpush1.bf16.msra.mxu0 %v970
      %982 = vmatprep.subr.bf16.mxu0 0
      %983 = vmatpush1.bf16.msra.mxu0 %v971
      %984 = vmatprep.subr.bf16.mxu0 0
      %985 = vmatpush1.bf16.msra.mxu0 0
      %986 = vmatprep.subr.bf16.mxu0 0
      %987 = vmatpush1.bf16.msra.mxu0 0
      %988 = vmatprep.subr.bf16.mxu0 0
      %989 = vmatpush1.bf16.msra.mxu0 0
      %990 = vmatprep.subr.bf16.mxu0 0
      %991 = vmatpush1.bf16.msra.mxu0 0
      %992 = vmatprep.subr.bf16.mxu0 0
      %993 = vmatpush1.bf16.msra.mxu0 0
      %994 = vmatprep.subr.bf16.mxu0 0
      %995 = vmatpush1.bf16.msra.mxu0 0
      %996 = vmatprep.subr.bf16.mxu0 0
      %997 = vmatpush1.bf16.msra.mxu0 0
      %998 = vmatprep.subr.bf16.mxu0 0
      %999 = vmatpush1.bf16.msra.mxu0 0
      %1000 = vmatprep.subr.bf16.mxu0 0
      %1001 = vmatpush1.bf16.msra.mxu0 0
      %1002 = vmatprep.subr.bf16.mxu0 0
      %1003 = vmatpush1.bf16.msra.mxu0 0
      %1004 = vmatprep.subr.bf16.mxu0 0
      %1005 = vmatpush1.bf16.msra.mxu0 0
      %1006 = vmatprep.subr.bf16.mxu0 0
      %1007 = vmatpush1.bf16.msra.mxu0 0
      %1008 = vmatprep.mubr.bf16.mxu0 0
      %1009 = vmatmul.mubr.bf16.gmra.mrb[0].mxu0 %v536
      %v1010 = vpop.f32.mrb[0].mxu0
      %v1011 = vadd.f32 %v950, %v1010
      %v1012 = vpop.f32.mrb[0].mxu0
      %v1013 = vpop.f32.mrb[0].mxu0
      %v1014 = vadd.f32 %v950, %v1013
      %v1015 = vpop.f32.mrb[0].mxu0
      %1016 = vmatprep.mubr.bf16.mxu0 0
      %1017 = vmatmul.mubr.bf16.gmra.mrb[0].mxu0 %v539
      %v1018 = vpop.f32.mrb[0].mxu0
      %v1019 = vadd.f32 %v950, %v1018
      %v1020 = vpop.f32.mrb[0].mxu0
      %v1021 = vpop.f32.mrb[0].mxu0
      %v1022 = vadd.f32 %v950, %v1021
      %v1023 = vpop.f32.mrb[0].mxu0
      %1024 = vmatprep.mubr.bf16.mxu0 0
      %1025 = vmatmul.mubr.bf16.gmra.mrb[0].mxu0 %v542
      %v1026 = vpop.f32.mrb[0].mxu0
      %v1027 = vadd.f32 %v950, %v1026
      %v1028 = vpop.f32.mrb[0].mxu0
      %v1029 = vpop.f32.mrb[0].mxu0
      %v1030 = vadd.f32 %v950, %v1029
      %v1031 = vpop.f32.mrb[0].mxu0
      %1032 = vmatprep.mubr.bf16.mxu0 0
      %1033 = vmatmul.mubr.bf16.gmra.mrb[0].mxu0 %v545
      %v1034 = vpop.f32.mrb[0].mxu0
      %v1035 = vadd.f32 %v950, %v1034
      %v1036 = vpop.f32.mrb[0].mxu0
      %v1037 = vpop.f32.mrb[0].mxu0
      %v1038 = vadd.f32 %v950, %v1037
      %v1039 = vpop.f32.mrb[0].mxu0
      %1040 = vmatprep.mubr.bf16.mxu0 0
      %1041 = vmatmul.mubr.bf16.gmra.mrb[0].mxu0 %v548
      %v1042 = vpop.f32.mrb[0].mxu0
      %v1043 = vadd.f32 %v950, %v1042
      %v1044 = vpop.f32.mrb[0].mxu0
      %v1045 = vpop.f32.mrb[0].mxu0
      %v1046 = vadd.f32 %v950, %v1045
      %v1047 = vpop.f32.mrb[0].mxu0
      %1048 = vmatprep.mubr.bf16.mxu0 0
      %1049 = vmatmul.mubr.bf16.gmra.mrb[0].mxu0 %v551
      %v1050 = vpop.f32.mrb[0].mxu0
      %v1051 = vadd.f32 %v950, %v1050
      %v1052 = vpop.f32.mrb[0].mxu0
      %v1053 = vpop.f32.mrb[0].mxu0
      %v1054 = vadd.f32 %v950, %v1053
      %v1055 = vpop.f32.mrb[0].mxu0
      %1056 = vmatprep.mubr.bf16.mxu0 0
      %1057 = vmatmul.mubr.bf16.gmra.mrb[0].mxu0 %v554
      %v1058 = vpop.f32.mrb[0].mxu0
      %v1059 = vadd.f32 %v950, %v1058
      %v1060 = vpop.f32.mrb[0].mxu0
      %v1061 = vpop.f32.mrb[0].mxu0
      %v1062 = vadd.f32 %v950, %v1061
      %v1063 = vpop.f32.mrb[0].mxu0
      %1064 = vmatprep.mubr.bf16.mxu0 0
      %1065 = vmatmul.mubr.bf16.gmra.mrb[0].mxu0 %v557
      %v1066 = vpop.f32.mrb[0].mxu0
      %v1067 = vadd.f32 %v950, %v1066
      %v1068 = vpop.f32.mrb[0].mxu0
      %v1069 = vpop.f32.mrb[0].mxu0
      %v1070 = vadd.f32 %v950, %v1069
      %v1071 = vpop.f32.mrb[0].mxu0
      %1072 = vmatprep.mubr.bf16.mxu0 0
      %1073 = vmatmul.mubr.bf16.gmra.mrb[0].mxu0 %v560
      %v1074 = vpop.f32.mrb[0].mxu0
      %v1075 = vadd.f32 %v950, %v1074
      %v1076 = vpop.f32.mrb[0].mxu0
      %v1077 = vpop.f32.mrb[0].mxu0
      %v1078 = vadd.f32 %v950, %v1077
      %v1079 = vpop.f32.mrb[0].mxu0
      %1080 = vmatprep.mubr.bf16.mxu0 0
      %1081 = vmatmul.mubr.bf16.gmra.mrb[0].mxu0 %v563
      %v1082 = vpop.f32.mrb[0].mxu0
      %v1083 = vadd.f32 %v950, %v1082
      %v1084 = vpop.f32.mrb[0].mxu0
      %v1085 = vpop.f32.mrb[0].mxu0
      %v1086 = vadd.f32 %v950, %v1085
      %v1087 = vpop.f32.mrb[0].mxu0
      %1088 = vmatprep.mubr.bf16.mxu0 0
      %1089 = vmatmul.mubr.bf16.gmra.mrb[0].mxu0 %v566
      %v1090 = vpop.f32.mrb[0].mxu0
      %v1091 = vadd.f32 %v950, %v1090
      %v1092 = vpop.f32.mrb[0].mxu0
      %v1093 = vpop.f32.mrb[0].mxu0
      %v1094 = vadd.f32 %v950, %v1093
      %v1095 = vpop.f32.mrb[0].mxu0
      %1096 = vmatprep.mubr.bf16.mxu0 0
      %1097 = vmatmul.mubr.bf16.gmra.mrb[0].mxu0 %v569
      %v1098 = vpop.f32.mrb[0].mxu0
      %v1099 = vadd.f32 %v950, %v1098
      %v1100 = vpop.f32.mrb[0].mxu0
      %v1101 = vpop.f32.mrb[0].mxu0
      %v1102 = vadd.f32 %v950, %v1101
      %v1103 = vpop.f32.mrb[0].mxu0
      %1104 = vmatprep.mubr.bf16.mxu0 0
      %1105 = vmatmul.mubr.bf16.gmra.mrb[0].mxu0 %v572
      %v1106 = vpop.f32.mrb[0].mxu0
      %v1107 = vadd.f32 %v950, %v1106
      %v1108 = vpop.f32.mrb[0].mxu0
      %v1109 = vpop.f32.mrb[0].mxu0
      %v1110 = vadd.f32 %v950, %v1109
      %v1111 = vpop.f32.mrb[0].mxu0
      %1112 = vmatprep.mubr.bf16.mxu0 0
      %1113 = vmatmul.mubr.bf16.gmra.mrb[0].mxu0 %v575
      %v1114 = vpop.f32.mrb[0].mxu0
      %v1115 = vadd.f32 %v950, %v1114
      %v1116 = vpop.f32.mrb[0].mxu0
      %v1117 = vpop.f32.mrb[0].mxu0
      %v1118 = vadd.f32 %v950, %v1117
      %v1119 = vpop.f32.mrb[0].mxu0
      %1120 = vmatprep.mubr.bf16.mxu0 0
      %1121 = vmatmul.mubr.bf16.gmra.mrb[0].mxu0 %v578
      %v1122 = vpop.f32.mrb[0].mxu0
      %v1123 = vadd.f32 %v950, %v1122
      %v1124 = vpop.f32.mrb[0].mxu0
      %v1125 = vpop.f32.mrb[0].mxu0
      %v1126 = vadd.f32 %v950, %v1125
      %v1127 = vpop.f32.mrb[0].mxu0
      %1128 = vmatprep.mubr.bf16.mxu0 0
      %1129 = vmatmul.mubr.bf16.gmra.mrb[0].mxu0 %v581
      %v1130 = vpop.f32.mrb[0].mxu0
      %v1131 = vadd.f32 %v950, %v1130
      %v1132 = vpop.f32.mrb[0].mxu0
      %v1133 = vpop.f32.mrb[0].mxu0
      %v1134 = vadd.f32 %v950, %v1133
      %v1135 = vpop.f32.mrb[0].mxu0
      %1136 = vdwg.mxu0
      %v1137 = vpack.c.bf16 %v1014, %v1011
      %v1138 = vpack.c.bf16 %v1022, %v1019
      %v1139 = vpack.c.bf16 %v1030, %v1027
      %v1140 = vpack.c.bf16 %v1038, %v1035
      %v1141 = vpack.c.bf16 %v1046, %v1043
      %v1142 = vpack.c.bf16 %v1054, %v1051
      %v1143 = vpack.c.bf16 %v1062, %v1059
      %v1144 = vpack.c.bf16 %v1070, %v1067
      %v1145 = vpack.c.bf16 %v1078, %v1075
      %v1146 = vpack.c.bf16 %v1086, %v1083
      %v1147 = vpack.c.bf16 %v1094, %v1091
      %v1148 = vpack.c.bf16 %v1102, %v1099
      %v1149 = vpack.c.bf16 %v1110, %v1107
      %v1150 = vpack.c.bf16 %v1118, %v1115
      %v1151 = vpack.c.bf16 %v1126, %v1123
      %v1152 = vpack.c.bf16 %v1134, %v1131
      %v1169 = vunpack.c.l.b16 %v1137
      %v1170 = vunpack.c.h.b16 %v1137
      %v1171 = vunpack.c.l.b16 %v1138
      %v1172 = vunpack.c.h.b16 %v1138
      %v1173 = vunpack.c.l.b16 %v1139
      %v1174 = vunpack.c.h.b16 %v1139
      %v1175 = vunpack.c.l.b16 %v1140
      %v1176 = vunpack.c.h.b16 %v1140
      %v1177 = vunpack.c.l.b16 %v1141
      %v1178 = vunpack.c.h.b16 %v1141
      %v1179 = vunpack.c.l.b16 %v1142
      %v1180 = vunpack.c.h.b16 %v1142
      %v1181 = vunpack.c.l.b16 %v1143
      %v1182 = vunpack.c.h.b16 %v1143
      %v1183 = vunpack.c.l.b16 %v1144
      %v1184 = vunpack.c.h.b16 %v1144
      %v1185 = vunpack.c.l.b16 %v1145
      %v1186 = vunpack.c.h.b16 %v1145
      %v1187 = vunpack.c.l.b16 %v1146
      %v1188 = vunpack.c.h.b16 %v1146
      %v1189 = vunpack.c.l.b16 %v1147
      %v1190 = vunpack.c.h.b16 %v1147
      %v1191 = vunpack.c.l.b16 %v1148
      %v1192 = vunpack.c.h.b16 %v1148
      %v1193 = vunpack.c.l.b16 %v1149
      %v1194 = vunpack.c.h.b16 %v1149
      %v1195 = vunpack.c.l.b16 %v1150
      %v1196 = vunpack.c.h.b16 %v1150
      %v1197 = vunpack.c.l.b16 %v1151
      %v1198 = vunpack.c.h.b16 %v1151
      %v1199 = vunpack.c.l.b16 %v1152
      %v1200 = vunpack.c.h.b16 %v1152
      %v1201 = vpack.c.b16 %v1169, %v1169
      %v1202 = vpack.c.b16 %v1170, %v1170
      %v1203 = vpack.c.b16 %v1171, %v1171
      %v1204 = vpack.c.b16 %v1172, %v1172
      %v1205 = vpack.c.b16 %v1173, %v1173
      %v1206 = vpack.c.b16 %v1174, %v1174
      %v1207 = vpack.c.b16 %v1175, %v1175
      %v1208 = vpack.c.b16 %v1176, %v1176
      %v1209 = vpack.c.b16 %v1177, %v1177
      %v1210 = vpack.c.b16 %v1178, %v1178
      %v1211 = vpack.c.b16 %v1179, %v1179
      %v1212 = vpack.c.b16 %v1180, %v1180
      %v1213 = vpack.c.b16 %v1181, %v1181
      %v1214 = vpack.c.b16 %v1182, %v1182
      %v1215 = vpack.c.b16 %v1183, %v1183
      %v1216 = vpack.c.b16 %v1184, %v1184
      %v1217 = vpack.c.b16 %v1185, %v1185
      %v1218 = vpack.c.b16 %v1186, %v1186
      %v1219 = vpack.c.b16 %v1187, %v1187
      %v1220 = vpack.c.b16 %v1188, %v1188
      %v1221 = vpack.c.b16 %v1189, %v1189
      %v1222 = vpack.c.b16 %v1190, %v1190
      %v1223 = vpack.c.b16 %v1191, %v1191
      %v1224 = vpack.c.b16 %v1192, %v1192
      %v1225 = vpack.c.b16 %v1193, %v1193
      %v1226 = vpack.c.b16 %v1194, %v1194
      %v1227 = vpack.c.b16 %v1195, %v1195
      %v1228 = vpack.c.b16 %v1196, %v1196
      %v1229 = vpack.c.b16 %v1197, %v1197
      %v1230 = vpack.c.b16 %v1198, %v1198
      %v1231 = vpack.c.b16 %v1199, %v1199
      %v1232 = vpack.c.b16 %v1200, %v1200
      %vm1265 = vcmask 519168
      %1266 = vst.msk [vmem:[%s316] sm:$0xf] %vm1265, %v1201
      %1267 = vst.msk [vmem:[%s316 + $0x4] sm:$0xf] %vm1265, %v1202
      %1268 = vst.msk [vmem:[%s316 + $0x8] sm:$0xf] %vm1265, %v1203
      %1269 = vst.msk [vmem:[%s316 + $0xc] sm:$0xf] %vm1265, %v1204
      %1270 = vst.msk [vmem:[%s316 + $0x10] sm:$0xf] %vm1265, %v1205
      %1271 = vst.msk [vmem:[%s316 + $0x14] sm:$0xf] %vm1265, %v1206
      %1272 = vst.msk [vmem:[%s316 + $0x18] sm:$0xf] %vm1265, %v1207
      %1273 = vst.msk [vmem:[%s316 + $0x1c] sm:$0xf] %vm1265, %v1208
      %1274 = vst.msk [vmem:[%s316 + $0x20] sm:$0xf] %vm1265, %v1209
      %1275 = vst.msk [vmem:[%s316 + $0x24] sm:$0xf] %vm1265, %v1210
      %1276 = vst.msk [vmem:[%s316 + $0x28] sm:$0xf] %vm1265, %v1211
      %1277 = vst.msk [vmem:[%s316 + $0x2c] sm:$0xf] %vm1265, %v1212
      %1278 = vst.msk [vmem:[%s316 + $0x30] sm:$0xf] %vm1265, %v1213
      %1279 = vst.msk [vmem:[%s316 + $0x34] sm:$0xf] %vm1265, %v1214
      %1280 = vst.msk [vmem:[%s316 + $0x38] sm:$0xf] %vm1265, %v1215
      %1281 = vst.msk [vmem:[%s316 + $0x3c] sm:$0xf] %vm1265, %v1216
      %1282 = vst.msk [vmem:[%s316 + $0x40] sm:$0xf] %vm1265, %v1217
      %1283 = vst.msk [vmem:[%s316 + $0x44] sm:$0xf] %vm1265, %v1218
      %1284 = vst.msk [vmem:[%s316 + $0x48] sm:$0xf] %vm1265, %v1219
      %1285 = vst.msk [vmem:[%s316 + $0x4c] sm:$0xf] %vm1265, %v1220
      %1286 = vst.msk [vmem:[%s316 + $0x50] sm:$0xf] %vm1265, %v1221
      %1287 = vst.msk [vmem:[%s316 + $0x54] sm:$0xf] %vm1265, %v1222
      %1288 = vst.msk [vmem:[%s316 + $0x58] sm:$0xf] %vm1265, %v1223
      %1289 = vst.msk [vmem:[%s316 + $0x5c] sm:$0xf] %vm1265, %v1224
      %1290 = vst.msk [vmem:[%s316 + $0x60] sm:$0xf] %vm1265, %v1225
      %1291 = vst.msk [vmem:[%s316 + $0x64] sm:$0xf] %vm1265, %v1226
      %1292 = vst.msk [vmem:[%s316 + $0x68] sm:$0xf] %vm1265, %v1227
      %1293 = vst.msk [vmem:[%s316 + $0x6c] sm:$0xf] %vm1265, %v1228
      %1294 = vst.msk [vmem:[%s316 + $0x70] sm:$0xf] %vm1265, %v1229
      %1295 = vst.msk [vmem:[%s316 + $0x74] sm:$0xf] %vm1265, %v1230
      %1296 = vst.msk [vmem:[%s316 + $0x78] sm:$0xf] %vm1265, %v1231
      %1297 = vst.msk [vmem:[%s316 + $0x7c] sm:$0xf] %vm1265, %v1232
      %s1298 = smul.u32 32, %s19
      %p1299 = scmp.lt.s32.totalorder %s1298, 63
      %s1300 = scalar_select %p1299, %s1298, 63
      %s1301 = smul.addr %s1300, 4
      %s1302 = scalar_lea.vmem %s6, %s1301
      %s1303 = smul.u32 32, %s19
      %p1304 = scmp.lt.s32.totalorder %s1303, 63
      %s1305 = scalar_select %p1304, %s1303, 63
      %s1306 = smul.addr %s1305, 4
      %s1307 = scalar_lea.vmem %s7, %s1306
      // Predicated region
      $region45: #{decoder_forward.2} parent=43 // pred_check
        %p1308 = pneg %p173
      $region46: #{decoder_forward.2} parent=43 // pred_check_branch
        %1310 = sbr.rel (%p1308) target = $region48
      $region47: #{decoder_forward.2} parent=43 // pred_region
        %s1311 = smul.u32 32, %s19
      $region48: #{decoder_forward.2} parent=43 // pred_fallthru
        _
      // Predicated region
      $region49: #{decoder_forward.2} parent=43 // pred_check
        %p1312 = pneg %p199
      $region50: #{decoder_forward.2} parent=43 // pred_check_branch
        %1314 = sbr.rel (%p1312) target = $region52
      $region51: #{decoder_forward.2} parent=43 // pred_region
        %s1315 = smul.u32 32, %s19
      $region52: #{decoder_forward.2} parent=43 // pred_fallthru
        _
    $region44: #{decoder_forward.2} parent=5 // pred_fallthru
      _
    %p1316 = scmp.le.s32.totalorder 2, %s14
    // Predicated region
    $region53: #{decoder_forward.2} parent=5 // pred_check
      %p1317 = pneg %p1316
    $region54: #{decoder_forward.2} parent=5 // pred_check_branch
      %1319 = sbr.rel (%p1317) target = $region56
    $region55: #{decoder_forward.2} parent=5 // pred_region
      %s1320 = ssub.s32 %s14, 2
      // Predicated region
      $region57: #{decoder_forward.2} parent=55 // pred_check
        %p1321 = pneg %p179
      $region58: #{decoder_forward.2} parent=55 // pred_check_branch
        %1323 = sbr.rel (%p1321) target = $region60
      $region59: #{decoder_forward.2} parent=55 // pred_region
        %s1324 = smul.u32 32, %s20
        %p1325 = scmp.lt.s32.totalorder %s1324, 63
        %s1326 = scalar_select %p1325, %s1324, 63
        %s1327 = smul.addr %s1326, 4
        %s1328 = scalar_lea.vmem %s6, %s1327
      $region60: #{decoder_forward.2} parent=55 // pred_fallthru
        _
      // Predicated region
      $region61: #{decoder_forward.2} parent=55 // pred_check
        %p1329 = pneg %p205
      $region62: #{decoder_forward.2} parent=55 // pred_check_branch
        %1331 = sbr.rel (%p1329) target = $region64
      $region63: #{decoder_forward.2} parent=55 // pred_region
        %s1332 = smul.u32 32, %s20
        %p1333 = scmp.lt.s32.totalorder %s1332, 63
        %s1334 = scalar_select %p1333, %s1332, 63
        %s1335 = smul.addr %s1334, 4
        %s1336 = scalar_lea.vmem %s7, %s1335
      $region64: #{decoder_forward.2} parent=55 // pred_fallthru
        _
    $region56: #{decoder_forward.2} parent=5 // pred_fallthru
      _
  $region6: #{decoder_forward.2} parent=0 // loop_footer
    %s18 = sadd.s32 1, %s14
  $region7: #{decoder_forward.2} parent=0 // loop_footer_branch
    %13 = sbr.rel target = $region3
  $region8: #{decoder_forward.2} parent=0 // loop_exit
    _

// kernel: decoder_forward.3
$region0: #{decoder_forward.3}
  #allocation0 [shape = 'u32[]', space=smem, size = 0x4, offset = 0x4, fixed_abs, tag = 'smem constant byte address 0x4 - core index']
  #allocation1 [shape = 'u32[144,128]{1,0:T(1,128)}', space=vmem, size = 0x12000, scoped, tag = 'internal scratch']
  #allocation2 [shape = 'bf16[256,144]{1,0:T(16,128)(2,1)}', space=vmem, size = 0x20000, scoped, tag = 'scratch operand']
  %s0 = inlined_call_operand.vmem [shape: bf16[2,1,296,16], index: 0, kind: input, shape index: {}]
  %s1 = inlined_call_operand.vmem [shape: bf16[2,1,256,64], index: 1, kind: input, shape index: {}]
  %s2 = inlined_call_operand.vmem [shape: bf16[256,2], index: 2, kind: input, shape index: {}]
  %s3 = inlined_call_operand.vmem [shape: bf16[144,16], index: 3, kind: input, shape index: {}]
  %s4 = inlined_call_operand.vmem [shape: f32[1,16], index: 4, kind: input, shape index: {}]
  %s5 = inlined_call_operand.vmem [shape: bf16[16,64], index: 5, kind: input, shape index: {}]
  %s6 = inlined_call_operand.vmem [shape: f32[1,64], index: 6, kind: input, shape index: {}]
  %s7 = inlined_call_operand.vmem [shape: f32[2,64,256], index: 7, kind: output, shape index: {}]
  %s8 = sld [smem:[#allocation0]]
  $region61: #{decoder_forward.3} parent=0
    _
  %s10 = ssub.s32 1, %s8
  %s11 = scalar_select 0, %s10, %s8
  loop: start=0, step=1, limit=4
  $region2: #{decoder_forward.3} parent=0 // loop_pre_header
    _
  $region3: #{decoder_forward.3} parent=0 // loop_header
    %s13 = sphi 0, %s17
    %p14 = scmp.ge.s32.totalorder %s13, 4
    %s20 = sphi 0, %s32
    %s21 = sphi 0, %s28
    %s22 = sphi 0, %s20
    %s23 = sphi 0, %s21
    %s24 = sphi 0, %s22
    %s25 = sphi 0, %s23
    %s37 = sphi 0, %s39
    %s40 = sphi 0, %s37
    %s41 = sphi 0, %s40
    %s57 = sphi 0, %s41
    %s65 = sphi 0, %s67
    %s68 = sphi 0, %s65
    %s69 = sphi 0, %s68
    %s85 = sphi 0, %s69
    %s89 = sphi 0, %s89
    %s91 = sphi 0, %s89
    %s92 = sphi 0, %s91
    %s106 = sphi 0, %s92
    %s110 = sphi 0, %s110
    %s112 = sphi 0, %s110
    %s113 = sphi 0, %s112
    %s127 = sphi 0, %s113
    %s131 = sphi 0, %s131
    %s133 = sphi 0, %s131
    %s134 = sphi 0, %s133
    %s148 = sphi 0, %s134
    %s152 = sphi 0, %s152
    %s154 = sphi 0, %s152
    %s155 = sphi 0, %s154
    %s169 = sphi 0, %s155
    %s173 = sphi 0, %s173
    %s175 = sphi 0, %s173
    %s176 = sphi 0, %s175
    %s190 = sphi 0, %s176
    %s198 = sphi 0, %s200
    %s201 = sphi 0, %s198
    %s202 = sphi 0, %s201
    %s218 = sphi 0, %s202
  $region4: #{decoder_forward.3} parent=0 // loop_header_branch
    %16 = sbr.rel (%p14) target = $region8
  $region5: #{decoder_forward.3} parent=0 // loop_body
    %s18 = ssub.s32 %s13, 1
    %s19 = ssub.s32 %s13, 2
    %s26 = sadd.s32 1, %s21
    %p27 = scmp.ge.s32.totalorder %s26, 1
    %s28 = scalar_select %p27, 0, %s26
    %s29 = sadd.s32 1, %s20
    %s30 = scalar_select %p27, %s29, %s20
    %p31 = scmp.ge.s32.totalorder %s30, 2
    %s32 = scalar_select %p31, 0, %s30
    %s33 = ssub.s32 %s20, %s32
    %s34 = ssub.s32 %s21, %s28
    %s35 = sor.u32 %s33, %s34
    %p36 = scmp.eq.s32.totalorder %s35, 0
    %s38 = sadd.s32 %s37, 1
    %s39 = scalar_select %p36, %s37, %s38
    %p42 = pneg %p36
    %p43 = scmp.eq.s32.totalorder %s13, 1
    %p44 = por %p42, %p43
    %p45 = scmp.ne.s32.totalorder %s37, %s40
    %p46 = scmp.eq.s32.totalorder %s13, 0
    %p47 = por %p45, %p46
    %p48 = scmp.ne.s32.totalorder %s37, %s40
    %p49 = scmp.eq.s32.totalorder %s18, 1
    %p50 = por %p48, %p49
    %p51 = scmp.ne.s32.totalorder %s40, %s41
    %p52 = scmp.eq.s32.totalorder %s18, 0
    %p53 = por %p51, %p52
    %p54 = scmp.ne.s32.totalorder %s40, %s41
    %p55 = scmp.eq.s32.totalorder %s19, 1
    %p56 = por %p54, %p55
    %p58 = scmp.ne.s32.totalorder %s41, %s57
    %p59 = scmp.eq.s32.totalorder %s19, 0
    %p60 = por %p58, %p59
    %s61 = ssub.s32 %s20, %s32
    %s62 = ssub.s32 %s21, %s28
    %s63 = sor.u32 %s61, %s62
    %p64 = scmp.eq.s32.totalorder %s63, 0
    %s66 = sadd.s32 %s65, 1
    %s67 = scalar_select %p64, %s65, %s66
    %p70 = pneg %p64
    %p71 = scmp.eq.s32.totalorder %s13, 1
    %p72 = por %p70, %p71
    %p73 = scmp.ne.s32.totalorder %s65, %s68
    %p74 = scmp.eq.s32.totalorder %s13, 0
    %p75 = por %p73, %p74
    %p76 = scmp.ne.s32.totalorder %s65, %s68
    %p77 = scmp.eq.s32.totalorder %s18, 1
    %p78 = por %p76, %p77
    %p79 = scmp.ne.s32.totalorder %s68, %s69
    %p80 = scmp.eq.s32.totalorder %s18, 0
    %p81 = por %p79, %p80
    %p82 = scmp.ne.s32.totalorder %s68, %s69
    %p83 = scmp.eq.s32.totalorder %s19, 1
    %p84 = por %p82, %p83
    %p86 = scmp.ne.s32.totalorder %s69, %s85
    %p87 = scmp.eq.s32.totalorder %s19, 0
    %p88 = por %p86, %p87
    %s90 = sadd.s32 %s89, 1
    %p93 = scmp.eq.s32.totalorder %s13, 1
    %p94 = scmp.ne.s32.totalorder %s89, %s91
    %p95 = scmp.eq.s32.totalorder %s13, 0
    %p96 = por %p94, %p95
    %p97 = scmp.ne.s32.totalorder %s89, %s91
    %p98 = scmp.eq.s32.totalorder %s18, 1
    %p99 = por %p97, %p98
    %p100 = scmp.ne.s32.totalorder %s91, %s92
    %p101 = scmp.eq.s32.totalorder %s18, 0
    %p102 = por %p100, %p101
    %p103 = scmp.ne.s32.totalorder %s91, %s92
    %p104 = scmp.eq.s32.totalorder %s19, 1
    %p105 = por %p103, %p104
    %p107 = scmp.ne.s32.totalorder %s92, %s106
    %p108 = scmp.eq.s32.totalorder %s19, 0
    %p109 = por %p107, %p108
    %s111 = sadd.s32 %s110, 1
    %p114 = scmp.eq.s32.totalorder %s13, 1
    %p115 = scmp.ne.s32.totalorder %s110, %s112
    %p116 = scmp.eq.s32.totalorder %s13, 0
    %p117 = por %p115, %p116
    %p118 = scmp.ne.s32.totalorder %s110, %s112
    %p119 = scmp.eq.s32.totalorder %s18, 1
    %p120 = por %p118, %p119
    %p121 = scmp.ne.s32.totalorder %s112, %s113
    %p122 = scmp.eq.s32.totalorder %s18, 0
    %p123 = por %p121, %p122
    %p124 = scmp.ne.s32.totalorder %s112, %s113
    %p125 = scmp.eq.s32.totalorder %s19, 1
    %p126 = por %p124, %p125
    %p128 = scmp.ne.s32.totalorder %s113, %s127
    %p129 = scmp.eq.s32.totalorder %s19, 0
    %p130 = por %p128, %p129
    %s132 = sadd.s32 %s131, 1
    %p135 = scmp.eq.s32.totalorder %s13, 1
    %p136 = scmp.ne.s32.totalorder %s131, %s133
    %p137 = scmp.eq.s32.totalorder %s13, 0
    %p138 = por %p136, %p137
    %p139 = scmp.ne.s32.totalorder %s131, %s133
    %p140 = scmp.eq.s32.totalorder %s18, 1
    %p141 = por %p139, %p140
    %p142 = scmp.ne.s32.totalorder %s133, %s134
    %p143 = scmp.eq.s32.totalorder %s18, 0
    %p144 = por %p142, %p143
    %p145 = scmp.ne.s32.totalorder %s133, %s134
    %p146 = scmp.eq.s32.totalorder %s19, 1
    %p147 = por %p145, %p146
    %p149 = scmp.ne.s32.totalorder %s134, %s148
    %p150 = scmp.eq.s32.totalorder %s19, 0
    %p151 = por %p149, %p150
    %s153 = sadd.s32 %s152, 1
    %p156 = scmp.eq.s32.totalorder %s13, 1
    %p157 = scmp.ne.s32.totalorder %s152, %s154
    %p158 = scmp.eq.s32.totalorder %s13, 0
    %p159 = por %p157, %p158
    %p160 = scmp.ne.s32.totalorder %s152, %s154
    %p161 = scmp.eq.s32.totalorder %s18, 1
    %p162 = por %p160, %p161
    %p163 = scmp.ne.s32.totalorder %s154, %s155
    %p164 = scmp.eq.s32.totalorder %s18, 0
    %p165 = por %p163, %p164
    %p166 = scmp.ne.s32.totalorder %s154, %s155
    %p167 = scmp.eq.s32.totalorder %s19, 1
    %p168 = por %p166, %p167
    %p170 = scmp.ne.s32.totalorder %s155, %s169
    %p171 = scmp.eq.s32.totalorder %s19, 0
    %p172 = por %p170, %p171
    %s174 = sadd.s32 %s173, 1
    %p177 = scmp.eq.s32.totalorder %s13, 1
    %p178 = scmp.ne.s32.totalorder %s173, %s175
    %p179 = scmp.eq.s32.totalorder %s13, 0
    %p180 = por %p178, %p179
    %p181 = scmp.ne.s32.totalorder %s173, %s175
    %p182 = scmp.eq.s32.totalorder %s18, 1
    %p183 = por %p181, %p182
    %p184 = scmp.ne.s32.totalorder %s175, %s176
    %p185 = scmp.eq.s32.totalorder %s18, 0
    %p186 = por %p184, %p185
    %p187 = scmp.ne.s32.totalorder %s175, %s176
    %p188 = scmp.eq.s32.totalorder %s19, 1
    %p189 = por %p187, %p188
    %p191 = scmp.ne.s32.totalorder %s176, %s190
    %p192 = scmp.eq.s32.totalorder %s19, 0
    %p193 = por %p191, %p192
    %s194 = ssub.s32 %s20, %s32
    %s195 = ssub.s32 %s21, %s28
    %s196 = sor.u32 %s194, %s195
    %p197 = scmp.eq.s32.totalorder %s196, 0
    %s199 = sadd.s32 %s198, 1
    %s200 = scalar_select %p197, %s198, %s199
    %p203 = pneg %p197
    %p204 = scmp.eq.s32.totalorder %s13, 1
    %p205 = por %p203, %p204
    %p206 = scmp.ne.s32.totalorder %s198, %s201
    %p207 = scmp.eq.s32.totalorder %s13, 0
    %p208 = por %p206, %p207
    %p209 = scmp.ne.s32.totalorder %s198, %s201
    %p210 = scmp.eq.s32.totalorder %s18, 1
    %p211 = por %p209, %p210
    %p212 = scmp.ne.s32.totalorder %s201, %s202
    %p213 = scmp.eq.s32.totalorder %s18, 0
    %p214 = por %p212, %p213
    %p215 = scmp.ne.s32.totalorder %s201, %s202
    %p216 = scmp.eq.s32.totalorder %s19, 1
    %p217 = por %p215, %p216
    %p219 = scmp.ne.s32.totalorder %s202, %s218
    %p220 = scmp.eq.s32.totalorder %s19, 0
    %p221 = por %p219, %p220
    %p222 = scmp.le.s32.totalorder 1, %s13
    %p223 = scmp.lt.s32.totalorder %s13, 3
    %p224 = pnand %p222, %p223
    %p225 = pneg %p224
    // Predicated region
    $region9: #{decoder_forward.3} parent=5 // pred_check
      _
    $region10: #{decoder_forward.3} parent=5 // pred_check_branch
      %227 = sbr.rel (%p224) target = $region12
    $region11: #{decoder_forward.3} parent=5 // pred_region
      %s228 = ssub.s32 %s13, 1
      // Predicated region
      $region13: #{decoder_forward.3} parent=11 // pred_check
        %p229 = pneg %p102
      $region14: #{decoder_forward.3} parent=11 // pred_check_branch
        %231 = sbr.rel (%p229) target = $region16
      $region15: #{decoder_forward.3} parent=11 // pred_region
        _
      $region16: #{decoder_forward.3} parent=11 // pred_fallthru
        _
      // Predicated region
      $region17: #{decoder_forward.3} parent=11 // pred_check
        %p232 = pneg %p123
      $region18: #{decoder_forward.3} parent=11 // pred_check_branch
        %234 = sbr.rel (%p232) target = $region20
      $region19: #{decoder_forward.3} parent=11 // pred_region
        _
      $region20: #{decoder_forward.3} parent=11 // pred_fallthru
        _
      // Predicated region
      $region21: #{decoder_forward.3} parent=11 // pred_check
        %p235 = pneg %p144
      $region22: #{decoder_forward.3} parent=11 // pred_check_branch
        %237 = sbr.rel (%p235) target = $region24
      $region23: #{decoder_forward.3} parent=11 // pred_region
        _
      $region24: #{decoder_forward.3} parent=11 // pred_fallthru
        _
      // Predicated region
      $region25: #{decoder_forward.3} parent=11 // pred_check
        %p238 = pneg %p165
      $region26: #{decoder_forward.3} parent=11 // pred_check_branch
        %240 = sbr.rel (%p238) target = $region28
      $region27: #{decoder_forward.3} parent=11 // pred_region
        _
      $region28: #{decoder_forward.3} parent=11 // pred_fallthru
        _
      // Predicated region
      $region29: #{decoder_forward.3} parent=11 // pred_check
        %p241 = pneg %p186
      $region30: #{decoder_forward.3} parent=11 // pred_check_branch
        %243 = sbr.rel (%p241) target = $region32
      $region31: #{decoder_forward.3} parent=11 // pred_region
        _
      $region32: #{decoder_forward.3} parent=11 // pred_fallthru
        _
    $region12: #{decoder_forward.3} parent=5 // pred_fallthru
      _
    %p244 = scmp.lt.s32.totalorder %s13, 2
    // Predicated region
    $region33: #{decoder_forward.3} parent=5 // pred_check
      %p245 = pneg %p244
    $region34: #{decoder_forward.3} parent=5 // pred_check_branch
      %247 = sbr.rel (%p245) target = $region36
    $region35: #{decoder_forward.3} parent=5 // pred_region
      // Predicated region
      $region37: #{decoder_forward.3} parent=35 // pred_check
        %p248 = pneg %p47
      $region38: #{decoder_forward.3} parent=35 // pred_check_branch
        %250 = sbr.rel (%p248) target = $region40
      $region39: #{decoder_forward.3} parent=35 // pred_region
        %p251 = scmp.lt.s32.totalorder %s20, 1
        %s252 = scalar_select %p251, %s20, 1
        %p253 = scmp.lt.s32.totalorder %s21, 0
        %s254 = scalar_select %p253, %s21, 0
        %s255 = smul.addr %s254, 37
        %s256 = smul.addr %s252, 37
        %s257 = sadd.s32 %s255, %s256
        %s258 = smul.addr %s257, 4
        %s259 = scalar_lea.vmem %s0, %s258
      $region40: #{decoder_forward.3} parent=35 // pred_fallthru
        _
      // Predicated region
      $region41: #{decoder_forward.3} parent=35 // pred_check
        %p260 = pneg %p75
      $region42: #{decoder_forward.3} parent=35 // pred_check_branch
        %262 = sbr.rel (%p260) target = $region44
      $region43: #{decoder_forward.3} parent=35 // pred_region
        %p263 = scmp.lt.s32.totalorder %s20, 1
        %s264 = scalar_select %p263, %s20, 1
        %p265 = scmp.lt.s32.totalorder %s21, 0
        %s266 = scalar_select %p265, %s21, 0
        %s267 = smul.addr %s266, 32
        %s268 = smul.addr %s264, 32
        %s269 = sadd.s32 %s267, %s268
        %s270 = smul.addr %s269, 4
        %s271 = scalar_lea.vmem %s1, %s270
      $region44: #{decoder_forward.3} parent=35 // pred_fallthru
        _
    $region36: #{decoder_forward.3} parent=5 // pred_fallthru
      _
    %p272 = scmp.le.s32.totalorder 1, %s13
    %p273 = scmp.lt.s32.totalorder %s13, 3
    %p274 = pnand %p272, %p273
    %p275 = pneg %p274
    // Predicated region
    $region45: #{decoder_forward.3} parent=5 // pred_check
      _
    $region46: #{decoder_forward.3} parent=5 // pred_check_branch
      %277 = sbr.rel (%p274) target = $region48
    $region47: #{decoder_forward.3} parent=5 // pred_region
      %s278 = ssub.s32 %s13, 1
      %p279 = scmp.lt.s32.totalorder %s22, 1
      %s280 = scalar_select %p279, %s22, 1
      %p281 = scmp.lt.s32.totalorder %s23, 0
      %s282 = scalar_select %p281, %s23, 0
      %s283 = smul.addr %s282, 37
      %s284 = smul.addr %s280, 37
      %s285 = sadd.s32 %s283, %s284
      %s286 = smul.addr %s285, 4
      %s287 = scalar_lea.vmem %s0, %s286
      %p288 = pneg %p53
      %p289 = pneg %p50
      %p290 = scmp.lt.s32.totalorder %s22, 1
      %s291 = scalar_select %p290, %s22, 1
      %p292 = scmp.lt.s32.totalorder %s23, 0
      %s293 = scalar_select %p292, %s23, 0
      %s294 = smul.addr %s293, 32
      %s295 = smul.addr %s291, 32
      %s296 = sadd.s32 %s294, %s295
      %s297 = smul.addr %s296, 4
      %s298 = scalar_lea.vmem %s1, %s297
      %p299 = pneg %p81
      %p300 = pneg %p78
      %p301 = pneg %p102
      %p302 = pneg %p99
      %p303 = pneg %p123
      %p304 = pneg %p120
      %p305 = pneg %p144
      %p306 = pneg %p141
      %p307 = pneg %p165
      %p308 = pneg %p162
      %p309 = pneg %p186
      %p310 = pneg %p183
      %p311 = pneg %p214
      %p312 = pneg %p211
      %s313 = smul.u32 2, %s23
      %p314 = scmp.lt.s32.totalorder %s22, 1
      %s315 = scalar_select %p314, %s22, 1
      %p316 = scmp.lt.s32.totalorder %s313, 1
      %s317 = scalar_select %p316, %s313, 1
      %s318 = smul.addr %s315, 16
      %s319 = sadd.s32 %s317, %s318
      %s320 = smul.addr %s319, 8
      %s321 = scalar_lea.vmem %s7, %s320
      %p322 = scmp.lt.s32.totalorder %s22, 1
      %s323 = scalar_select %p322, %s22, 1
      %p324 = scmp.lt.s32.totalorder %s23, 0
      %s325 = scalar_select %p324, %s23, 0
      %s326 = smul.addr %s325, 37
      %s327 = smul.addr %s323, 37
      %s328 = sadd.s32 %s326, %s327
      %s329 = smul.addr %s328, 4
      %s330 = scalar_lea.vmem %s0, %s329
      %p331 = scmp.lt.s32.totalorder %s22, 1
      %s332 = scalar_select %p331, %s22, 1
      %p333 = scmp.lt.s32.totalorder %s23, 0
      %s334 = scalar_select %p333, %s23, 0
      %s335 = smul.addr %s334, 32
      %s336 = smul.addr %s332, 32
      %s337 = sadd.s32 %s335, %s336
      %s338 = smul.addr %s337, 4
      %s339 = scalar_lea.vmem %s1, %s338
      %s340 = smul.u32 2, %s23
      %p341 = scmp.lt.s32.totalorder %s22, 1
      %s342 = scalar_select %p341, %s22, 1
      %p343 = scmp.lt.s32.totalorder %s340, 1
      %s344 = scalar_select %p343, %s340, 1
      %s345 = smul.addr %s342, 16
      %s346 = sadd.s32 %s344, %s345
      %s347 = smul.addr %s346, 8
      %s348 = scalar_lea.vmem %s7, %s347
      %s349 = smul.u32 2, %s23
      %v351 = vld [vmem:[%s2] sm:$0xf]
      %v352 = vld [vmem:[%s2 + $0x4] sm:$0xf]
      %v353 = vld [vmem:[%s2 + $0x8] sm:$0xf]
      %v354 = vld [vmem:[%s2 + $0xc] sm:$0xf]
      %v355 = vld [vmem:[%s2 + $0x10] sm:$0xf]
      %v356 = vld [vmem:[%s2 + $0x14] sm:$0xf]
      %v357 = vld [vmem:[%s2 + $0x18] sm:$0xf]
      %v358 = vld [vmem:[%s2 + $0x1c] sm:$0xf]
      %v359 = vld [vmem:[%s2 + $0x20] sm:$0xf]
      %v360 = vld [vmem:[%s2 + $0x24] sm:$0xf]
      %v361 = vld [vmem:[%s2 + $0x28] sm:$0xf]
      %v362 = vld [vmem:[%s2 + $0x2c] sm:$0xf]
      %v363 = vld [vmem:[%s2 + $0x30] sm:$0xf]
      %v364 = vld [vmem:[%s2 + $0x34] sm:$0xf]
      %v365 = vld [vmem:[%s2 + $0x38] sm:$0xf]
      %v366 = vld [vmem:[%s2 + $0x3c] sm:$0xf]
      %v367 = vld [vmem:[%s2 + $0x40] sm:$0xf]
      %v368 = vld [vmem:[%s2 + $0x44] sm:$0xf]
      %v369 = vld [vmem:[%s2 + $0x48] sm:$0xf]
      %v370 = vld [vmem:[%s2 + $0x4c] sm:$0xf]
      %v371 = vld [vmem:[%s2 + $0x50] sm:$0xf]
      %v372 = vld [vmem:[%s2 + $0x54] sm:$0xf]
      %v373 = vld [vmem:[%s2 + $0x58] sm:$0xf]
      %v374 = vld [vmem:[%s2 + $0x5c] sm:$0xf]
      %v375 = vld [vmem:[%s2 + $0x60] sm:$0xf]
      %v376 = vld [vmem:[%s2 + $0x64] sm:$0xf]
      %v377 = vld [vmem:[%s2 + $0x68] sm:$0xf]
      %v378 = vld [vmem:[%s2 + $0x6c] sm:$0xf]
      %v379 = vld [vmem:[%s2 + $0x70] sm:$0xf]
      %v380 = vld [vmem:[%s2 + $0x74] sm:$0xf]
      %v381 = vld [vmem:[%s2 + $0x78] sm:$0xf]
      %v382 = vld [vmem:[%s2 + $0x7c] sm:$0xf]
      %v383 = vld [vmem:[%s330] sm:$0xf]
      %v384 = vld [vmem:[%s330 + $0x4] sm:$0xf]
      %v385 = vld [vmem:[%s330 + $0x8] sm:$0xf]
      %v386 = vld [vmem:[%s330 + $0xc] sm:$0xf]
      %v387 = vld [vmem:[%s330 + $0x10] sm:$0xf]
      %v388 = vld [vmem:[%s330 + $0x14] sm:$0xf]
      %v389 = vld [vmem:[%s330 + $0x18] sm:$0xf]
      %v390 = vld [vmem:[%s330 + $0x1c] sm:$0xf]
      %v391 = vld [vmem:[%s330 + $0x20] sm:$0xf]
      %v392 = vld [vmem:[%s330 + $0x24] sm:$0xf]
      %v393 = vld [vmem:[%s330 + $0x28] sm:$0xf]
      %v394 = vld [vmem:[%s330 + $0x2c] sm:$0xf]
      %v395 = vld [vmem:[%s330 + $0x30] sm:$0xf]
      %v396 = vld [vmem:[%s330 + $0x34] sm:$0xf]
      %v397 = vld [vmem:[%s330 + $0x38] sm:$0xf]
      %v398 = vld [vmem:[%s330 + $0x3c] sm:$0xf]
      %v399 = vld [vmem:[%s330 + $0x40] sm:$0xf]
      %v400 = vld [vmem:[%s330 + $0x44] sm:$0xf]
      %v401 = vld [vmem:[%s330 + $0x48] sm:$0xf]
      %v402 = vld [vmem:[%s330 + $0x4c] sm:$0xf]
      %v403 = vld [vmem:[%s330 + $0x50] sm:$0xf]
      %v404 = vld [vmem:[%s330 + $0x54] sm:$0xf]
      %v405 = vld [vmem:[%s330 + $0x58] sm:$0xf]
      %v406 = vld [vmem:[%s330 + $0x5c] sm:$0xf]
      %v407 = vld [vmem:[%s330 + $0x60] sm:$0xf]
      %v408 = vld [vmem:[%s330 + $0x64] sm:$0xf]
      %v409 = vld [vmem:[%s330 + $0x68] sm:$0xf]
      %v410 = vld [vmem:[%s330 + $0x6c] sm:$0xf]
      %v411 = vld [vmem:[%s330 + $0x70] sm:$0xf]
      %v412 = vld [vmem:[%s330 + $0x74] sm:$0xf]
      %v413 = vld [vmem:[%s330 + $0x78] sm:$0xf]
      %v414 = vld [vmem:[%s330 + $0x7c] sm:$0xf]
      %416 = vset.pattern.permute.xlu0 0
      %417 = vperm.xlu0 %416, %v351
      %v418 = vpop.permute.xlu0 %417
      %v421 = vunpack.c.l.s4 839922192
      %v422 = vunpack.c.0.s8 %v421
      %v423 = vlaneseq
      %v424 = vshrl.u32 %v423, 7
      %v425 = vsub.s32 %v422, %v424
      %v426 = vrot.slane %v418, %v425
      %428 = vset.pattern.permute.xlu0 0
      %429 = vperm.xlu0 %428, %v352
      %v430 = vpop.permute.xlu0 %429
      %v433 = vunpack.c.l.s4 839922192
      %v434 = vunpack.c.0.s8 %v433
      %v435 = vlaneseq
      %v436 = vshrl.u32 %v435, 7
      %v437 = vsub.s32 %v434, %v436
      %v438 = vrot.slane %v430, %v437
      %440 = vset.pattern.permute.xlu0 0
      %441 = vperm.xlu0 %440, %v353
      %v442 = vpop.permute.xlu0 %441
      %v445 = vunpack.c.l.s4 839922192
      %v446 = vunpack.c.0.s8 %v445
      %v447 = vlaneseq
      %v448 = vshrl.u32 %v447, 7
      %v449 = vsub.s32 %v446, %v448
      %v450 = vrot.slane %v442, %v449
      %452 = vset.pattern.permute.xlu0 0
      %453 = vperm.xlu0 %452, %v354
      %v454 = vpop.permute.xlu0 %453
      %v457 = vunpack.c.l.s4 839922192
      %v458 = vunpack.c.0.s8 %v457
      %v459 = vlaneseq
      %v460 = vshrl.u32 %v459, 7
      %v461 = vsub.s32 %v458, %v460
      %v462 = vrot.slane %v454, %v461
      %464 = vset.pattern.permute.xlu0 0
      %465 = vperm.xlu0 %464, %v355
      %v466 = vpop.permute.xlu0 %465
      %v469 = vunpack.c.l.s4 839922192
      %v470 = vunpack.c.0.s8 %v469
      %v471 = vlaneseq
      %v472 = vshrl.u32 %v471, 7
      %v473 = vsub.s32 %v470, %v472
      %v474 = vrot.slane %v466, %v473
      %476 = vset.pattern.permute.xlu0 0
      %477 = vperm.xlu0 %476, %v356
      %v478 = vpop.permute.xlu0 %477
      %v481 = vunpack.c.l.s4 839922192
      %v482 = vunpack.c.0.s8 %v481
      %v483 = vlaneseq
      %v484 = vshrl.u32 %v483, 7
      %v485 = vsub.s32 %v482, %v484
      %v486 = vrot.slane %v478, %v485
      %488 = vset.pattern.permute.xlu0 0
      %489 = vperm.xlu0 %488, %v357
      %v490 = vpop.permute.xlu0 %489
      %v493 = vunpack.c.l.s4 839922192
      %v494 = vunpack.c.0.s8 %v493
      %v495 = vlaneseq
      %v496 = vshrl.u32 %v495, 7
      %v497 = vsub.s32 %v494, %v496
      %v498 = vrot.slane %v490, %v497
      %500 = vset.pattern.permute.xlu0 0
      %501 = vperm.xlu0 %500, %v358
      %v502 = vpop.permute.xlu0 %501
      %v505 = vunpack.c.l.s4 839922192
      %v506 = vunpack.c.0.s8 %v505
      %v507 = vlaneseq
      %v508 = vshrl.u32 %v507, 7
      %v509 = vsub.s32 %v506, %v508
      %v510 = vrot.slane %v502, %v509
      %512 = vset.pattern.permute.xlu0 0
      %513 = vperm.xlu0 %512, %v359
      %v514 = vpop.permute.xlu0 %513
      %v517 = vunpack.c.l.s4 839922192
      %v518 = vunpack.c.0.s8 %v517
      %v519 = vlaneseq
      %v520 = vshrl.u32 %v519, 7
      %v521 = vsub.s32 %v518, %v520
      %v522 = vrot.slane %v514, %v521
      %524 = vset.pattern.permute.xlu0 0
      %525 = vperm.xlu0 %524, %v360
      %v526 = vpop.permute.xlu0 %525
      %v529 = vunpack.c.l.s4 839922192
      %v530 = vunpack.c.0.s8 %v529
      %v531 = vlaneseq
      %v532 = vshrl.u32 %v531, 7
      %v533 = vsub.s32 %v530, %v532
      %v534 = vrot.slane %v526, %v533
      %536 = vset.pattern.permute.xlu0 0
      %537 = vperm.xlu0 %536, %v361
      %v538 = vpop.permute.xlu0 %537
      %v541 = vunpack.c.l.s4 839922192
      %v542 = vunpack.c.0.s8 %v541
      %v543 = vlaneseq
      %v544 = vshrl.u32 %v543, 7
      %v545 = vsub.s32 %v542, %v544
      %v546 = vrot.slane %v538, %v545
      %548 = vset.pattern.permute.xlu0 0
      %549 = vperm.xlu0 %548, %v362
      %v550 = vpop.permute.xlu0 %549
      %v553 = vunpack.c.l.s4 839922192
      %v554 = vunpack.c.0.s8 %v553
      %v555 = vlaneseq
      %v556 = vshrl.u32 %v555, 7
      %v557 = vsub.s32 %v554, %v556
      %v558 = vrot.slane %v550, %v557
      %560 = vset.pattern.permute.xlu0 0
      %561 = vperm.xlu0 %560, %v363
      %v562 = vpop.permute.xlu0 %561
      %v565 = vunpack.c.l.s4 839922192
      %v566 = vunpack.c.0.s8 %v565
      %v567 = vlaneseq
      %v568 = vshrl.u32 %v567, 7
      %v569 = vsub.s32 %v566, %v568
      %v570 = vrot.slane %v562, %v569
      %572 = vset.pattern.permute.xlu0 0
      %573 = vperm.xlu0 %572, %v364
      %v574 = vpop.permute.xlu0 %573
      %v577 = vunpack.c.l.s4 839922192
      %v578 = vunpack.c.0.s8 %v577
      %v579 = vlaneseq
      %v580 = vshrl.u32 %v579, 7
      %v581 = vsub.s32 %v578, %v580
      %v582 = vrot.slane %v574, %v581
      %584 = vset.pattern.permute.xlu0 0
      %585 = vperm.xlu0 %584, %v365
      %v586 = vpop.permute.xlu0 %585
      %v589 = vunpack.c.l.s4 839922192
      %v590 = vunpack.c.0.s8 %v589
      %v591 = vlaneseq
      %v592 = vshrl.u32 %v591, 7
      %v593 = vsub.s32 %v590, %v592
      %v594 = vrot.slane %v586, %v593
      %596 = vset.pattern.permute.xlu0 0
      %597 = vperm.xlu0 %596, %v366
      %v598 = vpop.permute.xlu0 %597
      %v601 = vunpack.c.l.s4 839922192
      %v602 = vunpack.c.0.s8 %v601
      %v603 = vlaneseq
      %v604 = vshrl.u32 %v603, 7
      %v605 = vsub.s32 %v602, %v604
      %v606 = vrot.slane %v598, %v605
      %608 = vset.pattern.permute.xlu0 0
      %609 = vperm.xlu0 %608, %v367
      %v610 = vpop.permute.xlu0 %609
      %v613 = vunpack.c.l.s4 839922192
      %v614 = vunpack.c.0.s8 %v613
      %v615 = vlaneseq
      %v616 = vshrl.u32 %v615, 7
      %v617 = vsub.s32 %v614, %v616
      %v618 = vrot.slane %v610, %v617
      %620 = vset.pattern.permute.xlu0 0
      %621 = vperm.xlu0 %620, %v368
      %v622 = vpop.permute.xlu0 %621
      %v625 = vunpack.c.l.s4 839922192
      %v626 = vunpack.c.0.s8 %v625
      %v627 = vlaneseq
      %v628 = vshrl.u32 %v627, 7
      %v629 = vsub.s32 %v626, %v628
      %v630 = vrot.slane %v622, %v629
      %632 = vset.pattern.permute.xlu0 0
      %633 = vperm.xlu0 %632, %v369
      %v634 = vpop.permute.xlu0 %633
      %v637 = vunpack.c.l.s4 839922192
      %v638 = vunpack.c.0.s8 %v637
      %v639 = vlaneseq
      %v640 = vshrl.u32 %v639, 7
      %v641 = vsub.s32 %v638, %v640
      %v642 = vrot.slane %v634, %v641
      %644 = vset.pattern.permute.xlu0 0
      %645 = vperm.xlu0 %644, %v370
      %v646 = vpop.permute.xlu0 %645
      %v649 = vunpack.c.l.s4 839922192
      %v650 = vunpack.c.0.s8 %v649
      %v651 = vlaneseq
      %v652 = vshrl.u32 %v651, 7
      %v653 = vsub.s32 %v650, %v652
      %v654 = vrot.slane %v646, %v653
      %656 = vset.pattern.permute.xlu0 0
      %657 = vperm.xlu0 %656, %v371
      %v658 = vpop.permute.xlu0 %657
      %v661 = vunpack.c.l.s4 839922192
      %v662 = vunpack.c.0.s8 %v661
      %v663 = vlaneseq
      %v664 = vshrl.u32 %v663, 7
      %v665 = vsub.s32 %v662, %v664
      %v666 = vrot.slane %v658, %v665
      %668 = vset.pattern.permute.xlu0 0
      %669 = vperm.xlu0 %668, %v372
      %v670 = vpop.permute.xlu0 %669
      %v673 = vunpack.c.l.s4 839922192
      %v674 = vunpack.c.0.s8 %v673
      %v675 = vlaneseq
      %v676 = vshrl.u32 %v675, 7
      %v677 = vsub.s32 %v674, %v676
      %v678 = vrot.slane %v670, %v677
      %680 = vset.pattern.permute.xlu0 0
      %681 = vperm.xlu0 %680, %v373
      %v682 = vpop.permute.xlu0 %681
      %v685 = vunpack.c.l.s4 839922192
      %v686 = vunpack.c.0.s8 %v685
      %v687 = vlaneseq
      %v688 = vshrl.u32 %v687, 7
      %v689 = vsub.s32 %v686, %v688
      %v690 = vrot.slane %v682, %v689
      %692 = vset.pattern.permute.xlu0 0
      %693 = vperm.xlu0 %692, %v374
      %v694 = vpop.permute.xlu0 %693
      %v697 = vunpack.c.l.s4 839922192
      %v698 = vunpack.c.0.s8 %v697
      %v699 = vlaneseq
      %v700 = vshrl.u32 %v699, 7
      %v701 = vsub.s32 %v698, %v700
      %v702 = vrot.slane %v694, %v701
      %704 = vset.pattern.permute.xlu0 0
      %705 = vperm.xlu0 %704, %v375
      %v706 = vpop.permute.xlu0 %705
      %v709 = vunpack.c.l.s4 839922192
      %v710 = vunpack.c.0.s8 %v709
      %v711 = vlaneseq
      %v712 = vshrl.u32 %v711, 7
      %v713 = vsub.s32 %v710, %v712
      %v714 = vrot.slane %v706, %v713
      %716 = vset.pattern.permute.xlu0 0
      %717 = vperm.xlu0 %716, %v376
      %v718 = vpop.permute.xlu0 %717
      %v721 = vunpack.c.l.s4 839922192
      %v722 = vunpack.c.0.s8 %v721
      %v723 = vlaneseq
      %v724 = vshrl.u32 %v723, 7
      %v725 = vsub.s32 %v722, %v724
      %v726 = vrot.slane %v718, %v725
      %728 = vset.pattern.permute.xlu0 0
      %729 = vperm.xlu0 %728, %v377
      %v730 = vpop.permute.xlu0 %729
      %v733 = vunpack.c.l.s4 839922192
      %v734 = vunpack.c.0.s8 %v733
      %v735 = vlaneseq
      %v736 = vshrl.u32 %v735, 7
      %v737 = vsub.s32 %v734, %v736
      %v738 = vrot.slane %v730, %v737
      %740 = vset.pattern.permute.xlu0 0
      %741 = vperm.xlu0 %740, %v378
      %v742 = vpop.permute.xlu0 %741
      %v745 = vunpack.c.l.s4 839922192
      %v746 = vunpack.c.0.s8 %v745
      %v747 = vlaneseq
      %v748 = vshrl.u32 %v747, 7
      %v749 = vsub.s32 %v746, %v748
      %v750 = vrot.slane %v742, %v749
      %752 = vset.pattern.permute.xlu0 0
      %753 = vperm.xlu0 %752, %v379
      %v754 = vpop.permute.xlu0 %753
      %v757 = vunpack.c.l.s4 839922192
      %v758 = vunpack.c.0.s8 %v757
      %v759 = vlaneseq
      %v760 = vshrl.u32 %v759, 7
      %v761 = vsub.s32 %v758, %v760
      %v762 = vrot.slane %v754, %v761
      %764 = vset.pattern.permute.xlu0 0
      %765 = vperm.xlu0 %764, %v380
      %v766 = vpop.permute.xlu0 %765
      %v769 = vunpack.c.l.s4 839922192
      %v770 = vunpack.c.0.s8 %v769
      %v771 = vlaneseq
      %v772 = vshrl.u32 %v771, 7
      %v773 = vsub.s32 %v770, %v772
      %v774 = vrot.slane %v766, %v773
      %776 = vset.pattern.permute.xlu0 0
      %777 = vperm.xlu0 %776, %v381
      %v778 = vpop.permute.xlu0 %777
      %v781 = vunpack.c.l.s4 839922192
      %v782 = vunpack.c.0.s8 %v781
      %v783 = vlaneseq
      %v784 = vshrl.u32 %v783, 7
      %v785 = vsub.s32 %v782, %v784
      %v786 = vrot.slane %v778, %v785
      %788 = vset.pattern.permute.xlu0 0
      %789 = vperm.xlu0 %788, %v382
      %v790 = vpop.permute.xlu0 %789
      %v793 = vunpack.c.l.s4 839922192
      %v794 = vunpack.c.0.s8 %v793
      %v795 = vlaneseq
      %v796 = vshrl.u32 %v795, 7
      %v797 = vsub.s32 %v794, %v796
      %v798 = vrot.slane %v790, %v797
      %v799 = vmul.bf16 %v383, %v426
      %v800 = vmul.bf16 %v384, %v438
      %v801 = vmul.bf16 %v385, %v450
      %v802 = vmul.bf16 %v386, %v462
      %v803 = vmul.bf16 %v387, %v474
      %v804 = vmul.bf16 %v388, %v486
      %v805 = vmul.bf16 %v389, %v498
      %v806 = vmul.bf16 %v390, %v510
      %v807 = vmul.bf16 %v391, %v522
      %v808 = vmul.bf16 %v392, %v534
      %v809 = vmul.bf16 %v393, %v546
      %v810 = vmul.bf16 %v394, %v558
      %v811 = vmul.bf16 %v395, %v570
      %v812 = vmul.bf16 %v396, %v582
      %v813 = vmul.bf16 %v397, %v594
      %v814 = vmul.bf16 %v398, %v606
      %v815 = vmul.bf16 %v399, %v618
      %v816 = vmul.bf16 %v400, %v630
      %v817 = vmul.bf16 %v401, %v642
      %v818 = vmul.bf16 %v402, %v654
      %v819 = vmul.bf16 %v403, %v666
      %v820 = vmul.bf16 %v404, %v678
      %v821 = vmul.bf16 %v405, %v690
      %v822 = vmul.bf16 %v406, %v702
      %v823 = vmul.bf16 %v407, %v714
      %v824 = vmul.bf16 %v408, %v726
      %v825 = vmul.bf16 %v409, %v738
      %v826 = vmul.bf16 %v410, %v750
      %v827 = vmul.bf16 %v411, %v762
      %v828 = vmul.bf16 %v412, %v774
      %v829 = vmul.bf16 %v413, %v786
      %v830 = vmul.bf16 %v414, %v798
      %v863 = vunpack.c.l.b16 %v799
      %v864 = vunpack.c.l.b16 %v800
      %v865 = vunpack.c.l.b16 %v801
      %v866 = vunpack.c.l.b16 %v802
      %v867 = vunpack.c.l.b16 %v803
      %v868 = vunpack.c.l.b16 %v804
      %v869 = vunpack.c.l.b16 %v805
      %v870 = vunpack.c.l.b16 %v806
      %v871 = vunpack.c.l.b16 %v807
      %v872 = vunpack.c.l.b16 %v808
      %v873 = vunpack.c.l.b16 %v809
      %v874 = vunpack.c.l.b16 %v810
      %v875 = vunpack.c.l.b16 %v811
      %v876 = vunpack.c.l.b16 %v812
      %v877 = vunpack.c.l.b16 %v813
      %v878 = vunpack.c.l.b16 %v814
      %v879 = vunpack.c.l.b16 %v815
      %v880 = vunpack.c.l.b16 %v816
      %v881 = vunpack.c.l.b16 %v817
      %v882 = vunpack.c.l.b16 %v818
      %v883 = vunpack.c.l.b16 %v819
      %v884 = vunpack.c.l.b16 %v820
      %v885 = vunpack.c.l.b16 %v821
      %v886 = vunpack.c.l.b16 %v822
      %v887 = vunpack.c.l.b16 %v823
      %v888 = vunpack.c.l.b16 %v824
      %v889 = vunpack.c.l.b16 %v825
      %v890 = vunpack.c.l.b16 %v826
      %v891 = vunpack.c.l.b16 %v827
      %v892 = vunpack.c.l.b16 %v828
      %v893 = vunpack.c.l.b16 %v829
      %v894 = vunpack.c.l.b16 %v830
      %v895 = vpack.c.b16 %v864, %v863
      %v896 = vpack.c.b16 %v866, %v865
      %v897 = vpack.c.b16 %v868, %v867
      %v898 = vpack.c.b16 %v870, %v869
      %v899 = vpack.c.b16 %v872, %v871
      %v900 = vpack.c.b16 %v874, %v873
      %v901 = vpack.c.b16 %v876, %v875
      %v902 = vpack.c.b16 %v878, %v877
      %v903 = vpack.c.b16 %v880, %v879
      %v904 = vpack.c.b16 %v882, %v881
      %v905 = vpack.c.b16 %v884, %v883
      %v906 = vpack.c.b16 %v886, %v885
      %v907 = vpack.c.b16 %v888, %v887
      %v908 = vpack.c.b16 %v890, %v889
      %v909 = vpack.c.b16 %v892, %v891
      %v910 = vpack.c.b16 %v894, %v893
      %vm927 = vcmask 130048
      %928 = vst.msk [vmem:[#allocation2] sm:$0xff] %vm927, %v895
      %929 = vst.msk [vmem:[#allocation2 + $0x10] sm:$0xff] %vm927, %v896
      %930 = vst.msk [vmem:[#allocation2 + $0x20] sm:$0xff] %vm927, %v897
      %931 = vst.msk [vmem:[#allocation2 + $0x30] sm:$0xff] %vm927, %v898
      %932 = vst.msk [vmem:[#allocation2 + $0x40] sm:$0xff] %vm927, %v899
      %933 = vst.msk [vmem:[#allocation2 + $0x50] sm:$0xff] %vm927, %v900
      %934 = vst.msk [vmem:[#allocation2 + $0x60] sm:$0xff] %vm927, %v901
      %935 = vst.msk [vmem:[#allocation2 + $0x70] sm:$0xff] %vm927, %v902
      %936 = vst.msk [vmem:[#allocation2 + $0x80] sm:$0xff] %vm927, %v903
      %937 = vst.msk [vmem:[#allocation2 + $0x90] sm:$0xff] %vm927, %v904
      %938 = vst.msk [vmem:[#allocation2 + $0xa0] sm:$0xff] %vm927, %v905
      %939 = vst.msk [vmem:[#allocation2 + $0xb0] sm:$0xff] %vm927, %v906
      %940 = vst.msk [vmem:[#allocation2 + $0xc0] sm:$0xff] %vm927, %v907
      %941 = vst.msk [vmem:[#allocation2 + $0xd0] sm:$0xff] %vm927, %v908
      %942 = vst.msk [vmem:[#allocation2 + $0xe0] sm:$0xff] %vm927, %v909
      %943 = vst.msk [vmem:[#allocation2 + $0xf0] sm:$0xff] %vm927, %v910
      %v944 = vld [vmem:[%s330] sm:$0xf]
      %v945 = vld [vmem:[%s330 + $0x4] sm:$0xf]
      %v946 = vld [vmem:[%s330 + $0x8] sm:$0xf]
      %v947 = vld [vmem:[%s330 + $0xc] sm:$0xf]
      %v948 = vld [vmem:[%s330 + $0x10] sm:$0xf]
      %v949 = vld [vmem:[%s330 + $0x14] sm:$0xf]
      %v950 = vld [vmem:[%s330 + $0x18] sm:$0xf]
      %v951 = vld [vmem:[%s330 + $0x1c] sm:$0xf]
      %v952 = vld [vmem:[%s330 + $0x20] sm:$0xf]
      %v953 = vld [vmem:[%s330 + $0x24] sm:$0xf]
      %v954 = vld [vmem:[%s330 + $0x28] sm:$0xf]
      %v955 = vld [vmem:[%s330 + $0x2c] sm:$0xf]
      %v956 = vld [vmem:[%s330 + $0x30] sm:$0xf]
      %v957 = vld [vmem:[%s330 + $0x34] sm:$0xf]
      %v958 = vld [vmem:[%s330 + $0x38] sm:$0xf]
      %v959 = vld [vmem:[%s330 + $0x3c] sm:$0xf]
      %v960 = vld [vmem:[%s330 + $0x40] sm:$0xf]
      %v961 = vld [vmem:[%s330 + $0x44] sm:$0xf]
      %v962 = vld [vmem:[%s330 + $0x48] sm:$0xf]
      %v963 = vld [vmem:[%s330 + $0x4c] sm:$0xf]
      %v964 = vld [vmem:[%s330 + $0x50] sm:$0xf]
      %v965 = vld [vmem:[%s330 + $0x54] sm:$0xf]
      %v966 = vld [vmem:[%s330 + $0x58] sm:$0xf]
      %v967 = vld [vmem:[%s330 + $0x5c] sm:$0xf]
      %v968 = vld [vmem:[%s330 + $0x60] sm:$0xf]
      %v969 = vld [vmem:[%s330 + $0x64] sm:$0xf]
      %v970 = vld [vmem:[%s330 + $0x68] sm:$0xf]
      %v971 = vld [vmem:[%s330 + $0x6c] sm:$0xf]
      %v972 = vld [vmem:[%s330 + $0x70] sm:$0xf]
      %v973 = vld [vmem:[%s330 + $0x74] sm:$0xf]
      %v974 = vld [vmem:[%s330 + $0x78] sm:$0xf]
      %v975 = vld [vmem:[%s330 + $0x7c] sm:$0xf]
      %v976 = vld [vmem:[%s330 + $0x80] sm:$0x1]
      %v1010 = vunpack.c.l.b16 %v944
      %v1011 = vunpack.c.l.b16 %v945
      %v1012 = vunpack.c.l.b16 %v946
      %v1013 = vunpack.c.l.b16 %v947
      %v1014 = vunpack.c.l.b16 %v948
      %v1015 = vunpack.c.l.b16 %v949
      %v1016 = vunpack.c.l.b16 %v950
      %v1017 = vunpack.c.l.b16 %v951
      %v1018 = vunpack.c.l.b16 %v952
      %v1019 = vunpack.c.l.b16 %v953
      %v1020 = vunpack.c.l.b16 %v954
      %v1021 = vunpack.c.l.b16 %v955
      %v1022 = vunpack.c.l.b16 %v956
      %v1023 = vunpack.c.l.b16 %v957
      %v1024 = vunpack.c.l.b16 %v958
      %v1025 = vunpack.c.l.b16 %v959
      %v1026 = vunpack.c.l.b16 %v960
      %v1027 = vunpack.c.l.b16 %v961
      %v1028 = vunpack.c.l.b16 %v962
      %v1029 = vunpack.c.l.b16 %v963
      %v1030 = vunpack.c.l.b16 %v964
      %v1031 = vunpack.c.l.b16 %v965
      %v1032 = vunpack.c.l.b16 %v966
      %v1033 = vunpack.c.l.b16 %v967
      %v1034 = vunpack.c.l.b16 %v968
      %v1035 = vunpack.c.l.b16 %v969
      %v1036 = vunpack.c.l.b16 %v970
      %v1037 = vunpack.c.l.b16 %v971
      %v1038 = vunpack.c.l.b16 %v972
      %v1039 = vunpack.c.l.b16 %v973
      %v1040 = vunpack.c.l.b16 %v974
      %v1041 = vunpack.c.l.b16 %v975
      %v1042 = vunpack.c.l.b16 %v976
      %v1043 = vpack.c.b16 %v1011, %v1010
      %v1044 = vpack.c.b16 %v1013, %v1012
      %v1045 = vpack.c.b16 %v1015, %v1014
      %v1046 = vpack.c.b16 %v1017, %v1016
      %v1047 = vpack.c.b16 %v1019, %v1018
      %v1048 = vpack.c.b16 %v1021, %v1020
      %v1049 = vpack.c.b16 %v1023, %v1022
      %v1050 = vpack.c.b16 %v1025, %v1024
      %v1051 = vpack.c.b16 %v1027, %v1026
      %v1052 = vpack.c.b16 %v1029, %v1028
      %v1053 = vpack.c.b16 %v1031, %v1030
      %v1054 = vpack.c.b16 %v1033, %v1032
      %v1055 = vpack.c.b16 %v1035, %v1034
      %v1056 = vpack.c.b16 %v1037, %v1036
      %v1057 = vpack.c.b16 %v1039, %v1038
      %v1058 = vpack.c.b16 %v1041, %v1040
      %v1059 = vpack.c.b16 %v1042, %v1042
      %vm1060 = vsmask.f32 7424
      %v1062 = vshrl.u32 %v1043, 16
      %v1064 = vshll.u32 %v1043, 16
      %v1066 = vrot.slane %v1064, 1
      %v1067 = vor.u32 %v1062, %v1066
      %v1069 = vshll.u32 %v1044, 16
      %v1071 = vrot.slane %v1069, 1
      %v1072 = vsel %vm1060, %v1067, %v1071
      %v1073 = vshrl.u32 %v1044, 16
      %v1075 = vor.u32 %v1073, %v1071
      %v1077 = vshll.u32 %v1045, 16
      %v1079 = vrot.slane %v1077, 1
      %v1080 = vsel %vm1060, %v1075, %v1079
      %v1081 = vshrl.u32 %v1045, 16
      %v1083 = vor.u32 %v1081, %v1079
      %v1085 = vshll.u32 %v1046, 16
      %v1087 = vrot.slane %v1085, 1
      %v1088 = vsel %vm1060, %v1083, %v1087
      %v1089 = vshrl.u32 %v1046, 16
      %v1091 = vor.u32 %v1089, %v1087
      %v1093 = vshll.u32 %v1047, 16
      %v1095 = vrot.slane %v1093, 1
      %v1096 = vsel %vm1060, %v1091, %v1095
      %v1097 = vshrl.u32 %v1047, 16
      %v1099 = vor.u32 %v1097, %v1095
      %v1101 = vshll.u32 %v1048, 16
      %v1103 = vrot.slane %v1101, 1
      %v1104 = vsel %vm1060, %v1099, %v1103
      %v1105 = vshrl.u32 %v1048, 16
      %v1107 = vor.u32 %v1105, %v1103
      %v1109 = vshll.u32 %v1049, 16
      %v1111 = vrot.slane %v1109, 1
      %v1112 = vsel %vm1060, %v1107, %v1111
      %v1113 = vshrl.u32 %v1049, 16
      %v1115 = vor.u32 %v1113, %v1111
      %v1117 = vshll.u32 %v1050, 16
      %v1119 = vrot.slane %v1117, 1
      %v1120 = vsel %vm1060, %v1115, %v1119
      %v1121 = vshrl.u32 %v1050, 16
      %v1123 = vor.u32 %v1121, %v1119
      %v1125 = vshll.u32 %v1051, 16
      %v1127 = vrot.slane %v1125, 1
      %v1128 = vsel %vm1060, %v1123, %v1127
      %v1129 = vshrl.u32 %v1051, 16
      %v1131 = vor.u32 %v1129, %v1127
      %v1133 = vshll.u32 %v1052, 16
      %v1135 = vrot.slane %v1133, 1
      %v1136 = vsel %vm1060, %v1131, %v1135
      %v1137 = vshrl.u32 %v1052, 16
      %v1139 = vor.u32 %v1137, %v1135
      %v1141 = vshll.u32 %v1053, 16
      %v1143 = vrot.slane %v1141, 1
      %v1144 = vsel %vm1060, %v1139, %v1143
      %v1145 = vshrl.u32 %v1053, 16
      %v1147 = vor.u32 %v1145, %v1143
      %v1149 = vshll.u32 %v1054, 16
      %v1151 = vrot.slane %v1149, 1
      %v1152 = vsel %vm1060, %v1147, %v1151
      %v1153 = vshrl.u32 %v1054, 16
      %v1155 = vor.u32 %v1153, %v1151
      %v1157 = vshll.u32 %v1055, 16
      %v1159 = vrot.slane %v1157, 1
      %v1160 = vsel %vm1060, %v1155, %v1159
      %v1161 = vshrl.u32 %v1055, 16
      %v1163 = vor.u32 %v1161, %v1159
      %v1165 = vshll.u32 %v1056, 16
      %v1167 = vrot.slane %v1165, 1
      %v1168 = vsel %vm1060, %v1163, %v1167
      %v1169 = vshrl.u32 %v1056, 16
      %v1171 = vor.u32 %v1169, %v1167
      %v1173 = vshll.u32 %v1057, 16
      %v1175 = vrot.slane %v1173, 1
      %v1176 = vsel %vm1060, %v1171, %v1175
      %v1177 = vshrl.u32 %v1057, 16
      %v1179 = vor.u32 %v1177, %v1175
      %v1181 = vshll.u32 %v1058, 16
      %v1183 = vrot.slane %v1181, 1
      %v1184 = vsel %vm1060, %v1179, %v1183
      %v1185 = vshrl.u32 %v1058, 16
      %v1187 = vor.u32 %v1185, %v1183
      %v1189 = vshll.u32 %v1059, 16
      %v1191 = vrot.slane %v1189, 1
      %v1192 = vsel %vm1060, %v1187, %v1191
      %1193 = vrot.lane.b32.xlu0 %v1072, 16
      %v1194 = vpop.permute.xlu0 %1193
      %1195 = vrot.lane.b32.xlu0 %v1080, 16
      %v1196 = vpop.permute.xlu0 %1195
      %1197 = vrot.lane.b32.xlu0 %v1088, 16
      %v1198 = vpop.permute.xlu0 %1197
      %1199 = vrot.lane.b32.xlu0 %v1096, 16
      %v1200 = vpop.permute.xlu0 %1199
      %1201 = vrot.lane.b32.xlu0 %v1104, 16
      %v1202 = vpop.permute.xlu0 %1201
      %1203 = vrot.lane.b32.xlu0 %v1112, 16
      %v1204 = vpop.permute.xlu0 %1203
      %1205 = vrot.lane.b32.xlu0 %v1120, 16
      %v1206 = vpop.permute.xlu0 %1205
      %1207 = vrot.lane.b32.xlu0 %v1128, 16
      %v1208 = vpop.permute.xlu0 %1207
      %1209 = vrot.lane.b32.xlu0 %v1136, 16
      %v1210 = vpop.permute.xlu0 %1209
      %1211 = vrot.lane.b32.xlu0 %v1144, 16
      %v1212 = vpop.permute.xlu0 %1211
      %1213 = vrot.lane.b32.xlu0 %v1152, 16
      %v1214 = vpop.permute.xlu0 %1213
      %1215 = vrot.lane.b32.xlu0 %v1160, 16
      %v1216 = vpop.permute.xlu0 %1215
      %1217 = vrot.lane.b32.xlu0 %v1168, 16
      %v1218 = vpop.permute.xlu0 %1217
      %1219 = vrot.lane.b32.xlu0 %v1176, 16
      %v1220 = vpop.permute.xlu0 %1219
      %1221 = vrot.lane.b32.xlu0 %v1184, 16
      %v1222 = vpop.permute.xlu0 %1221
      %1223 = vrot.lane.b32.xlu0 %v1192, 16
      %v1224 = vpop.permute.xlu0 %1223
      %vm1241 = vcmask 261248
      %1242 = vst.msk [vmem:[#allocation2] sm:$0xff] %vm1241, %v1194
      %1243 = vst.msk [vmem:[#allocation2 + $0x10] sm:$0xff] %vm1241, %v1196
      %1244 = vst.msk [vmem:[#allocation2 + $0x20] sm:$0xff] %vm1241, %v1198
      %1245 = vst.msk [vmem:[#allocation2 + $0x30] sm:$0xff] %vm1241, %v1200
      %1246 = vst.msk [vmem:[#allocation2 + $0x40] sm:$0xff] %vm1241, %v1202
      %1247 = vst.msk [vmem:[#allocation2 + $0x50] sm:$0xff] %vm1241, %v1204
      %1248 = vst.msk [vmem:[#allocation2 + $0x60] sm:$0xff] %vm1241, %v1206
      %1249 = vst.msk [vmem:[#allocation2 + $0x70] sm:$0xff] %vm1241, %v1208
      %1250 = vst.msk [vmem:[#allocation2 + $0x80] sm:$0xff] %vm1241, %v1210
      %1251 = vst.msk [vmem:[#allocation2 + $0x90] sm:$0xff] %vm1241, %v1212
      %1252 = vst.msk [vmem:[#allocation2 + $0xa0] sm:$0xff] %vm1241, %v1214
      %1253 = vst.msk [vmem:[#allocation2 + $0xb0] sm:$0xff] %vm1241, %v1216
      %1254 = vst.msk [vmem:[#allocation2 + $0xc0] sm:$0xff] %vm1241, %v1218
      %1255 = vst.msk [vmem:[#allocation2 + $0xd0] sm:$0xff] %vm1241, %v1220
      %1256 = vst.msk [vmem:[#allocation2 + $0xe0] sm:$0xff] %vm1241, %v1222
      %1257 = vst.msk [vmem:[#allocation2 + $0xf0] sm:$0xff] %vm1241, %v1224
      %v1258 = vld [vmem:[%s330] sm:$0xe]
      %v1259 = vld [vmem:[%s330 + $0x4] sm:$0xf]
      %v1260 = vld [vmem:[%s330 + $0x8] sm:$0xf]
      %v1261 = vld [vmem:[%s330 + $0xc] sm:$0xf]
      %v1262 = vld [vmem:[%s330 + $0x10] sm:$0xf]
      %v1263 = vld [vmem:[%s330 + $0x14] sm:$0xf]
      %v1264 = vld [vmem:[%s330 + $0x18] sm:$0xf]
      %v1265 = vld [vmem:[%s330 + $0x1c] sm:$0xf]
      %v1266 = vld [vmem:[%s330 + $0x20] sm:$0xf]
      %v1267 = vld [vmem:[%s330 + $0x24] sm:$0xf]
      %v1268 = vld [vmem:[%s330 + $0x28] sm:$0xf]
      %v1269 = vld [vmem:[%s330 + $0x2c] sm:$0xf]
      %v1270 = vld [vmem:[%s330 + $0x30] sm:$0xf]
      %v1271 = vld [vmem:[%s330 + $0x34] sm:$0xf]
      %v1272 = vld [vmem:[%s330 + $0x38] sm:$0xf]
      %v1273 = vld [vmem:[%s330 + $0x3c] sm:$0xf]
      %v1274 = vld [vmem:[%s330 + $0x40] sm:$0xf]
      %v1275 = vld [vmem:[%s330 + $0x44] sm:$0xf]
      %v1276 = vld [vmem:[%s330 + $0x48] sm:$0xf]
      %v1277 = vld [vmem:[%s330 + $0x4c] sm:$0xf]
      %v1278 = vld [vmem:[%s330 + $0x50] sm:$0xf]
      %v1279 = vld [vmem:[%s330 + $0x54] sm:$0xf]
      %v1280 = vld [vmem:[%s330 + $0x58] sm:$0xf]
      %v1281 = vld [vmem:[%s330 + $0x5c] sm:$0xf]
      %v1282 = vld [vmem:[%s330 + $0x60] sm:$0xf]
      %v1283 = vld [vmem:[%s330 + $0x64] sm:$0xf]
      %v1284 = vld [vmem:[%s330 + $0x68] sm:$0xf]
      %v1285 = vld [vmem:[%s330 + $0x6c] sm:$0xf]
      %v1286 = vld [vmem:[%s330 + $0x70] sm:$0xf]
      %v1287 = vld [vmem:[%s330 + $0x74] sm:$0xf]
      %v1288 = vld [vmem:[%s330 + $0x78] sm:$0xf]
      %v1289 = vld [vmem:[%s330 + $0x7c] sm:$0xf]
      %v1290 = vld [vmem:[%s330 + $0x80] sm:$0x1]
      %1291 = vset.pattern.permute.xlu0 1
      %1292 = vperm.xlu0 %1291, %v351
      %v1293 = vpop.permute.xlu0 %1292
      %v1296 = vunpack.c.l.s4 839922192
      %v1297 = vunpack.c.0.s8 %v1296
      %v1298 = vlaneseq
      %v1299 = vshrl.u32 %v1298, 7
      %v1300 = vsub.s32 %v1297, %v1299
      %v1301 = vrot.slane %v1293, %v1300
      %1302 = vset.pattern.permute.xlu0 1
      %1303 = vperm.xlu0 %1302, %v352
      %v1304 = vpop.permute.xlu0 %1303
      %v1307 = vunpack.c.l.s4 839922192
      %v1308 = vunpack.c.0.s8 %v1307
      %v1309 = vlaneseq
      %v1310 = vshrl.u32 %v1309, 7
      %v1311 = vsub.s32 %v1308, %v1310
      %v1312 = vrot.slane %v1304, %v1311
      %1313 = vset.pattern.permute.xlu0 1
      %1314 = vperm.xlu0 %1313, %v353
      %v1315 = vpop.permute.xlu0 %1314
      %v1318 = vunpack.c.l.s4 839922192
      %v1319 = vunpack.c.0.s8 %v1318
      %v1320 = vlaneseq
      %v1321 = vshrl.u32 %v1320, 7
      %v1322 = vsub.s32 %v1319, %v1321
      %v1323 = vrot.slane %v1315, %v1322
      %1324 = vset.pattern.permute.xlu0 1
      %1325 = vperm.xlu0 %1324, %v354
      %v1326 = vpop.permute.xlu0 %1325
      %v1329 = vunpack.c.l.s4 839922192
      %v1330 = vunpack.c.0.s8 %v1329
      %v1331 = vlaneseq
      %v1332 = vshrl.u32 %v1331, 7
      %v1333 = vsub.s32 %v1330, %v1332
      %v1334 = vrot.slane %v1326, %v1333
      %1335 = vset.pattern.permute.xlu0 1
      %1336 = vperm.xlu0 %1335, %v355
      %v1337 = vpop.permute.xlu0 %1336
      %v1340 = vunpack.c.l.s4 839922192
      %v1341 = vunpack.c.0.s8 %v1340
      %v1342 = vlaneseq
      %v1343 = vshrl.u32 %v1342, 7
      %v1344 = vsub.s32 %v1341, %v1343
      %v1345 = vrot.slane %v1337, %v1344
      %1346 = vset.pattern.permute.xlu0 1
      %1347 = vperm.xlu0 %1346, %v356
      %v1348 = vpop.permute.xlu0 %1347
      %v1351 = vunpack.c.l.s4 839922192
      %v1352 = vunpack.c.0.s8 %v1351
      %v1353 = vlaneseq
      %v1354 = vshrl.u32 %v1353, 7
      %v1355 = vsub.s32 %v1352, %v1354
      %v1356 = vrot.slane %v1348, %v1355
      %1357 = vset.pattern.permute.xlu0 1
      %1358 = vperm.xlu0 %1357, %v357
      %v1359 = vpop.permute.xlu0 %1358
      %v1362 = vunpack.c.l.s4 839922192
      %v1363 = vunpack.c.0.s8 %v1362
      %v1364 = vlaneseq
      %v1365 = vshrl.u32 %v1364, 7
      %v1366 = vsub.s32 %v1363, %v1365
      %v1367 = vrot.slane %v1359, %v1366
      %1368 = vset.pattern.permute.xlu0 1
      %1369 = vperm.xlu0 %1368, %v358
      %v1370 = vpop.permute.xlu0 %1369
      %v1373 = vunpack.c.l.s4 839922192
      %v1374 = vunpack.c.0.s8 %v1373
      %v1375 = vlaneseq
      %v1376 = vshrl.u32 %v1375, 7
      %v1377 = vsub.s32 %v1374, %v1376
      %v1378 = vrot.slane %v1370, %v1377
      %1379 = vset.pattern.permute.xlu0 1
      %1380 = vperm.xlu0 %1379, %v359
      %v1381 = vpop.permute.xlu0 %1380
      %v1384 = vunpack.c.l.s4 839922192
      %v1385 = vunpack.c.0.s8 %v1384
      %v1386 = vlaneseq
      %v1387 = vshrl.u32 %v1386, 7
      %v1388 = vsub.s32 %v1385, %v1387
      %v1389 = vrot.slane %v1381, %v1388
      %1390 = vset.pattern.permute.xlu0 1
      %1391 = vperm.xlu0 %1390, %v360
      %v1392 = vpop.permute.xlu0 %1391
      %v1395 = vunpack.c.l.s4 839922192
      %v1396 = vunpack.c.0.s8 %v1395
      %v1397 = vlaneseq
      %v1398 = vshrl.u32 %v1397, 7
      %v1399 = vsub.s32 %v1396, %v1398
      %v1400 = vrot.slane %v1392, %v1399
      %1401 = vset.pattern.permute.xlu0 1
      %1402 = vperm.xlu0 %1401, %v361
      %v1403 = vpop.permute.xlu0 %1402
      %v1406 = vunpack.c.l.s4 839922192
      %v1407 = vunpack.c.0.s8 %v1406
      %v1408 = vlaneseq
      %v1409 = vshrl.u32 %v1408, 7
      %v1410 = vsub.s32 %v1407, %v1409
      %v1411 = vrot.slane %v1403, %v1410
      %1412 = vset.pattern.permute.xlu0 1
      %1413 = vperm.xlu0 %1412, %v362
      %v1414 = vpop.permute.xlu0 %1413
      %v1417 = vunpack.c.l.s4 839922192
      %v1418 = vunpack.c.0.s8 %v1417
      %v1419 = vlaneseq
      %v1420 = vshrl.u32 %v1419, 7
      %v1421 = vsub.s32 %v1418, %v1420
      %v1422 = vrot.slane %v1414, %v1421
      %1423 = vset.pattern.permute.xlu0 1
      %1424 = vperm.xlu0 %1423, %v363
      %v1425 = vpop.permute.xlu0 %1424
      %v1428 = vunpack.c.l.s4 839922192
      %v1429 = vunpack.c.0.s8 %v1428
      %v1430 = vlaneseq
      %v1431 = vshrl.u32 %v1430, 7
      %v1432 = vsub.s32 %v1429, %v1431
      %v1433 = vrot.slane %v1425, %v1432
      %1434 = vset.pattern.permute.xlu0 1
      %1435 = vperm.xlu0 %1434, %v364
      %v1436 = vpop.permute.xlu0 %1435
      %v1439 = vunpack.c.l.s4 839922192
      %v1440 = vunpack.c.0.s8 %v1439
      %v1441 = vlaneseq
      %v1442 = vshrl.u32 %v1441, 7
      %v1443 = vsub.s32 %v1440, %v1442
      %v1444 = vrot.slane %v1436, %v1443
      %1445 = vset.pattern.permute.xlu0 1
      %1446 = vperm.xlu0 %1445, %v365
      %v1447 = vpop.permute.xlu0 %1446
      %v1450 = vunpack.c.l.s4 839922192
      %v1451 = vunpack.c.0.s8 %v1450
      %v1452 = vlaneseq
      %v1453 = vshrl.u32 %v1452, 7
      %v1454 = vsub.s32 %v1451, %v1453
      %v1455 = vrot.slane %v1447, %v1454
      %1456 = vset.pattern.permute.xlu0 1
      %1457 = vperm.xlu0 %1456, %v366
      %v1458 = vpop.permute.xlu0 %1457
      %v1461 = vunpack.c.l.s4 839922192
      %v1462 = vunpack.c.0.s8 %v1461
      %v1463 = vlaneseq
      %v1464 = vshrl.u32 %v1463, 7
      %v1465 = vsub.s32 %v1462, %v1464
      %v1466 = vrot.slane %v1458, %v1465
      %1467 = vset.pattern.permute.xlu0 1
      %1468 = vperm.xlu0 %1467, %v367
      %v1469 = vpop.permute.xlu0 %1468
      %v1472 = vunpack.c.l.s4 839922192
      %v1473 = vunpack.c.0.s8 %v1472
      %v1474 = vlaneseq
      %v1475 = vshrl.u32 %v1474, 7
      %v1476 = vsub.s32 %v1473, %v1475
      %v1477 = vrot.slane %v1469, %v1476
      %1478 = vset.pattern.permute.xlu0 1
      %1479 = vperm.xlu0 %1478, %v368
      %v1480 = vpop.permute.xlu0 %1479
      %v1483 = vunpack.c.l.s4 839922192
      %v1484 = vunpack.c.0.s8 %v1483
      %v1485 = vlaneseq
      %v1486 = vshrl.u32 %v1485, 7
      %v1487 = vsub.s32 %v1484, %v1486
      %v1488 = vrot.slane %v1480, %v1487
      %1489 = vset.pattern.permute.xlu0 1
      %1490 = vperm.xlu0 %1489, %v369
      %v1491 = vpop.permute.xlu0 %1490
      %v1494 = vunpack.c.l.s4 839922192
      %v1495 = vunpack.c.0.s8 %v1494
      %v1496 = vlaneseq
      %v1497 = vshrl.u32 %v1496, 7
      %v1498 = vsub.s32 %v1495, %v1497
      %v1499 = vrot.slane %v1491, %v1498
      %1500 = vset.pattern.permute.xlu0 1
      %1501 = vperm.xlu0 %1500, %v370
      %v1502 = vpop.permute.xlu0 %1501
      %v1505 = vunpack.c.l.s4 839922192
      %v1506 = vunpack.c.0.s8 %v1505
      %v1507 = vlaneseq
      %v1508 = vshrl.u32 %v1507, 7
      %v1509 = vsub.s32 %v1506, %v1508
      %v1510 = vrot.slane %v1502, %v1509
      %1511 = vset.pattern.permute.xlu0 1
      %1512 = vperm.xlu0 %1511, %v371
      %v1513 = vpop.permute.xlu0 %1512
      %v1516 = vunpack.c.l.s4 839922192
      %v1517 = vunpack.c.0.s8 %v1516
      %v1518 = vlaneseq
      %v1519 = vshrl.u32 %v1518, 7
      %v1520 = vsub.s32 %v1517, %v1519
      %v1521 = vrot.slane %v1513, %v1520
      %1522 = vset.pattern.permute.xlu0 1
      %1523 = vperm.xlu0 %1522, %v372
      %v1524 = vpop.permute.xlu0 %1523
      %v1527 = vunpack.c.l.s4 839922192
      %v1528 = vunpack.c.0.s8 %v1527
      %v1529 = vlaneseq
      %v1530 = vshrl.u32 %v1529, 7
      %v1531 = vsub.s32 %v1528, %v1530
      %v1532 = vrot.slane %v1524, %v1531
      %1533 = vset.pattern.permute.xlu0 1
      %1534 = vperm.xlu0 %1533, %v373
      %v1535 = vpop.permute.xlu0 %1534
      %v1538 = vunpack.c.l.s4 839922192
      %v1539 = vunpack.c.0.s8 %v1538
      %v1540 = vlaneseq
      %v1541 = vshrl.u32 %v1540, 7
      %v1542 = vsub.s32 %v1539, %v1541
      %v1543 = vrot.slane %v1535, %v1542
      %1544 = vset.pattern.permute.xlu0 1
      %1545 = vperm.xlu0 %1544, %v374
      %v1546 = vpop.permute.xlu0 %1545
      %v1549 = vunpack.c.l.s4 839922192
      %v1550 = vunpack.c.0.s8 %v1549
      %v1551 = vlaneseq
      %v1552 = vshrl.u32 %v1551, 7
      %v1553 = vsub.s32 %v1550, %v1552
      %v1554 = vrot.slane %v1546, %v1553
      %1555 = vset.pattern.permute.xlu0 1
      %1556 = vperm.xlu0 %1555, %v375
      %v1557 = vpop.permute.xlu0 %1556
      %v1560 = vunpack.c.l.s4 839922192
      %v1561 = vunpack.c.0.s8 %v1560
      %v1562 = vlaneseq
      %v1563 = vshrl.u32 %v1562, 7
      %v1564 = vsub.s32 %v1561, %v1563
      %v1565 = vrot.slane %v1557, %v1564
      %1566 = vset.pattern.permute.xlu0 1
      %1567 = vperm.xlu0 %1566, %v376
      %v1568 = vpop.permute.xlu0 %1567
      %v1571 = vunpack.c.l.s4 839922192
      %v1572 = vunpack.c.0.s8 %v1571
      %v1573 = vlaneseq
      %v1574 = vshrl.u32 %v1573, 7
      %v1575 = vsub.s32 %v1572, %v1574
      %v1576 = vrot.slane %v1568, %v1575
      %1577 = vset.pattern.permute.xlu0 1
      %1578 = vperm.xlu0 %1577, %v377
      %v1579 = vpop.permute.xlu0 %1578
      %v1582 = vunpack.c.l.s4 839922192
      %v1583 = vunpack.c.0.s8 %v1582
      %v1584 = vlaneseq
      %v1585 = vshrl.u32 %v1584, 7
      %v1586 = vsub.s32 %v1583, %v1585
      %v1587 = vrot.slane %v1579, %v1586
      %1588 = vset.pattern.permute.xlu0 1
      %1589 = vperm.xlu0 %1588, %v378
      %v1590 = vpop.permute.xlu0 %1589
      %v1593 = vunpack.c.l.s4 839922192
      %v1594 = vunpack.c.0.s8 %v1593
      %v1595 = vlaneseq
      %v1596 = vshrl.u32 %v1595, 7
      %v1597 = vsub.s32 %v1594, %v1596
      %v1598 = vrot.slane %v1590, %v1597
      %1599 = vset.pattern.permute.xlu0 1
      %1600 = vperm.xlu0 %1599, %v379
      %v1601 = vpop.permute.xlu0 %1600
      %v1604 = vunpack.c.l.s4 839922192
      %v1605 = vunpack.c.0.s8 %v1604
      %v1606 = vlaneseq
      %v1607 = vshrl.u32 %v1606, 7
      %v1608 = vsub.s32 %v1605, %v1607
      %v1609 = vrot.slane %v1601, %v1608
      %1610 = vset.pattern.permute.xlu0 1
      %1611 = vperm.xlu0 %1610, %v380
      %v1612 = vpop.permute.xlu0 %1611
      %v1615 = vunpack.c.l.s4 839922192
      %v1616 = vunpack.c.0.s8 %v1615
      %v1617 = vlaneseq
      %v1618 = vshrl.u32 %v1617, 7
      %v1619 = vsub.s32 %v1616, %v1618
      %v1620 = vrot.slane %v1612, %v1619
      %1621 = vset.pattern.permute.xlu0 1
      %1622 = vperm.xlu0 %1621, %v381
      %v1623 = vpop.permute.xlu0 %1622
      %v1626 = vunpack.c.l.s4 839922192
      %v1627 = vunpack.c.0.s8 %v1626
      %v1628 = vlaneseq
      %v1629 = vshrl.u32 %v1628, 7
      %v1630 = vsub.s32 %v1627, %v1629
      %v1631 = vrot.slane %v1623, %v1630
      %1632 = vset.pattern.permute.xlu0 1
      %1633 = vperm.xlu0 %1632, %v382
      %v1634 = vpop.permute.xlu0 %1633
      %v1637 = vunpack.c.l.s4 839922192
      %v1638 = vunpack.c.0.s8 %v1637
      %v1639 = vlaneseq
      %v1640 = vshrl.u32 %v1639, 7
      %v1641 = vsub.s32 %v1638, %v1640
      %v1642 = vrot.slane %v1634, %v1641
      %vm1675 = vcmask 1040384
      %vm1676 = vcmask 1044484
      %vm1677 = vmor %vm1675, %vm1676
      %v1678 = vrot.slane %v1301, 7
      %v1679 = vrot.slane %v1678, 4
      %v1680 = vrot.slane %v1312, 7
      %v1681 = vsel %vm1677, %v1679, %v1680
      %v1682 = vrot.slane %v1680, 4
      %v1683 = vrot.slane %v1323, 7
      %v1684 = vsel %vm1677, %v1682, %v1683
      %v1685 = vrot.slane %v1683, 4
      %v1686 = vrot.slane %v1334, 7
      %v1687 = vsel %vm1677, %v1685, %v1686
      %v1688 = vrot.slane %v1686, 4
      %v1689 = vrot.slane %v1345, 7
      %v1690 = vsel %vm1677, %v1688, %v1689
      %v1691 = vrot.slane %v1689, 4
      %v1692 = vrot.slane %v1356, 7
      %v1693 = vsel %vm1677, %v1691, %v1692
      %v1694 = vrot.slane %v1692, 4
      %v1695 = vrot.slane %v1367, 7
      %v1696 = vsel %vm1677, %v1694, %v1695
      %v1697 = vrot.slane %v1695, 4
      %v1698 = vrot.slane %v1378, 7
      %v1699 = vsel %vm1677, %v1697, %v1698
      %v1700 = vrot.slane %v1698, 4
      %v1701 = vrot.slane %v1389, 7
      %v1702 = vsel %vm1677, %v1700, %v1701
      %v1703 = vrot.slane %v1701, 4
      %v1704 = vrot.slane %v1400, 7
      %v1705 = vsel %vm1677, %v1703, %v1704
      %v1706 = vrot.slane %v1704, 4
      %v1707 = vrot.slane %v1411, 7
      %v1708 = vsel %vm1677, %v1706, %v1707
      %v1709 = vrot.slane %v1707, 4
      %v1710 = vrot.slane %v1422, 7
      %v1711 = vsel %vm1677, %v1709, %v1710
      %v1712 = vrot.slane %v1710, 4
      %v1713 = vrot.slane %v1433, 7
      %v1714 = vsel %vm1677, %v1712, %v1713
      %v1715 = vrot.slane %v1713, 4
      %v1716 = vrot.slane %v1444, 7
      %v1717 = vsel %vm1677, %v1715, %v1716
      %v1718 = vrot.slane %v1716, 4
      %v1719 = vrot.slane %v1455, 7
      %v1720 = vsel %vm1677, %v1718, %v1719
      %v1721 = vrot.slane %v1719, 4
      %v1722 = vrot.slane %v1466, 7
      %v1723 = vsel %vm1677, %v1721, %v1722
      %v1724 = vrot.slane %v1722, 4
      %v1725 = vrot.slane %v1477, 7
      %v1726 = vsel %vm1677, %v1724, %v1725
      %v1727 = vrot.slane %v1725, 4
      %v1728 = vrot.slane %v1488, 7
      %v1729 = vsel %vm1677, %v1727, %v1728
      %v1730 = vrot.slane %v1728, 4
      %v1731 = vrot.slane %v1499, 7
      %v1732 = vsel %vm1677, %v1730, %v1731
      %v1733 = vrot.slane %v1731, 4
      %v1734 = vrot.slane %v1510, 7
      %v1735 = vsel %vm1677, %v1733, %v1734
      %v1736 = vrot.slane %v1734, 4
      %v1737 = vrot.slane %v1521, 7
      %v1738 = vsel %vm1677, %v1736, %v1737
      %v1739 = vrot.slane %v1737, 4
      %v1740 = vrot.slane %v1532, 7
      %v1741 = vsel %vm1677, %v1739, %v1740
      %v1742 = vrot.slane %v1740, 4
      %v1743 = vrot.slane %v1543, 7
      %v1744 = vsel %vm1677, %v1742, %v1743
      %v1745 = vrot.slane %v1743, 4
      %v1746 = vrot.slane %v1554, 7
      %v1747 = vsel %vm1677, %v1745, %v1746
      %v1748 = vrot.slane %v1746, 4
      %v1749 = vrot.slane %v1565, 7
      %v1750 = vsel %vm1677, %v1748, %v1749
      %v1751 = vrot.slane %v1749, 4
      %v1752 = vrot.slane %v1576, 7
      %v1753 = vsel %vm1677, %v1751, %v1752
      %v1754 = vrot.slane %v1752, 4
      %v1755 = vrot.slane %v1587, 7
      %v1756 = vsel %vm1677, %v1754, %v1755
      %v1757 = vrot.slane %v1755, 4
      %v1758 = vrot.slane %v1598, 7
      %v1759 = vsel %vm1677, %v1757, %v1758
      %v1760 = vrot.slane %v1758, 4
      %v1761 = vrot.slane %v1609, 7
      %v1762 = vsel %vm1677, %v1760, %v1761
      %v1763 = vrot.slane %v1761, 4
      %v1764 = vrot.slane %v1620, 7
      %v1765 = vsel %vm1677, %v1763, %v1764
      %v1766 = vrot.slane %v1764, 4
      %v1767 = vrot.slane %v1631, 7
      %v1768 = vsel %vm1677, %v1766, %v1767
      %v1769 = vrot.slane %v1767, 4
      %v1770 = vrot.slane %v1642, 7
      %v1771 = vsel %vm1677, %v1769, %v1770
      %v1772 = vrot.slane %v1770, 4
      %v1806 = vmul.bf16 %v1258, %v1678
      %v1807 = vmul.bf16 %v1259, %v1681
      %v1808 = vmul.bf16 %v1260, %v1684
      %v1809 = vmul.bf16 %v1261, %v1687
      %v1810 = vmul.bf16 %v1262, %v1690
      %v1811 = vmul.bf16 %v1263, %v1693
      %v1812 = vmul.bf16 %v1264, %v1696
      %v1813 = vmul.bf16 %v1265, %v1699
      %v1814 = vmul.bf16 %v1266, %v1702
      %v1815 = vmul.bf16 %v1267, %v1705
      %v1816 = vmul.bf16 %v1268, %v1708
      %v1817 = vmul.bf16 %v1269, %v1711
      %v1818 = vmul.bf16 %v1270, %v1714
      %v1819 = vmul.bf16 %v1271, %v1717
      %v1820 = vmul.bf16 %v1272, %v1720
      %v1821 = vmul.bf16 %v1273, %v1723
      %v1822 = vmul.bf16 %v1274, %v1726
      %v1823 = vmul.bf16 %v1275, %v1729
      %v1824 = vmul.bf16 %v1276, %v1732
      %v1825 = vmul.bf16 %v1277, %v1735
      %v1826 = vmul.bf16 %v1278, %v1738
      %v1827 = vmul.bf16 %v1279, %v1741
      %v1828 = vmul.bf16 %v1280, %v1744
      %v1829 = vmul.bf16 %v1281, %v1747
      %v1830 = vmul.bf16 %v1282, %v1750
      %v1831 = vmul.bf16 %v1283, %v1753
      %v1832 = vmul.bf16 %v1284, %v1756
      %v1833 = vmul.bf16 %v1285, %v1759
      %v1834 = vmul.bf16 %v1286, %v1762
      %v1835 = vmul.bf16 %v1287, %v1765
      %v1836 = vmul.bf16 %v1288, %v1768
      %v1837 = vmul.bf16 %v1289, %v1771
      %v1838 = vmul.bf16 %v1290, %v1772
      %v1872 = vunpack.c.l.b16 %v1806
      %v1873 = vunpack.c.l.b16 %v1807
      %v1874 = vunpack.c.l.b16 %v1808
      %v1875 = vunpack.c.l.b16 %v1809
      %v1876 = vunpack.c.l.b16 %v1810
      %v1877 = vunpack.c.l.b16 %v1811
      %v1878 = vunpack.c.l.b16 %v1812
      %v1879 = vunpack.c.l.b16 %v1813
      %v1880 = vunpack.c.l.b16 %v1814
      %v1881 = vunpack.c.l.b16 %v1815
      %v1882 = vunpack.c.l.b16 %v1816
      %v1883 = vunpack.c.l.b16 %v1817
      %v1884 = vunpack.c.l.b16 %v1818
      %v1885 = vunpack.c.l.b16 %v1819
      %v1886 = vunpack.c.l.b16 %v1820
      %v1887 = vunpack.c.l.b16 %v1821
      %v1888 = vunpack.c.l.b16 %v1822
      %v1889 = vunpack.c.l.b16 %v1823
      %v1890 = vunpack.c.l.b16 %v1824
      %v1891 = vunpack.c.l.b16 %v1825
      %v1892 = vunpack.c.l.b16 %v1826
      %v1893 = vunpack.c.l.b16 %v1827
      %v1894 = vunpack.c.l.b16 %v1828
      %v1895 = vunpack.c.l.b16 %v1829
      %v1896 = vunpack.c.l.b16 %v1830
      %v1897 = vunpack.c.l.b16 %v1831
      %v1898 = vunpack.c.l.b16 %v1832
      %v1899 = vunpack.c.l.b16 %v1833
      %v1900 = vunpack.c.l.b16 %v1834
      %v1901 = vunpack.c.l.b16 %v1835
      %v1902 = vunpack.c.l.b16 %v1836
      %v1903 = vunpack.c.l.b16 %v1837
      %v1904 = vunpack.c.l.b16 %v1838
      %v1905 = vpack.c.b16 %v1873, %v1872
      %v1906 = vpack.c.b16 %v1875, %v1874
      %v1907 = vpack.c.b16 %v1877, %v1876
      %v1908 = vpack.c.b16 %v1879, %v1878
      %v1909 = vpack.c.b16 %v1881, %v1880
      %v1910 = vpack.c.b16 %v1883, %v1882
      %v1911 = vpack.c.b16 %v1885, %v1884
      %v1912 = vpack.c.b16 %v1887, %v1886
      %v1913 = vpack.c.b16 %v1889, %v1888
      %v1914 = vpack.c.b16 %v1891, %v1890
      %v1915 = vpack.c.b16 %v1893, %v1892
      %v1916 = vpack.c.b16 %v1895, %v1894
      %v1917 = vpack.c.b16 %v1897, %v1896
      %v1918 = vpack.c.b16 %v1899, %v1898
      %v1919 = vpack.c.b16 %v1901, %v1900
      %v1920 = vpack.c.b16 %v1903, %v1902
      %v1921 = vpack.c.b16 %v1904, %v1904
      %vm1922 = vcmask 1046528
      %v1923 = vrot.slane %v1905, 1
      %v1924 = vrot.slane %v1906, 1
      %v1925 = vsel %vm1922, %v1923, %v1924
      %v1926 = vrot.slane %v1907, 1
      %v1927 = vsel %vm1922, %v1924, %v1926
      %v1928 = vrot.slane %v1908, 1
      %v1929 = vsel %vm1922, %v1926, %v1928
      %v1930 = vrot.slane %v1909, 1
      %v1931 = vsel %vm1922, %v1928, %v1930
      %v1932 = vrot.slane %v1910, 1
      %v1933 = vsel %vm1922, %v1930, %v1932
      %v1934 = vrot.slane %v1911, 1
      %v1935 = vsel %vm1922, %v1932, %v1934
      %v1936 = vrot.slane %v1912, 1
      %v1937 = vsel %vm1922, %v1934, %v1936
      %v1938 = vrot.slane %v1913, 1
      %v1939 = vsel %vm1922, %v1936, %v1938
      %v1940 = vrot.slane %v1914, 1
      %v1941 = vsel %vm1922, %v1938, %v1940
      %v1942 = vrot.slane %v1915, 1
      %v1943 = vsel %vm1922, %v1940, %v1942
      %v1944 = vrot.slane %v1916, 1
      %v1945 = vsel %vm1922, %v1942, %v1944
      %v1946 = vrot.slane %v1917, 1
      %v1947 = vsel %vm1922, %v1944, %v1946
      %v1948 = vrot.slane %v1918, 1
      %v1949 = vsel %vm1922, %v1946, %v1948
      %v1950 = vrot.slane %v1919, 1
      %v1951 = vsel %vm1922, %v1948, %v1950
      %v1952 = vrot.slane %v1920, 1
      %v1953 = vsel %vm1922, %v1950, %v1952
      %v1954 = vrot.slane %v1921, 1
      %v1955 = vsel %vm1922, %v1952, %v1954
      %1956 = vrot.lane.b32.xlu0 %v1925, 32
      %v1957 = vpop.permute.xlu0 %1956
      %1958 = vrot.lane.b32.xlu0 %v1927, 32
      %v1959 = vpop.permute.xlu0 %1958
      %1960 = vrot.lane.b32.xlu0 %v1929, 32
      %v1961 = vpop.permute.xlu0 %1960
      %1962 = vrot.lane.b32.xlu0 %v1931, 32
      %v1963 = vpop.permute.xlu0 %1962
      %1964 = vrot.lane.b32.xlu0 %v1933, 32
      %v1965 = vpop.permute.xlu0 %1964
      %1966 = vrot.lane.b32.xlu0 %v1935, 32
      %v1967 = vpop.permute.xlu0 %1966
      %1968 = vrot.lane.b32.xlu0 %v1937, 32
      %v1969 = vpop.permute.xlu0 %1968
      %1970 = vrot.lane.b32.xlu0 %v1939, 32
      %v1971 = vpop.permute.xlu0 %1970
      %1972 = vrot.lane.b32.xlu0 %v1941, 32
      %v1973 = vpop.permute.xlu0 %1972
      %1974 = vrot.lane.b32.xlu0 %v1943, 32
      %v1975 = vpop.permute.xlu0 %1974
      %1976 = vrot.lane.b32.xlu0 %v1945, 32
      %v1977 = vpop.permute.xlu0 %1976
      %1978 = vrot.lane.b32.xlu0 %v1947, 32
      %v1979 = vpop.permute.xlu0 %1978
      %1980 = vrot.lane.b32.xlu0 %v1949, 32
      %v1981 = vpop.permute.xlu0 %1980
      %1982 = vrot.lane.b32.xlu0 %v1951, 32
      %v1983 = vpop.permute.xlu0 %1982
      %1984 = vrot.lane.b32.xlu0 %v1953, 32
      %v1985 = vpop.permute.xlu0 %1984
      %1986 = vrot.lane.b32.xlu0 %v1955, 32
      %v1987 = vpop.permute.xlu0 %1986
      %vm2004 = vcmask 392448
      %2005 = vst.msk [vmem:[#allocation2] sm:$0xff] %vm2004, %v1957
      %2006 = vst.msk [vmem:[#allocation2 + $0x10] sm:$0xff] %vm2004, %v1959
      %2007 = vst.msk [vmem:[#allocation2 + $0x20] sm:$0xff] %vm2004, %v1961
      %2008 = vst.msk [vmem:[#allocation2 + $0x30] sm:$0xff] %vm2004, %v1963
      %2009 = vst.msk [vmem:[#allocation2 + $0x40] sm:$0xff] %vm2004, %v1965
      %2010 = vst.msk [vmem:[#allocation2 + $0x50] sm:$0xff] %vm2004, %v1967
      %2011 = vst.msk [vmem:[#allocation2 + $0x60] sm:$0xff] %vm2004, %v1969
      %2012 = vst.msk [vmem:[#allocation2 + $0x70] sm:$0xff] %vm2004, %v1971
      %2013 = vst.msk [vmem:[#allocation2 + $0x80] sm:$0xff] %vm2004, %v1973
      %2014 = vst.msk [vmem:[#allocation2 + $0x90] sm:$0xff] %vm2004, %v1975
      %2015 = vst.msk [vmem:[#allocation2 + $0xa0] sm:$0xff] %vm2004, %v1977
      %2016 = vst.msk [vmem:[#allocation2 + $0xb0] sm:$0xff] %vm2004, %v1979
      %2017 = vst.msk [vmem:[#allocation2 + $0xc0] sm:$0xff] %vm2004, %v1981
      %2018 = vst.msk [vmem:[#allocation2 + $0xd0] sm:$0xff] %vm2004, %v1983
      %2019 = vst.msk [vmem:[#allocation2 + $0xe0] sm:$0xff] %vm2004, %v1985
      %2020 = vst.msk [vmem:[#allocation2 + $0xf0] sm:$0xff] %vm2004, %v1987
      %v2021 = vld [vmem:[%s330 + $0x8] sm:$0xf]
      %v2022 = vld [vmem:[%s330 + $0xc] sm:$0xf]
      %v2023 = vld [vmem:[%s330 + $0x10] sm:$0xf]
      %v2024 = vld [vmem:[%s330 + $0x14] sm:$0xf]
      %v2025 = vld [vmem:[%s330 + $0x18] sm:$0xf]
      %v2026 = vld [vmem:[%s330 + $0x1c] sm:$0xf]
      %v2027 = vld [vmem:[%s330 + $0x20] sm:$0xf]
      %v2028 = vld [vmem:[%s330 + $0x24] sm:$0xf]
      %v2029 = vld [vmem:[%s330 + $0x28] sm:$0xf]
      %v2030 = vld [vmem:[%s330 + $0x2c] sm:$0xf]
      %v2031 = vld [vmem:[%s330 + $0x30] sm:$0xf]
      %v2032 = vld [vmem:[%s330 + $0x34] sm:$0xf]
      %v2033 = vld [vmem:[%s330 + $0x38] sm:$0xf]
      %v2034 = vld [vmem:[%s330 + $0x3c] sm:$0xf]
      %v2035 = vld [vmem:[%s330 + $0x40] sm:$0xf]
      %v2036 = vld [vmem:[%s330 + $0x44] sm:$0xf]
      %v2037 = vld [vmem:[%s330 + $0x48] sm:$0xf]
      %v2038 = vld [vmem:[%s330 + $0x4c] sm:$0xf]
      %v2039 = vld [vmem:[%s330 + $0x50] sm:$0xf]
      %v2040 = vld [vmem:[%s330 + $0x54] sm:$0xf]
      %v2041 = vld [vmem:[%s330 + $0x58] sm:$0xf]
      %v2042 = vld [vmem:[%s330 + $0x5c] sm:$0xf]
      %v2043 = vld [vmem:[%s330 + $0x60] sm:$0xf]
      %v2044 = vld [vmem:[%s330 + $0x64] sm:$0xf]
      %v2045 = vld [vmem:[%s330 + $0x68] sm:$0xf]
      %v2046 = vld [vmem:[%s330 + $0x6c] sm:$0xf]
      %v2047 = vld [vmem:[%s330 + $0x70] sm:$0xf]
      %v2048 = vld [vmem:[%s330 + $0x74] sm:$0xf]
      %v2049 = vld [vmem:[%s330 + $0x78] sm:$0xf]
      %v2050 = vld [vmem:[%s330 + $0x7c] sm:$0xf]
      %v2051 = vld [vmem:[%s330 + $0x80] sm:$0xf]
      %v2052 = vld [vmem:[%s330 + $0x84] sm:$0xf]
      %v2053 = vmul.bf16 %v2021, %v426
      %v2054 = vmul.bf16 %v2022, %v438
      %v2055 = vmul.bf16 %v2023, %v450
      %v2056 = vmul.bf16 %v2024, %v462
      %v2057 = vmul.bf16 %v2025, %v474
      %v2058 = vmul.bf16 %v2026, %v486
      %v2059 = vmul.bf16 %v2027, %v498
      %v2060 = vmul.bf16 %v2028, %v510
      %v2061 = vmul.bf16 %v2029, %v522
      %v2062 = vmul.bf16 %v2030, %v534
      %v2063 = vmul.bf16 %v2031, %v546
      %v2064 = vmul.bf16 %v2032, %v558
      %v2065 = vmul.bf16 %v2033, %v570
      %v2066 = vmul.bf16 %v2034, %v582
      %v2067 = vmul.bf16 %v2035, %v594
      %v2068 = vmul.bf16 %v2036, %v606
      %v2069 = vmul.bf16 %v2037, %v618
      %v2070 = vmul.bf16 %v2038, %v630
      %v2071 = vmul.bf16 %v2039, %v642
      %v2072 = vmul.bf16 %v2040, %v654
      %v2073 = vmul.bf16 %v2041, %v666
      %v2074 = vmul.bf16 %v2042, %v678
      %v2075 = vmul.bf16 %v2043, %v690
      %v2076 = vmul.bf16 %v2044, %v702
      %v2077 = vmul.bf16 %v2045, %v714
      %v2078 = vmul.bf16 %v2046, %v726
      %v2079 = vmul.bf16 %v2047, %v738
      %v2080 = vmul.bf16 %v2048, %v750
      %v2081 = vmul.bf16 %v2049, %v762
      %v2082 = vmul.bf16 %v2050, %v774
      %v2083 = vmul.bf16 %v2051, %v786
      %v2084 = vmul.bf16 %v2052, %v798
      %v2117 = vunpack.c.l.b16 %v2053
      %v2118 = vunpack.c.l.b16 %v2054
      %v2119 = vunpack.c.l.b16 %v2055
      %v2120 = vunpack.c.l.b16 %v2056
      %v2121 = vunpack.c.l.b16 %v2057
      %v2122 = vunpack.c.l.b16 %v2058
      %v2123 = vunpack.c.l.b16 %v2059
      %v2124 = vunpack.c.l.b16 %v2060
      %v2125 = vunpack.c.l.b16 %v2061
      %v2126 = vunpack.c.l.b16 %v2062
      %v2127 = vunpack.c.l.b16 %v2063
      %v2128 = vunpack.c.l.b16 %v2064
      %v2129 = vunpack.c.l.b16 %v2065
      %v2130 = vunpack.c.l.b16 %v2066
      %v2131 = vunpack.c.l.b16 %v2067
      %v2132 = vunpack.c.l.b16 %v2068
      %v2133 = vunpack.c.l.b16 %v2069
      %v2134 = vunpack.c.l.b16 %v2070
      %v2135 = vunpack.c.l.b16 %v2071
      %v2136 = vunpack.c.l.b16 %v2072
      %v2137 = vunpack.c.l.b16 %v2073
      %v2138 = vunpack.c.l.b16 %v2074
      %v2139 = vunpack.c.l.b16 %v2075
      %v2140 = vunpack.c.l.b16 %v2076
      %v2141 = vunpack.c.l.b16 %v2077
      %v2142 = vunpack.c.l.b16 %v2078
      %v2143 = vunpack.c.l.b16 %v2079
      %v2144 = vunpack.c.l.b16 %v2080
      %v2145 = vunpack.c.l.b16 %v2081
      %v2146 = vunpack.c.l.b16 %v2082
      %v2147 = vunpack.c.l.b16 %v2083
      %v2148 = vunpack.c.l.b16 %v2084
      %v2149 = vpack.c.b16 %v2118, %v2117
      %v2150 = vpack.c.b16 %v2120, %v2119
      %v2151 = vpack.c.b16 %v2122, %v2121
      %v2152 = vpack.c.b16 %v2124, %v2123
      %v2153 = vpack.c.b16 %v2126, %v2125
      %v2154 = vpack.c.b16 %v2128, %v2127
      %v2155 = vpack.c.b16 %v2130, %v2129
      %v2156 = vpack.c.b16 %v2132, %v2131
      %v2157 = vpack.c.b16 %v2134, %v2133
      %v2158 = vpack.c.b16 %v2136, %v2135
      %v2159 = vpack.c.b16 %v2138, %v2137
      %v2160 = vpack.c.b16 %v2140, %v2139
      %v2161 = vpack.c.b16 %v2142, %v2141
      %v2162 = vpack.c.b16 %v2144, %v2143
      %v2163 = vpack.c.b16 %v2146, %v2145
      %v2164 = vpack.c.b16 %v2148, %v2147
      %2165 = vrot.lane.b32.xlu0 %v2149, 48
      %v2166 = vpop.permute.xlu0 %2165
      %2167 = vrot.lane.b32.xlu0 %v2150, 48
      %v2168 = vpop.permute.xlu0 %2167
      %2169 = vrot.lane.b32.xlu0 %v2151, 48
      %v2170 = vpop.permute.xlu0 %2169
      %2171 = vrot.lane.b32.xlu0 %v2152, 48
      %v2172 = vpop.permute.xlu0 %2171
      %2173 = vrot.lane.b32.xlu0 %v2153, 48
      %v2174 = vpop.permute.xlu0 %2173
      %2175 = vrot.lane.b32.xlu0 %v2154, 48
      %v2176 = vpop.permute.xlu0 %2175
      %2177 = vrot.lane.b32.xlu0 %v2155, 48
      %v2178 = vpop.permute.xlu0 %2177
      %2179 = vrot.lane.b32.xlu0 %v2156, 48
      %v2180 = vpop.permute.xlu0 %2179
      %2181 = vrot.lane.b32.xlu0 %v2157, 48
      %v2182 = vpop.permute.xlu0 %2181
      %2183 = vrot.lane.b32.xlu0 %v2158, 48
      %v2184 = vpop.permute.xlu0 %2183
      %2185 = vrot.lane.b32.xlu0 %v2159, 48
      %v2186 = vpop.permute.xlu0 %2185
      %2187 = vrot.lane.b32.xlu0 %v2160, 48
      %v2188 = vpop.permute.xlu0 %2187
      %2189 = vrot.lane.b32.xlu0 %v2161, 48
      %v2190 = vpop.permute.xlu0 %2189
      %2191 = vrot.lane.b32.xlu0 %v2162, 48
      %v2192 = vpop.permute.xlu0 %2191
      %2193 = vrot.lane.b32.xlu0 %v2163, 48
      %v2194 = vpop.permute.xlu0 %2193
      %2195 = vrot.lane.b32.xlu0 %v2164, 48
      %v2196 = vpop.permute.xlu0 %2195
      %vm2213 = vcmask 523648
      %2214 = vst.msk [vmem:[#allocation2] sm:$0xff] %vm2213, %v2166
      %2215 = vst.msk [vmem:[#allocation2 + $0x10] sm:$0xff] %vm2213, %v2168
      %2216 = vst.msk [vmem:[#allocation2 + $0x20] sm:$0xff] %vm2213, %v2170
      %2217 = vst.msk [vmem:[#allocation2 + $0x30] sm:$0xff] %vm2213, %v2172
      %2218 = vst.msk [vmem:[#allocation2 + $0x40] sm:$0xff] %vm2213, %v2174
      %2219 = vst.msk [vmem:[#allocation2 + $0x50] sm:$0xff] %vm2213, %v2176
      %2220 = vst.msk [vmem:[#allocation2 + $0x60] sm:$0xff] %vm2213, %v2178
      %2221 = vst.msk [vmem:[#allocation2 + $0x70] sm:$0xff] %vm2213, %v2180
      %2222 = vst.msk [vmem:[#allocation2 + $0x80] sm:$0xff] %vm2213, %v2182
      %2223 = vst.msk [vmem:[#allocation2 + $0x90] sm:$0xff] %vm2213, %v2184
      %2224 = vst.msk [vmem:[#allocation2 + $0xa0] sm:$0xff] %vm2213, %v2186
      %2225 = vst.msk [vmem:[#allocation2 + $0xb0] sm:$0xff] %vm2213, %v2188
      %2226 = vst.msk [vmem:[#allocation2 + $0xc0] sm:$0xff] %vm2213, %v2190
      %2227 = vst.msk [vmem:[#allocation2 + $0xd0] sm:$0xff] %vm2213, %v2192
      %2228 = vst.msk [vmem:[#allocation2 + $0xe0] sm:$0xff] %vm2213, %v2194
      %2229 = vst.msk [vmem:[#allocation2 + $0xf0] sm:$0xff] %vm2213, %v2196
      %v2230 = vld [vmem:[%s330 + $0x8] sm:$0xf]
      %v2231 = vld [vmem:[%s330 + $0xc] sm:$0xf]
      %v2232 = vld [vmem:[%s330 + $0x10] sm:$0xf]
      %v2233 = vld [vmem:[%s330 + $0x14] sm:$0xf]
      %v2234 = vld [vmem:[%s330 + $0x18] sm:$0xf]
      %v2235 = vld [vmem:[%s330 + $0x1c] sm:$0xf]
      %v2236 = vld [vmem:[%s330 + $0x20] sm:$0xf]
      %v2237 = vld [vmem:[%s330 + $0x24] sm:$0xf]
      %v2238 = vld [vmem:[%s330 + $0x28] sm:$0xf]
      %v2239 = vld [vmem:[%s330 + $0x2c] sm:$0xf]
      %v2240 = vld [vmem:[%s330 + $0x30] sm:$0xf]
      %v2241 = vld [vmem:[%s330 + $0x34] sm:$0xf]
      %v2242 = vld [vmem:[%s330 + $0x38] sm:$0xf]
      %v2243 = vld [vmem:[%s330 + $0x3c] sm:$0xf]
      %v2244 = vld [vmem:[%s330 + $0x40] sm:$0xf]
      %v2245 = vld [vmem:[%s330 + $0x44] sm:$0xf]
      %v2246 = vld [vmem:[%s330 + $0x48] sm:$0xf]
      %v2247 = vld [vmem:[%s330 + $0x4c] sm:$0xf]
      %v2248 = vld [vmem:[%s330 + $0x50] sm:$0xf]
      %v2249 = vld [vmem:[%s330 + $0x54] sm:$0xf]
      %v2250 = vld [vmem:[%s330 + $0x58] sm:$0xf]
      %v2251 = vld [vmem:[%s330 + $0x5c] sm:$0xf]
      %v2252 = vld [vmem:[%s330 + $0x60] sm:$0xf]
      %v2253 = vld [vmem:[%s330 + $0x64] sm:$0xf]
      %v2254 = vld [vmem:[%s330 + $0x68] sm:$0xf]
      %v2255 = vld [vmem:[%s330 + $0x6c] sm:$0xf]
      %v2256 = vld [vmem:[%s330 + $0x70] sm:$0xf]
      %v2257 = vld [vmem:[%s330 + $0x74] sm:$0xf]
      %v2258 = vld [vmem:[%s330 + $0x78] sm:$0xf]
      %v2259 = vld [vmem:[%s330 + $0x7c] sm:$0xf]
      %v2260 = vld [vmem:[%s330 + $0x80] sm:$0xf]
      %v2261 = vld [vmem:[%s330 + $0x84] sm:$0xf]
      %v2262 = vld [vmem:[%s330 + $0x88] sm:$0x1]
      %v2296 = vunpack.c.l.b16 %v2230
      %v2297 = vunpack.c.l.b16 %v2231
      %v2298 = vunpack.c.l.b16 %v2232
      %v2299 = vunpack.c.l.b16 %v2233
      %v2300 = vunpack.c.l.b16 %v2234
      %v2301 = vunpack.c.l.b16 %v2235
      %v2302 = vunpack.c.l.b16 %v2236
      %v2303 = vunpack.c.l.b16 %v2237
      %v2304 = vunpack.c.l.b16 %v2238
      %v2305 = vunpack.c.l.b16 %v2239
      %v2306 = vunpack.c.l.b16 %v2240
      %v2307 = vunpack.c.l.b16 %v2241
      %v2308 = vunpack.c.l.b16 %v2242
      %v2309 = vunpack.c.l.b16 %v2243
      %v2310 = vunpack.c.l.b16 %v2244
      %v2311 = vunpack.c.l.b16 %v2245
      %v2312 = vunpack.c.l.b16 %v2246
      %v2313 = vunpack.c.l.b16 %v2247
      %v2314 = vunpack.c.l.b16 %v2248
      %v2315 = vunpack.c.l.b16 %v2249
      %v2316 = vunpack.c.l.b16 %v2250
      %v2317 = vunpack.c.l.b16 %v2251
      %v2318 = vunpack.c.l.b16 %v2252
      %v2319 = vunpack.c.l.b16 %v2253
      %v2320 = vunpack.c.l.b16 %v2254
      %v2321 = vunpack.c.l.b16 %v2255
      %v2322 = vunpack.c.l.b16 %v2256
      %v2323 = vunpack.c.l.b16 %v2257
      %v2324 = vunpack.c.l.b16 %v2258
      %v2325 = vunpack.c.l.b16 %v2259
      %v2326 = vunpack.c.l.b16 %v2260
      %v2327 = vunpack.c.l.b16 %v2261
      %v2328 = vunpack.c.l.b16 %v2262
      %v2329 = vpack.c.b16 %v2297, %v2296
      %v2330 = vpack.c.b16 %v2299, %v2298
      %v2331 = vpack.c.b16 %v2301, %v2300
      %v2332 = vpack.c.b16 %v2303, %v2302
      %v2333 = vpack.c.b16 %v2305, %v2304
      %v2334 = vpack.c.b16 %v2307, %v2306
      %v2335 = vpack.c.b16 %v2309, %v2308
      %v2336 = vpack.c.b16 %v2311, %v2310
      %v2337 = vpack.c.b16 %v2313, %v2312
      %v2338 = vpack.c.b16 %v2315, %v2314
      %v2339 = vpack.c.b16 %v2317, %v2316
      %v2340 = vpack.c.b16 %v2319, %v2318
      %v2341 = vpack.c.b16 %v2321, %v2320
      %v2342 = vpack.c.b16 %v2323, %v2322
      %v2343 = vpack.c.b16 %v2325, %v2324
      %v2344 = vpack.c.b16 %v2327, %v2326
      %v2345 = vpack.c.b16 %v2328, %v2328
      %v2347 = vshrl.u32 %v2329, 16
      %v2349 = vshll.u32 %v2329, 16
      %v2351 = vrot.slane %v2349, 1
      %v2352 = vor.u32 %v2347, %v2351
      %v2354 = vshll.u32 %v2330, 16
      %v2356 = vrot.slane %v2354, 1
      %v2357 = vsel %vm1060, %v2352, %v2356
      %v2358 = vshrl.u32 %v2330, 16
      %v2360 = vor.u32 %v2358, %v2356
      %v2362 = vshll.u32 %v2331, 16
      %v2364 = vrot.slane %v2362, 1
      %v2365 = vsel %vm1060, %v2360, %v2364
      %v2366 = vshrl.u32 %v2331, 16
      %v2368 = vor.u32 %v2366, %v2364
      %v2370 = vshll.u32 %v2332, 16
      %v2372 = vrot.slane %v2370, 1
      %v2373 = vsel %vm1060, %v2368, %v2372
      %v2374 = vshrl.u32 %v2332, 16
      %v2376 = vor.u32 %v2374, %v2372
      %v2378 = vshll.u32 %v2333, 16
      %v2380 = vrot.slane %v2378, 1
      %v2381 = vsel %vm1060, %v2376, %v2380
      %v2382 = vshrl.u32 %v2333, 16
      %v2384 = vor.u32 %v2382, %v2380
      %v2386 = vshll.u32 %v2334, 16
      %v2388 = vrot.slane %v2386, 1
      %v2389 = vsel %vm1060, %v2384, %v2388
      %v2390 = vshrl.u32 %v2334, 16
      %v2392 = vor.u32 %v2390, %v2388
      %v2394 = vshll.u32 %v2335, 16
      %v2396 = vrot.slane %v2394, 1
      %v2397 = vsel %vm1060, %v2392, %v2396
      %v2398 = vshrl.u32 %v2335, 16
      %v2400 = vor.u32 %v2398, %v2396
      %v2402 = vshll.u32 %v2336, 16
      %v2404 = vrot.slane %v2402, 1
      %v2405 = vsel %vm1060, %v2400, %v2404
      %v2406 = vshrl.u32 %v2336, 16
      %v2408 = vor.u32 %v2406, %v2404
      %v2410 = vshll.u32 %v2337, 16
      %v2412 = vrot.slane %v2410, 1
      %v2413 = vsel %vm1060, %v2408, %v2412
      %v2414 = vshrl.u32 %v2337, 16
      %v2416 = vor.u32 %v2414, %v2412
      %v2418 = vshll.u32 %v2338, 16
      %v2420 = vrot.slane %v2418, 1
      %v2421 = vsel %vm1060, %v2416, %v2420
      %v2422 = vshrl.u32 %v2338, 16
      %v2424 = vor.u32 %v2422, %v2420
      %v2426 = vshll.u32 %v2339, 16
      %v2428 = vrot.slane %v2426, 1
      %v2429 = vsel %vm1060, %v2424, %v2428
      %v2430 = vshrl.u32 %v2339, 16
      %v2432 = vor.u32 %v2430, %v2428
      %v2434 = vshll.u32 %v2340, 16
      %v2436 = vrot.slane %v2434, 1
      %v2437 = vsel %vm1060, %v2432, %v2436
      %v2438 = vshrl.u32 %v2340, 16
      %v2440 = vor.u32 %v2438, %v2436
      %v2442 = vshll.u32 %v2341, 16
      %v2444 = vrot.slane %v2442, 1
      %v2445 = vsel %vm1060, %v2440, %v2444
      %v2446 = vshrl.u32 %v2341, 16
      %v2448 = vor.u32 %v2446, %v2444
      %v2450 = vshll.u32 %v2342, 16
      %v2452 = vrot.slane %v2450, 1
      %v2453 = vsel %vm1060, %v2448, %v2452
      %v2454 = vshrl.u32 %v2342, 16
      %v2456 = vor.u32 %v2454, %v2452
      %v2458 = vshll.u32 %v2343, 16
      %v2460 = vrot.slane %v2458, 1
      %v2461 = vsel %vm1060, %v2456, %v2460
      %v2462 = vshrl.u32 %v2343, 16
      %v2464 = vor.u32 %v2462, %v2460
      %v2466 = vshll.u32 %v2344, 16
      %v2468 = vrot.slane %v2466, 1
      %v2469 = vsel %vm1060, %v2464, %v2468
      %v2470 = vshrl.u32 %v2344, 16
      %v2472 = vor.u32 %v2470, %v2468
      %v2474 = vshll.u32 %v2345, 16
      %v2476 = vrot.slane %v2474, 1
      %v2477 = vsel %vm1060, %v2472, %v2476
      %2478 = vrot.lane.b32.xlu0 %v2357, 64
      %v2479 = vpop.permute.xlu0 %2478
      %2480 = vrot.lane.b32.xlu0 %v2365, 64
      %v2481 = vpop.permute.xlu0 %2480
      %2482 = vrot.lane.b32.xlu0 %v2373, 64
      %v2483 = vpop.permute.xlu0 %2482
      %2484 = vrot.lane.b32.xlu0 %v2381, 64
      %v2485 = vpop.permute.xlu0 %2484
      %2486 = vrot.lane.b32.xlu0 %v2389, 64
      %v2487 = vpop.permute.xlu0 %2486
      %2488 = vrot.lane.b32.xlu0 %v2397, 64
      %v2489 = vpop.permute.xlu0 %2488
      %2490 = vrot.lane.b32.xlu0 %v2405, 64
      %v2491 = vpop.permute.xlu0 %2490
      %2492 = vrot.lane.b32.xlu0 %v2413, 64
      %v2493 = vpop.permute.xlu0 %2492
      %2494 = vrot.lane.b32.xlu0 %v2421, 64
      %v2495 = vpop.permute.xlu0 %2494
      %2496 = vrot.lane.b32.xlu0 %v2429, 64
      %v2497 = vpop.permute.xlu0 %2496
      %2498 = vrot.lane.b32.xlu0 %v2437, 64
      %v2499 = vpop.permute.xlu0 %2498
      %2500 = vrot.lane.b32.xlu0 %v2445, 64
      %v2501 = vpop.permute.xlu0 %2500
      %2502 = vrot.lane.b32.xlu0 %v2453, 64
      %v2503 = vpop.permute.xlu0 %2502
      %2504 = vrot.lane.b32.xlu0 %v2461, 64
      %v2505 = vpop.permute.xlu0 %2504
      %2506 = vrot.lane.b32.xlu0 %v2469, 64
      %v2507 = vpop.permute.xlu0 %2506
      %2508 = vrot.lane.b32.xlu0 %v2477, 64
      %v2509 = vpop.permute.xlu0 %2508
      %vm2526 = vcmask 654848
      %2527 = vst.msk [vmem:[#allocation2] sm:$0xff] %vm2526, %v2479
      %2528 = vst.msk [vmem:[#allocation2 + $0x10] sm:$0xff] %vm2526, %v2481
      %2529 = vst.msk [vmem:[#allocation2 + $0x20] sm:$0xff] %vm2526, %v2483
      %2530 = vst.msk [vmem:[#allocation2 + $0x30] sm:$0xff] %vm2526, %v2485
      %2531 = vst.msk [vmem:[#allocation2 + $0x40] sm:$0xff] %vm2526, %v2487
      %2532 = vst.msk [vmem:[#allocation2 + $0x50] sm:$0xff] %vm2526, %v2489
      %2533 = vst.msk [vmem:[#allocation2 + $0x60] sm:$0xff] %vm2526, %v2491
      %2534 = vst.msk [vmem:[#allocation2 + $0x70] sm:$0xff] %vm2526, %v2493
      %2535 = vst.msk [vmem:[#allocation2 + $0x80] sm:$0xff] %vm2526, %v2495
      %2536 = vst.msk [vmem:[#allocation2 + $0x90] sm:$0xff] %vm2526, %v2497
      %2537 = vst.msk [vmem:[#allocation2 + $0xa0] sm:$0xff] %vm2526, %v2499
      %2538 = vst.msk [vmem:[#allocation2 + $0xb0] sm:$0xff] %vm2526, %v2501
      %2539 = vst.msk [vmem:[#allocation2 + $0xc0] sm:$0xff] %vm2526, %v2503
      %2540 = vst.msk [vmem:[#allocation2 + $0xd0] sm:$0xff] %vm2526, %v2505
      %2541 = vst.msk [vmem:[#allocation2 + $0xe0] sm:$0xff] %vm2526, %v2507
      %2542 = vst.msk [vmem:[#allocation2 + $0xf0] sm:$0xff] %vm2526, %v2509
      %v2543 = vld [vmem:[%s330 + $0x8] sm:$0xe]
      %v2544 = vld [vmem:[%s330 + $0xc] sm:$0xf]
      %v2545 = vld [vmem:[%s330 + $0x10] sm:$0xf]
      %v2546 = vld [vmem:[%s330 + $0x14] sm:$0xf]
      %v2547 = vld [vmem:[%s330 + $0x18] sm:$0xf]
      %v2548 = vld [vmem:[%s330 + $0x1c] sm:$0xf]
      %v2549 = vld [vmem:[%s330 + $0x20] sm:$0xf]
      %v2550 = vld [vmem:[%s330 + $0x24] sm:$0xf]
      %v2551 = vld [vmem:[%s330 + $0x28] sm:$0xf]
      %v2552 = vld [vmem:[%s330 + $0x2c] sm:$0xf]
      %v2553 = vld [vmem:[%s330 + $0x30] sm:$0xf]
      %v2554 = vld [vmem:[%s330 + $0x34] sm:$0xf]
      %v2555 = vld [vmem:[%s330 + $0x38] sm:$0xf]
      %v2556 = vld [vmem:[%s330 + $0x3c] sm:$0xf]
      %v2557 = vld [vmem:[%s330 + $0x40] sm:$0xf]
      %v2558 = vld [vmem:[%s330 + $0x44] sm:$0xf]
      %v2559 = vld [vmem:[%s330 + $0x48] sm:$0xf]
      %v2560 = vld [vmem:[%s330 + $0x4c] sm:$0xf]
      %v2561 = vld [vmem:[%s330 + $0x50] sm:$0xf]
      %v2562 = vld [vmem:[%s330 + $0x54] sm:$0xf]
      %v2563 = vld [vmem:[%s330 + $0x58] sm:$0xf]
      %v2564 = vld [vmem:[%s330 + $0x5c] sm:$0xf]
      %v2565 = vld [vmem:[%s330 + $0x60] sm:$0xf]
      %v2566 = vld [vmem:[%s330 + $0x64] sm:$0xf]
      %v2567 = vld [vmem:[%s330 + $0x68] sm:$0xf]
      %v2568 = vld [vmem:[%s330 + $0x6c] sm:$0xf]
      %v2569 = vld [vmem:[%s330 + $0x70] sm:$0xf]
      %v2570 = vld [vmem:[%s330 + $0x74] sm:$0xf]
      %v2571 = vld [vmem:[%s330 + $0x78] sm:$0xf]
      %v2572 = vld [vmem:[%s330 + $0x7c] sm:$0xf]
      %v2573 = vld [vmem:[%s330 + $0x80] sm:$0xf]
      %v2574 = vld [vmem:[%s330 + $0x84] sm:$0xf]
      %v2575 = vld [vmem:[%s330 + $0x88] sm:$0x1]
      %v2576 = vmul.bf16 %v2543, %v1678
      %v2577 = vmul.bf16 %v2544, %v1681
      %v2578 = vmul.bf16 %v2545, %v1684
      %v2579 = vmul.bf16 %v2546, %v1687
      %v2580 = vmul.bf16 %v2547, %v1690
      %v2581 = vmul.bf16 %v2548, %v1693
      %v2582 = vmul.bf16 %v2549, %v1696
      %v2583 = vmul.bf16 %v2550, %v1699
      %v2584 = vmul.bf16 %v2551, %v1702
      %v2585 = vmul.bf16 %v2552, %v1705
      %v2586 = vmul.bf16 %v2553, %v1708
      %v2587 = vmul.bf16 %v2554, %v1711
      %v2588 = vmul.bf16 %v2555, %v1714
      %v2589 = vmul.bf16 %v2556, %v1717
      %v2590 = vmul.bf16 %v2557, %v1720
      %v2591 = vmul.bf16 %v2558, %v1723
      %v2592 = vmul.bf16 %v2559, %v1726
      %v2593 = vmul.bf16 %v2560, %v1729
      %v2594 = vmul.bf16 %v2561, %v1732
      %v2595 = vmul.bf16 %v2562, %v1735
      %v2596 = vmul.bf16 %v2563, %v1738
      %v2597 = vmul.bf16 %v2564, %v1741
      %v2598 = vmul.bf16 %v2565, %v1744
      %v2599 = vmul.bf16 %v2566, %v1747
      %v2600 = vmul.bf16 %v2567, %v1750
      %v2601 = vmul.bf16 %v2568, %v1753
      %v2602 = vmul.bf16 %v2569, %v1756
      %v2603 = vmul.bf16 %v2570, %v1759
      %v2604 = vmul.bf16 %v2571, %v1762
      %v2605 = vmul.bf16 %v2572, %v1765
      %v2606 = vmul.bf16 %v2573, %v1768
      %v2607 = vmul.bf16 %v2574, %v1771
      %v2608 = vmul.bf16 %v2575, %v1772
      %v2642 = vunpack.c.l.b16 %v2576
      %v2643 = vunpack.c.l.b16 %v2577
      %v2644 = vunpack.c.l.b16 %v2578
      %v2645 = vunpack.c.l.b16 %v2579
      %v2646 = vunpack.c.l.b16 %v2580
      %v2647 = vunpack.c.l.b16 %v2581
      %v2648 = vunpack.c.l.b16 %v2582
      %v2649 = vunpack.c.l.b16 %v2583
      %v2650 = vunpack.c.l.b16 %v2584
      %v2651 = vunpack.c.l.b16 %v2585
      %v2652 = vunpack.c.l.b16 %v2586
      %v2653 = vunpack.c.l.b16 %v2587
      %v2654 = vunpack.c.l.b16 %v2588
      %v2655 = vunpack.c.l.b16 %v2589
      %v2656 = vunpack.c.l.b16 %v2590
      %v2657 = vunpack.c.l.b16 %v2591
      %v2658 = vunpack.c.l.b16 %v2592
      %v2659 = vunpack.c.l.b16 %v2593
      %v2660 = vunpack.c.l.b16 %v2594
      %v2661 = vunpack.c.l.b16 %v2595
      %v2662 = vunpack.c.l.b16 %v2596
      %v2663 = vunpack.c.l.b16 %v2597
      %v2664 = vunpack.c.l.b16 %v2598
      %v2665 = vunpack.c.l.b16 %v2599
      %v2666 = vunpack.c.l.b16 %v2600
      %v2667 = vunpack.c.l.b16 %v2601
      %v2668 = vunpack.c.l.b16 %v2602
      %v2669 = vunpack.c.l.b16 %v2603
      %v2670 = vunpack.c.l.b16 %v2604
      %v2671 = vunpack.c.l.b16 %v2605
      %v2672 = vunpack.c.l.b16 %v2606
      %v2673 = vunpack.c.l.b16 %v2607
      %v2674 = vunpack.c.l.b16 %v2608
      %v2675 = vpack.c.b16 %v2643, %v2642
      %v2676 = vpack.c.b16 %v2645, %v2644
      %v2677 = vpack.c.b16 %v2647, %v2646
      %v2678 = vpack.c.b16 %v2649, %v2648
      %v2679 = vpack.c.b16 %v2651, %v2650
      %v2680 = vpack.c.b16 %v2653, %v2652
      %v2681 = vpack.c.b16 %v2655, %v2654
      %v2682 = vpack.c.b16 %v2657, %v2656
      %v2683 = vpack.c.b16 %v2659, %v2658
      %v2684 = vpack.c.b16 %v2661, %v2660
      %v2685 = vpack.c.b16 %v2663, %v2662
      %v2686 = vpack.c.b16 %v2665, %v2664
      %v2687 = vpack.c.b16 %v2667, %v2666
      %v2688 = vpack.c.b16 %v2669, %v2668
      %v2689 = vpack.c.b16 %v2671, %v2670
      %v2690 = vpack.c.b16 %v2673, %v2672
      %v2691 = vpack.c.b16 %v2674, %v2674
      %v2692 = vrot.slane %v2675, 1
      %v2693 = vrot.slane %v2676, 1
      %v2694 = vsel %vm1922, %v2692, %v2693
      %v2695 = vrot.slane %v2677, 1
      %v2696 = vsel %vm1922, %v2693, %v2695
      %v2697 = vrot.slane %v2678, 1
      %v2698 = vsel %vm1922, %v2695, %v2697
      %v2699 = vrot.slane %v2679, 1
      %v2700 = vsel %vm1922, %v2697, %v2699
      %v2701 = vrot.slane %v2680, 1
      %v2702 = vsel %vm1922, %v2699, %v2701
      %v2703 = vrot.slane %v2681, 1
      %v2704 = vsel %vm1922, %v2701, %v2703
      %v2705 = vrot.slane %v2682, 1
      %v2706 = vsel %vm1922, %v2703, %v2705
      %v2707 = vrot.slane %v2683, 1
      %v2708 = vsel %vm1922, %v2705, %v2707
      %v2709 = vrot.slane %v2684, 1
      %v2710 = vsel %vm1922, %v2707, %v2709
      %v2711 = vrot.slane %v2685, 1
      %v2712 = vsel %vm1922, %v2709, %v2711
      %v2713 = vrot.slane %v2686, 1
      %v2714 = vsel %vm1922, %v2711, %v2713
      %v2715 = vrot.slane %v2687, 1
      %v2716 = vsel %vm1922, %v2713, %v2715
      %v2717 = vrot.slane %v2688, 1
      %v2718 = vsel %vm1922, %v2715, %v2717
      %v2719 = vrot.slane %v2689, 1
      %v2720 = vsel %vm1922, %v2717, %v2719
      %v2721 = vrot.slane %v2690, 1
      %v2722 = vsel %vm1922, %v2719, %v2721
      %v2723 = vrot.slane %v2691, 1
      %v2724 = vsel %vm1922, %v2721, %v2723
      %2725 = vrot.lane.b32.xlu0 %v2694, 80
      %v2726 = vpop.permute.xlu0 %2725
      %2727 = vrot.lane.b32.xlu0 %v2696, 80
      %v2728 = vpop.permute.xlu0 %2727
      %2729 = vrot.lane.b32.xlu0 %v2698, 80
      %v2730 = vpop.permute.xlu0 %2729
      %2731 = vrot.lane.b32.xlu0 %v2700, 80
      %v2732 = vpop.permute.xlu0 %2731
      %2733 = vrot.lane.b32.xlu0 %v2702, 80
      %v2734 = vpop.permute.xlu0 %2733
      %2735 = vrot.lane.b32.xlu0 %v2704, 80
      %v2736 = vpop.permute.xlu0 %2735
      %2737 = vrot.lane.b32.xlu0 %v2706, 80
      %v2738 = vpop.permute.xlu0 %2737
      %2739 = vrot.lane.b32.xlu0 %v2708, 80
      %v2740 = vpop.permute.xlu0 %2739
      %2741 = vrot.lane.b32.xlu0 %v2710, 80
      %v2742 = vpop.permute.xlu0 %2741
      %2743 = vrot.lane.b32.xlu0 %v2712, 80
      %v2744 = vpop.permute.xlu0 %2743
      %2745 = vrot.lane.b32.xlu0 %v2714, 80
      %v2746 = vpop.permute.xlu0 %2745
      %2747 = vrot.lane.b32.xlu0 %v2716, 80
      %v2748 = vpop.permute.xlu0 %2747
      %2749 = vrot.lane.b32.xlu0 %v2718, 80
      %v2750 = vpop.permute.xlu0 %2749
      %2751 = vrot.lane.b32.xlu0 %v2720, 80
      %v2752 = vpop.permute.xlu0 %2751
      %2753 = vrot.lane.b32.xlu0 %v2722, 80
      %v2754 = vpop.permute.xlu0 %2753
      %2755 = vrot.lane.b32.xlu0 %v2724, 80
      %v2756 = vpop.permute.xlu0 %2755
      %vm2773 = vcmask 786048
      %2774 = vst.msk [vmem:[#allocation2] sm:$0xff] %vm2773, %v2726
      %2775 = vst.msk [vmem:[#allocation2 + $0x10] sm:$0xff] %vm2773, %v2728
      %2776 = vst.msk [vmem:[#allocation2 + $0x20] sm:$0xff] %vm2773, %v2730
      %2777 = vst.msk [vmem:[#allocation2 + $0x30] sm:$0xff] %vm2773, %v2732
      %2778 = vst.msk [vmem:[#allocation2 + $0x40] sm:$0xff] %vm2773, %v2734
      %2779 = vst.msk [vmem:[#allocation2 + $0x50] sm:$0xff] %vm2773, %v2736
      %2780 = vst.msk [vmem:[#allocation2 + $0x60] sm:$0xff] %vm2773, %v2738
      %2781 = vst.msk [vmem:[#allocation2 + $0x70] sm:$0xff] %vm2773, %v2740
      %2782 = vst.msk [vmem:[#allocation2 + $0x80] sm:$0xff] %vm2773, %v2742
      %2783 = vst.msk [vmem:[#allocation2 + $0x90] sm:$0xff] %vm2773, %v2744
      %2784 = vst.msk [vmem:[#allocation2 + $0xa0] sm:$0xff] %vm2773, %v2746
      %2785 = vst.msk [vmem:[#allocation2 + $0xb0] sm:$0xff] %vm2773, %v2748
      %2786 = vst.msk [vmem:[#allocation2 + $0xc0] sm:$0xff] %vm2773, %v2750
      %2787 = vst.msk [vmem:[#allocation2 + $0xd0] sm:$0xff] %vm2773, %v2752
      %2788 = vst.msk [vmem:[#allocation2 + $0xe0] sm:$0xff] %vm2773, %v2754
      %2789 = vst.msk [vmem:[#allocation2 + $0xf0] sm:$0xff] %vm2773, %v2756
      %v2790 = vld [vmem:[%s330 + $0x10] sm:$0xf]
      %v2791 = vld [vmem:[%s330 + $0x14] sm:$0xf]
      %v2792 = vld [vmem:[%s330 + $0x18] sm:$0xf]
      %v2793 = vld [vmem:[%s330 + $0x1c] sm:$0xf]
      %v2794 = vld [vmem:[%s330 + $0x20] sm:$0xf]
      %v2795 = vld [vmem:[%s330 + $0x24] sm:$0xf]
      %v2796 = vld [vmem:[%s330 + $0x28] sm:$0xf]
      %v2797 = vld [vmem:[%s330 + $0x2c] sm:$0xf]
      %v2798 = vld [vmem:[%s330 + $0x30] sm:$0xf]
      %v2799 = vld [vmem:[%s330 + $0x34] sm:$0xf]
      %v2800 = vld [vmem:[%s330 + $0x38] sm:$0xf]
      %v2801 = vld [vmem:[%s330 + $0x3c] sm:$0xf]
      %v2802 = vld [vmem:[%s330 + $0x40] sm:$0xf]
      %v2803 = vld [vmem:[%s330 + $0x44] sm:$0xf]
      %v2804 = vld [vmem:[%s330 + $0x48] sm:$0xf]
      %v2805 = vld [vmem:[%s330 + $0x4c] sm:$0xf]
      %v2806 = vld [vmem:[%s330 + $0x50] sm:$0xf]
      %v2807 = vld [vmem:[%s330 + $0x54] sm:$0xf]
      %v2808 = vld [vmem:[%s330 + $0x58] sm:$0xf]
      %v2809 = vld [vmem:[%s330 + $0x5c] sm:$0xf]
      %v2810 = vld [vmem:[%s330 + $0x60] sm:$0xf]
      %v2811 = vld [vmem:[%s330 + $0x64] sm:$0xf]
      %v2812 = vld [vmem:[%s330 + $0x68] sm:$0xf]
      %v2813 = vld [vmem:[%s330 + $0x6c] sm:$0xf]
      %v2814 = vld [vmem:[%s330 + $0x70] sm:$0xf]
      %v2815 = vld [vmem:[%s330 + $0x74] sm:$0xf]
      %v2816 = vld [vmem:[%s330 + $0x78] sm:$0xf]
      %v2817 = vld [vmem:[%s330 + $0x7c] sm:$0xf]
      %v2818 = vld [vmem:[%s330 + $0x80] sm:$0xf]
      %v2819 = vld [vmem:[%s330 + $0x84] sm:$0xf]
      %v2820 = vld [vmem:[%s330 + $0x88] sm:$0xf]
      %v2821 = vld [vmem:[%s330 + $0x8c] sm:$0xf]
      %v2822 = vmul.bf16 %v2790, %v426
      %v2823 = vmul.bf16 %v2791, %v438
      %v2824 = vmul.bf16 %v2792, %v450
      %v2825 = vmul.bf16 %v2793, %v462
      %v2826 = vmul.bf16 %v2794, %v474
      %v2827 = vmul.bf16 %v2795, %v486
      %v2828 = vmul.bf16 %v2796, %v498
      %v2829 = vmul.bf16 %v2797, %v510
      %v2830 = vmul.bf16 %v2798, %v522
      %v2831 = vmul.bf16 %v2799, %v534
      %v2832 = vmul.bf16 %v2800, %v546
      %v2833 = vmul.bf16 %v2801, %v558
      %v2834 = vmul.bf16 %v2802, %v570
      %v2835 = vmul.bf16 %v2803, %v582
      %v2836 = vmul.bf16 %v2804, %v594
      %v2837 = vmul.bf16 %v2805, %v606
      %v2838 = vmul.bf16 %v2806, %v618
      %v2839 = vmul.bf16 %v2807, %v630
      %v2840 = vmul.bf16 %v2808, %v642
      %v2841 = vmul.bf16 %v2809, %v654
      %v2842 = vmul.bf16 %v2810, %v666
      %v2843 = vmul.bf16 %v2811, %v678
      %v2844 = vmul.bf16 %v2812, %v690
      %v2845 = vmul.bf16 %v2813, %v702
      %v2846 = vmul.bf16 %v2814, %v714
      %v2847 = vmul.bf16 %v2815, %v726
      %v2848 = vmul.bf16 %v2816, %v738
      %v2849 = vmul.bf16 %v2817, %v750
      %v2850 = vmul.bf16 %v2818, %v762
      %v2851 = vmul.bf16 %v2819, %v774
      %v2852 = vmul.bf16 %v2820, %v786
      %v2853 = vmul.bf16 %v2821, %v798
      %v2886 = vunpack.c.l.b16 %v2822
      %v2887 = vunpack.c.l.b16 %v2823
      %v2888 = vunpack.c.l.b16 %v2824
      %v2889 = vunpack.c.l.b16 %v2825
      %v2890 = vunpack.c.l.b16 %v2826
      %v2891 = vunpack.c.l.b16 %v2827
      %v2892 = vunpack.c.l.b16 %v2828
      %v2893 = vunpack.c.l.b16 %v2829
      %v2894 = vunpack.c.l.b16 %v2830
      %v2895 = vunpack.c.l.b16 %v2831
      %v2896 = vunpack.c.l.b16 %v2832
      %v2897 = vunpack.c.l.b16 %v2833
      %v2898 = vunpack.c.l.b16 %v2834
      %v2899 = vunpack.c.l.b16 %v2835
      %v2900 = vunpack.c.l.b16 %v2836
      %v2901 = vunpack.c.l.b16 %v2837
      %v2902 = vunpack.c.l.b16 %v2838
      %v2903 = vunpack.c.l.b16 %v2839
      %v2904 = vunpack.c.l.b16 %v2840
      %v2905 = vunpack.c.l.b16 %v2841
      %v2906 = vunpack.c.l.b16 %v2842
      %v2907 = vunpack.c.l.b16 %v2843
      %v2908 = vunpack.c.l.b16 %v2844
      %v2909 = vunpack.c.l.b16 %v2845
      %v2910 = vunpack.c.l.b16 %v2846
      %v2911 = vunpack.c.l.b16 %v2847
      %v2912 = vunpack.c.l.b16 %v2848
      %v2913 = vunpack.c.l.b16 %v2849
      %v2914 = vunpack.c.l.b16 %v2850
      %v2915 = vunpack.c.l.b16 %v2851
      %v2916 = vunpack.c.l.b16 %v2852
      %v2917 = vunpack.c.l.b16 %v2853
      %v2918 = vpack.c.b16 %v2887, %v2886
      %v2919 = vpack.c.b16 %v2889, %v2888
      %v2920 = vpack.c.b16 %v2891, %v2890
      %v2921 = vpack.c.b16 %v2893, %v2892
      %v2922 = vpack.c.b16 %v2895, %v2894
      %v2923 = vpack.c.b16 %v2897, %v2896
      %v2924 = vpack.c.b16 %v2899, %v2898
      %v2925 = vpack.c.b16 %v2901, %v2900
      %v2926 = vpack.c.b16 %v2903, %v2902
      %v2927 = vpack.c.b16 %v2905, %v2904
      %v2928 = vpack.c.b16 %v2907, %v2906
      %v2929 = vpack.c.b16 %v2909, %v2908
      %v2930 = vpack.c.b16 %v2911, %v2910
      %v2931 = vpack.c.b16 %v2913, %v2912
      %v2932 = vpack.c.b16 %v2915, %v2914
      %v2933 = vpack.c.b16 %v2917, %v2916
      %2934 = vrot.lane.b32.xlu0 %v2918, 96
      %v2935 = vpop.permute.xlu0 %2934
      %2936 = vrot.lane.b32.xlu0 %v2919, 96
      %v2937 = vpop.permute.xlu0 %2936
      %2938 = vrot.lane.b32.xlu0 %v2920, 96
      %v2939 = vpop.permute.xlu0 %2938
      %2940 = vrot.lane.b32.xlu0 %v2921, 96
      %v2941 = vpop.permute.xlu0 %2940
      %2942 = vrot.lane.b32.xlu0 %v2922, 96
      %v2943 = vpop.permute.xlu0 %2942
      %2944 = vrot.lane.b32.xlu0 %v2923, 96
      %v2945 = vpop.permute.xlu0 %2944
      %2946 = vrot.lane.b32.xlu0 %v2924, 96
      %v2947 = vpop.permute.xlu0 %2946
      %2948 = vrot.lane.b32.xlu0 %v2925, 96
      %v2949 = vpop.permute.xlu0 %2948
      %2950 = vrot.lane.b32.xlu0 %v2926, 96
      %v2951 = vpop.permute.xlu0 %2950
      %2952 = vrot.lane.b32.xlu0 %v2927, 96
      %v2953 = vpop.permute.xlu0 %2952
      %2954 = vrot.lane.b32.xlu0 %v2928, 96
      %v2955 = vpop.permute.xlu0 %2954
      %2956 = vrot.lane.b32.xlu0 %v2929, 96
      %v2957 = vpop.permute.xlu0 %2956
      %2958 = vrot.lane.b32.xlu0 %v2930, 96
      %v2959 = vpop.permute.xlu0 %2958
      %2960 = vrot.lane.b32.xlu0 %v2931, 96
      %v2961 = vpop.permute.xlu0 %2960
      %2962 = vrot.lane.b32.xlu0 %v2932, 96
      %v2963 = vpop.permute.xlu0 %2962
      %2964 = vrot.lane.b32.xlu0 %v2933, 96
      %v2965 = vpop.permute.xlu0 %2964
      %vm2982 = vcmask 917248
      %2983 = vst.msk [vmem:[#allocation2] sm:$0xff] %vm2982, %v2935
      %2984 = vst.msk [vmem:[#allocation2 + $0x10] sm:$0xff] %vm2982, %v2937
      %2985 = vst.msk [vmem:[#allocation2 + $0x20] sm:$0xff] %vm2982, %v2939
      %2986 = vst.msk [vmem:[#allocation2 + $0x30] sm:$0xff] %vm2982, %v2941
      %2987 = vst.msk [vmem:[#allocation2 + $0x40] sm:$0xff] %vm2982, %v2943
      %2988 = vst.msk [vmem:[#allocation2 + $0x50] sm:$0xff] %vm2982, %v2945
      %2989 = vst.msk [vmem:[#allocation2 + $0x60] sm:$0xff] %vm2982, %v2947
      %2990 = vst.msk [vmem:[#allocation2 + $0x70] sm:$0xff] %vm2982, %v2949
      %2991 = vst.msk [vmem:[#allocation2 + $0x80] sm:$0xff] %vm2982, %v2951
      %2992 = vst.msk [vmem:[#allocation2 + $0x90] sm:$0xff] %vm2982, %v2953
      %2993 = vst.msk [vmem:[#allocation2 + $0xa0] sm:$0xff] %vm2982, %v2955
      %2994 = vst.msk [vmem:[#allocation2 + $0xb0] sm:$0xff] %vm2982, %v2957
      %2995 = vst.msk [vmem:[#allocation2 + $0xc0] sm:$0xff] %vm2982, %v2959
      %2996 = vst.msk [vmem:[#allocation2 + $0xd0] sm:$0xff] %vm2982, %v2961
      %2997 = vst.msk [vmem:[#allocation2 + $0xe0] sm:$0xff] %vm2982, %v2963
      %2998 = vst.msk [vmem:[#allocation2 + $0xf0] sm:$0xff] %vm2982, %v2965
      %v2999 = vld [vmem:[%s330 + $0x10] sm:$0xf]
      %v3000 = vld [vmem:[%s330 + $0x14] sm:$0xf]
      %v3001 = vld [vmem:[%s330 + $0x18] sm:$0xf]
      %v3002 = vld [vmem:[%s330 + $0x1c] sm:$0xf]
      %v3003 = vld [vmem:[%s330 + $0x20] sm:$0xf]
      %v3004 = vld [vmem:[%s330 + $0x24] sm:$0xf]
      %v3005 = vld [vmem:[%s330 + $0x28] sm:$0xf]
      %v3006 = vld [vmem:[%s330 + $0x2c] sm:$0xf]
      %v3007 = vld [vmem:[%s330 + $0x30] sm:$0xf]
      %v3008 = vld [vmem:[%s330 + $0x34] sm:$0xf]
      %v3009 = vld [vmem:[%s330 + $0x38] sm:$0xf]
      %v3010 = vld [vmem:[%s330 + $0x3c] sm:$0xf]
      %v3011 = vld [vmem:[%s330 + $0x40] sm:$0xf]
      %v3012 = vld [vmem:[%s330 + $0x44] sm:$0xf]
      %v3013 = vld [vmem:[%s330 + $0x48] sm:$0xf]
      %v3014 = vld [vmem:[%s330 + $0x4c] sm:$0xf]
      %v3015 = vld [vmem:[%s330 + $0x50] sm:$0xf]
      %v3016 = vld [vmem:[%s330 + $0x54] sm:$0xf]
      %v3017 = vld [vmem:[%s330 + $0x58] sm:$0xf]
      %v3018 = vld [vmem:[%s330 + $0x5c] sm:$0xf]
      %v3019 = vld [vmem:[%s330 + $0x60] sm:$0xf]
      %v3020 = vld [vmem:[%s330 + $0x64] sm:$0xf]
      %v3021 = vld [vmem:[%s330 + $0x68] sm:$0xf]
      %v3022 = vld [vmem:[%s330 + $0x6c] sm:$0xf]
      %v3023 = vld [vmem:[%s330 + $0x70] sm:$0xf]
      %v3024 = vld [vmem:[%s330 + $0x74] sm:$0xf]
      %v3025 = vld [vmem:[%s330 + $0x78] sm:$0xf]
      %v3026 = vld [vmem:[%s330 + $0x7c] sm:$0xf]
      %v3027 = vld [vmem:[%s330 + $0x80] sm:$0xf]
      %v3028 = vld [vmem:[%s330 + $0x84] sm:$0xf]
      %v3029 = vld [vmem:[%s330 + $0x88] sm:$0xf]
      %v3030 = vld [vmem:[%s330 + $0x8c] sm:$0xf]
      %v3031 = vld [vmem:[%s330 + $0x90] sm:$0x1]
      %v3065 = vunpack.c.l.b16 %v2999
      %v3066 = vunpack.c.l.b16 %v3000
      %v3067 = vunpack.c.l.b16 %v3001
      %v3068 = vunpack.c.l.b16 %v3002
      %v3069 = vunpack.c.l.b16 %v3003
      %v3070 = vunpack.c.l.b16 %v3004
      %v3071 = vunpack.c.l.b16 %v3005
      %v3072 = vunpack.c.l.b16 %v3006
      %v3073 = vunpack.c.l.b16 %v3007
      %v3074 = vunpack.c.l.b16 %v3008
      %v3075 = vunpack.c.l.b16 %v3009
      %v3076 = vunpack.c.l.b16 %v3010
      %v3077 = vunpack.c.l.b16 %v3011
      %v3078 = vunpack.c.l.b16 %v3012
      %v3079 = vunpack.c.l.b16 %v3013
      %v3080 = vunpack.c.l.b16 %v3014
      %v3081 = vunpack.c.l.b16 %v3015
      %v3082 = vunpack.c.l.b16 %v3016
      %v3083 = vunpack.c.l.b16 %v3017
      %v3084 = vunpack.c.l.b16 %v3018
      %v3085 = vunpack.c.l.b16 %v3019
      %v3086 = vunpack.c.l.b16 %v3020
      %v3087 = vunpack.c.l.b16 %v3021
      %v3088 = vunpack.c.l.b16 %v3022
      %v3089 = vunpack.c.l.b16 %v3023
      %v3090 = vunpack.c.l.b16 %v3024
      %v3091 = vunpack.c.l.b16 %v3025
      %v3092 = vunpack.c.l.b16 %v3026
      %v3093 = vunpack.c.l.b16 %v3027
      %v3094 = vunpack.c.l.b16 %v3028
      %v3095 = vunpack.c.l.b16 %v3029
      %v3096 = vunpack.c.l.b16 %v3030
      %v3097 = vunpack.c.l.b16 %v3031
      %v3098 = vpack.c.b16 %v3066, %v3065
      %v3099 = vpack.c.b16 %v3068, %v3067
      %v3100 = vpack.c.b16 %v3070, %v3069
      %v3101 = vpack.c.b16 %v3072, %v3071
      %v3102 = vpack.c.b16 %v3074, %v3073
      %v3103 = vpack.c.b16 %v3076, %v3075
      %v3104 = vpack.c.b16 %v3078, %v3077
      %v3105 = vpack.c.b16 %v3080, %v3079
      %v3106 = vpack.c.b16 %v3082, %v3081
      %v3107 = vpack.c.b16 %v3084, %v3083
      %v3108 = vpack.c.b16 %v3086, %v3085
      %v3109 = vpack.c.b16 %v3088, %v3087
      %v3110 = vpack.c.b16 %v3090, %v3089
      %v3111 = vpack.c.b16 %v3092, %v3091
      %v3112 = vpack.c.b16 %v3094, %v3093
      %v3113 = vpack.c.b16 %v3096, %v3095
      %v3114 = vpack.c.b16 %v3097, %v3097
      %v3116 = vshrl.u32 %v3098, 16
      %v3118 = vshll.u32 %v3098, 16
      %v3120 = vrot.slane %v3118, 1
      %v3121 = vor.u32 %v3116, %v3120
      %v3123 = vshll.u32 %v3099, 16
      %v3125 = vrot.slane %v3123, 1
      %v3126 = vsel %vm1060, %v3121, %v3125
      %v3127 = vshrl.u32 %v3099, 16
      %v3129 = vor.u32 %v3127, %v3125
      %v3131 = vshll.u32 %v3100, 16
      %v3133 = vrot.slane %v3131, 1
      %v3134 = vsel %vm1060, %v3129, %v3133
      %v3135 = vshrl.u32 %v3100, 16
      %v3137 = vor.u32 %v3135, %v3133
      %v3139 = vshll.u32 %v3101, 16
      %v3141 = vrot.slane %v3139, 1
      %v3142 = vsel %vm1060, %v3137, %v3141
      %v3143 = vshrl.u32 %v3101, 16
      %v3145 = vor.u32 %v3143, %v3141
      %v3147 = vshll.u32 %v3102, 16
      %v3149 = vrot.slane %v3147, 1
      %v3150 = vsel %vm1060, %v3145, %v3149
      %v3151 = vshrl.u32 %v3102, 16
      %v3153 = vor.u32 %v3151, %v3149
      %v3155 = vshll.u32 %v3103, 16
      %v3157 = vrot.slane %v3155, 1
      %v3158 = vsel %vm1060, %v3153, %v3157
      %v3159 = vshrl.u32 %v3103, 16
      %v3161 = vor.u32 %v3159, %v3157
      %v3163 = vshll.u32 %v3104, 16
      %v3165 = vrot.slane %v3163, 1
      %v3166 = vsel %vm1060, %v3161, %v3165
      %v3167 = vshrl.u32 %v3104, 16
      %v3169 = vor.u32 %v3167, %v3165
      %v3171 = vshll.u32 %v3105, 16
      %v3173 = vrot.slane %v3171, 1
      %v3174 = vsel %vm1060, %v3169, %v3173
      %v3175 = vshrl.u32 %v3105, 16
      %v3177 = vor.u32 %v3175, %v3173
      %v3179 = vshll.u32 %v3106, 16
      %v3181 = vrot.slane %v3179, 1
      %v3182 = vsel %vm1060, %v3177, %v3181
      %v3183 = vshrl.u32 %v3106, 16
      %v3185 = vor.u32 %v3183, %v3181
      %v3187 = vshll.u32 %v3107, 16
      %v3189 = vrot.slane %v3187, 1
      %v3190 = vsel %vm1060, %v3185, %v3189
      %v3191 = vshrl.u32 %v3107, 16
      %v3193 = vor.u32 %v3191, %v3189
      %v3195 = vshll.u32 %v3108, 16
      %v3197 = vrot.slane %v3195, 1
      %v3198 = vsel %vm1060, %v3193, %v3197
      %v3199 = vshrl.u32 %v3108, 16
      %v3201 = vor.u32 %v3199, %v3197
      %v3203 = vshll.u32 %v3109, 16
      %v3205 = vrot.slane %v3203, 1
      %v3206 = vsel %vm1060, %v3201, %v3205
      %v3207 = vshrl.u32 %v3109, 16
      %v3209 = vor.u32 %v3207, %v3205
      %v3211 = vshll.u32 %v3110, 16
      %v3213 = vrot.slane %v3211, 1
      %v3214 = vsel %vm1060, %v3209, %v3213
      %v3215 = vshrl.u32 %v3110, 16
      %v3217 = vor.u32 %v3215, %v3213
      %v3219 = vshll.u32 %v3111, 16
      %v3221 = vrot.slane %v3219, 1
      %v3222 = vsel %vm1060, %v3217, %v3221
      %v3223 = vshrl.u32 %v3111, 16
      %v3225 = vor.u32 %v3223, %v3221
      %v3227 = vshll.u32 %v3112, 16
      %v3229 = vrot.slane %v3227, 1
      %v3230 = vsel %vm1060, %v3225, %v3229
      %v3231 = vshrl.u32 %v3112, 16
      %v3233 = vor.u32 %v3231, %v3229
      %v3235 = vshll.u32 %v3113, 16
      %v3237 = vrot.slane %v3235, 1
      %v3238 = vsel %vm1060, %v3233, %v3237
      %v3239 = vshrl.u32 %v3113, 16
      %v3241 = vor.u32 %v3239, %v3237
      %v3243 = vshll.u32 %v3114, 16
      %v3245 = vrot.slane %v3243, 1
      %v3246 = vsel %vm1060, %v3241, %v3245
      %3247 = vrot.lane.b32.xlu0 %v3126, 112
      %v3248 = vpop.permute.xlu0 %3247
      %3249 = vrot.lane.b32.xlu0 %v3134, 112
      %v3250 = vpop.permute.xlu0 %3249
      %3251 = vrot.lane.b32.xlu0 %v3142, 112
      %v3252 = vpop.permute.xlu0 %3251
      %3253 = vrot.lane.b32.xlu0 %v3150, 112
      %v3254 = vpop.permute.xlu0 %3253
      %3255 = vrot.lane.b32.xlu0 %v3158, 112
      %v3256 = vpop.permute.xlu0 %3255
      %3257 = vrot.lane.b32.xlu0 %v3166, 112
      %v3258 = vpop.permute.xlu0 %3257
      %3259 = vrot.lane.b32.xlu0 %v3174, 112
      %v3260 = vpop.permute.xlu0 %3259
      %3261 = vrot.lane.b32.xlu0 %v3182, 112
      %v3262 = vpop.permute.xlu0 %3261
      %3263 = vrot.lane.b32.xlu0 %v3190, 112
      %v3264 = vpop.permute.xlu0 %3263
      %3265 = vrot.lane.b32.xlu0 %v3198, 112
      %v3266 = vpop.permute.xlu0 %3265
      %3267 = vrot.lane.b32.xlu0 %v3206, 112
      %v3268 = vpop.permute.xlu0 %3267
      %3269 = vrot.lane.b32.xlu0 %v3214, 112
      %v3270 = vpop.permute.xlu0 %3269
      %3271 = vrot.lane.b32.xlu0 %v3222, 112
      %v3272 = vpop.permute.xlu0 %3271
      %3273 = vrot.lane.b32.xlu0 %v3230, 112
      %v3274 = vpop.permute.xlu0 %3273
      %3275 = vrot.lane.b32.xlu0 %v3238, 112
      %v3276 = vpop.permute.xlu0 %3275
      %3277 = vrot.lane.b32.xlu0 %v3246, 112
      %v3278 = vpop.permute.xlu0 %3277
      %vm3295 = vcmask 1048448
      %3296 = vst.msk [vmem:[#allocation2] sm:$0xff] %vm3295, %v3248
      %3297 = vst.msk [vmem:[#allocation2 + $0x10] sm:$0xff] %vm3295, %v3250
      %3298 = vst.msk [vmem:[#allocation2 + $0x20] sm:$0xff] %vm3295, %v3252
      %3299 = vst.msk [vmem:[#allocation2 + $0x30] sm:$0xff] %vm3295, %v3254
      %3300 = vst.msk [vmem:[#allocation2 + $0x40] sm:$0xff] %vm3295, %v3256
      %3301 = vst.msk [vmem:[#allocation2 + $0x50] sm:$0xff] %vm3295, %v3258
      %3302 = vst.msk [vmem:[#allocation2 + $0x60] sm:$0xff] %vm3295, %v3260
      %3303 = vst.msk [vmem:[#allocation2 + $0x70] sm:$0xff] %vm3295, %v3262
      %3304 = vst.msk [vmem:[#allocation2 + $0x80] sm:$0xff] %vm3295, %v3264
      %3305 = vst.msk [vmem:[#allocation2 + $0x90] sm:$0xff] %vm3295, %v3266
      %3306 = vst.msk [vmem:[#allocation2 + $0xa0] sm:$0xff] %vm3295, %v3268
      %3307 = vst.msk [vmem:[#allocation2 + $0xb0] sm:$0xff] %vm3295, %v3270
      %3308 = vst.msk [vmem:[#allocation2 + $0xc0] sm:$0xff] %vm3295, %v3272
      %3309 = vst.msk [vmem:[#allocation2 + $0xd0] sm:$0xff] %vm3295, %v3274
      %3310 = vst.msk [vmem:[#allocation2 + $0xe0] sm:$0xff] %vm3295, %v3276
      %3311 = vst.msk [vmem:[#allocation2 + $0xf0] sm:$0xff] %vm3295, %v3278
      %v3312 = vld [vmem:[%s330 + $0x10] sm:$0xe]
      %v3313 = vld [vmem:[%s330 + $0x14] sm:$0xf]
      %v3314 = vld [vmem:[%s330 + $0x18] sm:$0xf]
      %v3315 = vld [vmem:[%s330 + $0x1c] sm:$0xf]
      %v3316 = vld [vmem:[%s330 + $0x20] sm:$0xf]
      %v3317 = vld [vmem:[%s330 + $0x24] sm:$0xf]
      %v3318 = vld [vmem:[%s330 + $0x28] sm:$0xf]
      %v3319 = vld [vmem:[%s330 + $0x2c] sm:$0xf]
      %v3320 = vld [vmem:[%s330 + $0x30] sm:$0xf]
      %v3321 = vld [vmem:[%s330 + $0x34] sm:$0xf]
      %v3322 = vld [vmem:[%s330 + $0x38] sm:$0xf]
      %v3323 = vld [vmem:[%s330 + $0x3c] sm:$0xf]
      %v3324 = vld [vmem:[%s330 + $0x40] sm:$0xf]
      %v3325 = vld [vmem:[%s330 + $0x44] sm:$0xf]
      %v3326 = vld [vmem:[%s330 + $0x48] sm:$0xf]
      %v3327 = vld [vmem:[%s330 + $0x4c] sm:$0xf]
      %v3328 = vld [vmem:[%s330 + $0x50] sm:$0xf]
      %v3329 = vld [vmem:[%s330 + $0x54] sm:$0xf]
      %v3330 = vld [vmem:[%s330 + $0x58] sm:$0xf]
      %v3331 = vld [vmem:[%s330 + $0x5c] sm:$0xf]
      %v3332 = vld [vmem:[%s330 + $0x60] sm:$0xf]
      %v3333 = vld [vmem:[%s330 + $0x64] sm:$0xf]
      %v3334 = vld [vmem:[%s330 + $0x68] sm:$0xf]
      %v3335 = vld [vmem:[%s330 + $0x6c] sm:$0xf]
      %v3336 = vld [vmem:[%s330 + $0x70] sm:$0xf]
      %v3337 = vld [vmem:[%s330 + $0x74] sm:$0xf]
      %v3338 = vld [vmem:[%s330 + $0x78] sm:$0xf]
      %v3339 = vld [vmem:[%s330 + $0x7c] sm:$0xf]
      %v3340 = vld [vmem:[%s330 + $0x80] sm:$0xf]
      %v3341 = vld [vmem:[%s330 + $0x84] sm:$0xf]
      %v3342 = vld [vmem:[%s330 + $0x88] sm:$0xf]
      %v3343 = vld [vmem:[%s330 + $0x8c] sm:$0xf]
      %v3344 = vld [vmem:[%s330 + $0x90] sm:$0x1]
      %v3345 = vmul.bf16 %v3312, %v1678
      %v3346 = vmul.bf16 %v3313, %v1681
      %v3347 = vmul.bf16 %v3314, %v1684
      %v3348 = vmul.bf16 %v3315, %v1687
      %v3349 = vmul.bf16 %v3316, %v1690
      %v3350 = vmul.bf16 %v3317, %v1693
      %v3351 = vmul.bf16 %v3318, %v1696
      %v3352 = vmul.bf16 %v3319, %v1699
      %v3353 = vmul.bf16 %v3320, %v1702
      %v3354 = vmul.bf16 %v3321, %v1705
      %v3355 = vmul.bf16 %v3322, %v1708
      %v3356 = vmul.bf16 %v3323, %v1711
      %v3357 = vmul.bf16 %v3324, %v1714
      %v3358 = vmul.bf16 %v3325, %v1717
      %v3359 = vmul.bf16 %v3326, %v1720
      %v3360 = vmul.bf16 %v3327, %v1723
      %v3361 = vmul.bf16 %v3328, %v1726
      %v3362 = vmul.bf16 %v3329, %v1729
      %v3363 = vmul.bf16 %v3330, %v1732
      %v3364 = vmul.bf16 %v3331, %v1735
      %v3365 = vmul.bf16 %v3332, %v1738
      %v3366 = vmul.bf16 %v3333, %v1741
      %v3367 = vmul.bf16 %v3334, %v1744
      %v3368 = vmul.bf16 %v3335, %v1747
      %v3369 = vmul.bf16 %v3336, %v1750
      %v3370 = vmul.bf16 %v3337, %v1753
      %v3371 = vmul.bf16 %v3338, %v1756
      %v3372 = vmul.bf16 %v3339, %v1759
      %v3373 = vmul.bf16 %v3340, %v1762
      %v3374 = vmul.bf16 %v3341, %v1765
      %v3375 = vmul.bf16 %v3342, %v1768
      %v3376 = vmul.bf16 %v3343, %v1771
      %v3377 = vmul.bf16 %v3344, %v1772
      %v3411 = vunpack.c.l.b16 %v3345
      %v3412 = vunpack.c.l.b16 %v3346
      %v3413 = vunpack.c.l.b16 %v3347
      %v3414 = vunpack.c.l.b16 %v3348
      %v3415 = vunpack.c.l.b16 %v3349
      %v3416 = vunpack.c.l.b16 %v3350
      %v3417 = vunpack.c.l.b16 %v3351
      %v3418 = vunpack.c.l.b16 %v3352
      %v3419 = vunpack.c.l.b16 %v3353
      %v3420 = vunpack.c.l.b16 %v3354
      %v3421 = vunpack.c.l.b16 %v3355
      %v3422 = vunpack.c.l.b16 %v3356
      %v3423 = vunpack.c.l.b16 %v3357
      %v3424 = vunpack.c.l.b16 %v3358
      %v3425 = vunpack.c.l.b16 %v3359
      %v3426 = vunpack.c.l.b16 %v3360
      %v3427 = vunpack.c.l.b16 %v3361
      %v3428 = vunpack.c.l.b16 %v3362
      %v3429 = vunpack.c.l.b16 %v3363
      %v3430 = vunpack.c.l.b16 %v3364
      %v3431 = vunpack.c.l.b16 %v3365
      %v3432 = vunpack.c.l.b16 %v3366
      %v3433 = vunpack.c.l.b16 %v3367
      %v3434 = vunpack.c.l.b16 %v3368
      %v3435 = vunpack.c.l.b16 %v3369
      %v3436 = vunpack.c.l.b16 %v3370
      %v3437 = vunpack.c.l.b16 %v3371
      %v3438 = vunpack.c.l.b16 %v3372
      %v3439 = vunpack.c.l.b16 %v3373
      %v3440 = vunpack.c.l.b16 %v3374
      %v3441 = vunpack.c.l.b16 %v3375
      %v3442 = vunpack.c.l.b16 %v3376
      %v3443 = vunpack.c.l.b16 %v3377
      %v3444 = vpack.c.b16 %v3412, %v3411
      %v3445 = vpack.c.b16 %v3414, %v3413
      %v3446 = vpack.c.b16 %v3416, %v3415
      %v3447 = vpack.c.b16 %v3418, %v3417
      %v3448 = vpack.c.b16 %v3420, %v3419
      %v3449 = vpack.c.b16 %v3422, %v3421
      %v3450 = vpack.c.b16 %v3424, %v3423
      %v3451 = vpack.c.b16 %v3426, %v3425
      %v3452 = vpack.c.b16 %v3428, %v3427
      %v3453 = vpack.c.b16 %v3430, %v3429
      %v3454 = vpack.c.b16 %v3432, %v3431
      %v3455 = vpack.c.b16 %v3434, %v3433
      %v3456 = vpack.c.b16 %v3436, %v3435
      %v3457 = vpack.c.b16 %v3438, %v3437
      %v3458 = vpack.c.b16 %v3440, %v3439
      %v3459 = vpack.c.b16 %v3442, %v3441
      %v3460 = vpack.c.b16 %v3443, %v3443
      %v3461 = vrot.slane %v3444, 1
      %v3462 = vrot.slane %v3445, 1
      %v3463 = vsel %vm1922, %v3461, %v3462
      %v3464 = vrot.slane %v3446, 1
      %v3465 = vsel %vm1922, %v3462, %v3464
      %v3466 = vrot.slane %v3447, 1
      %v3467 = vsel %vm1922, %v3464, %v3466
      %v3468 = vrot.slane %v3448, 1
      %v3469 = vsel %vm1922, %v3466, %v3468
      %v3470 = vrot.slane %v3449, 1
      %v3471 = vsel %vm1922, %v3468, %v3470
      %v3472 = vrot.slane %v3450, 1
      %v3473 = vsel %vm1922, %v3470, %v3472
      %v3474 = vrot.slane %v3451, 1
      %v3475 = vsel %vm1922, %v3472, %v3474
      %v3476 = vrot.slane %v3452, 1
      %v3477 = vsel %vm1922, %v3474, %v3476
      %v3478 = vrot.slane %v3453, 1
      %v3479 = vsel %vm1922, %v3476, %v3478
      %v3480 = vrot.slane %v3454, 1
      %v3481 = vsel %vm1922, %v3478, %v3480
      %v3482 = vrot.slane %v3455, 1
      %v3483 = vsel %vm1922, %v3480, %v3482
      %v3484 = vrot.slane %v3456, 1
      %v3485 = vsel %vm1922, %v3482, %v3484
      %v3486 = vrot.slane %v3457, 1
      %v3487 = vsel %vm1922, %v3484, %v3486
      %v3488 = vrot.slane %v3458, 1
      %v3489 = vsel %vm1922, %v3486, %v3488
      %v3490 = vrot.slane %v3459, 1
      %v3491 = vsel %vm1922, %v3488, %v3490
      %v3492 = vrot.slane %v3460, 1
      %v3493 = vsel %vm1922, %v3490, %v3492
      %3510 = vst.msk [vmem:[#allocation2 + $0x8] sm:$0xff] %vm927, %v3463
      %3511 = vst.msk [vmem:[#allocation2 + $0x18] sm:$0xff] %vm927, %v3465
      %3512 = vst.msk [vmem:[#allocation2 + $0x28] sm:$0xff] %vm927, %v3467
      %3513 = vst.msk [vmem:[#allocation2 + $0x38] sm:$0xff] %vm927, %v3469
      %3514 = vst.msk [vmem:[#allocation2 + $0x48] sm:$0xff] %vm927, %v3471
      %3515 = vst.msk [vmem:[#allocation2 + $0x58] sm:$0xff] %vm927, %v3473
      %3516 = vst.msk [vmem:[#allocation2 + $0x68] sm:$0xff] %vm927, %v3475
      %3517 = vst.msk [vmem:[#allocation2 + $0x78] sm:$0xff] %vm927, %v3477
      %3518 = vst.msk [vmem:[#allocation2 + $0x88] sm:$0xff] %vm927, %v3479
      %3519 = vst.msk [vmem:[#allocation2 + $0x98] sm:$0xff] %vm927, %v3481
      %3520 = vst.msk [vmem:[#allocation2 + $0xa8] sm:$0xff] %vm927, %v3483
      %3521 = vst.msk [vmem:[#allocation2 + $0xb8] sm:$0xff] %vm927, %v3485
      %3522 = vst.msk [vmem:[#allocation2 + $0xc8] sm:$0xff] %vm927, %v3487
      %3523 = vst.msk [vmem:[#allocation2 + $0xd8] sm:$0xff] %vm927, %v3489
      %3524 = vst.msk [vmem:[#allocation2 + $0xe8] sm:$0xff] %vm927, %v3491
      %3525 = vst.msk [vmem:[#allocation2 + $0xf8] sm:$0xff] %vm927, %v3493
      %v3526 = vld [vmem:[#allocation2] sm:$0xff]
      %v3527 = vld [vmem:[#allocation2 + $0x8] sm:$0xff]
      %v3528 = vld [vmem:[#allocation2 + $0x10] sm:$0xff]
      %v3529 = vld [vmem:[#allocation2 + $0x18] sm:$0xff]
      %v3530 = vld [vmem:[#allocation2 + $0x20] sm:$0xff]
      %v3531 = vld [vmem:[#allocation2 + $0x28] sm:$0xff]
      %v3532 = vld [vmem:[#allocation2 + $0x30] sm:$0xff]
      %v3533 = vld [vmem:[#allocation2 + $0x38] sm:$0xff]
      %v3534 = vld [vmem:[#allocation2 + $0x40] sm:$0xff]
      %v3535 = vld [vmem:[#allocation2 + $0x48] sm:$0xff]
      %v3536 = vld [vmem:[#allocation2 + $0x50] sm:$0xff]
      %v3537 = vld [vmem:[#allocation2 + $0x58] sm:$0xff]
      %v3538 = vld [vmem:[#allocation2 + $0x60] sm:$0xff]
      %v3539 = vld [vmem:[#allocation2 + $0x68] sm:$0xff]
      %v3540 = vld [vmem:[#allocation2 + $0x70] sm:$0xff]
      %v3541 = vld [vmem:[#allocation2 + $0x78] sm:$0xff]
      %v3542 = vld [vmem:[#allocation2 + $0x80] sm:$0xff]
      %v3543 = vld [vmem:[#allocation2 + $0x88] sm:$0xff]
      %v3544 = vld [vmem:[#allocation2 + $0x90] sm:$0xff]
      %v3545 = vld [vmem:[#allocation2 + $0x98] sm:$0xff]
      %v3546 = vld [vmem:[#allocation2 + $0xa0] sm:$0xff]
      %v3547 = vld [vmem:[#allocation2 + $0xa8] sm:$0xff]
      %v3548 = vld [vmem:[#allocation2 + $0xb0] sm:$0xff]
      %v3549 = vld [vmem:[#allocation2 + $0xb8] sm:$0xff]
      %v3550 = vld [vmem:[#allocation2 + $0xc0] sm:$0xff]
      %v3551 = vld [vmem:[#allocation2 + $0xc8] sm:$0xff]
      %v3552 = vld [vmem:[#allocation2 + $0xd0] sm:$0xff]
      %v3553 = vld [vmem:[#allocation2 + $0xd8] sm:$0xff]
      %v3554 = vld [vmem:[#allocation2 + $0xe0] sm:$0xff]
      %v3555 = vld [vmem:[#allocation2 + $0xe8] sm:$0xff]
      %v3556 = vld [vmem:[#allocation2 + $0xf0] sm:$0xff]
      %v3557 = vld [vmem:[#allocation2 + $0xf8] sm:$0xff]
      %v3558 = vld [vmem:[%s3] sm:$0xf]
      %v3559 = vld [vmem:[%s3 + $0x4] sm:$0xf]
      %v3560 = vld [vmem:[%s3 + $0x8] sm:$0xf]
      %v3561 = vld [vmem:[%s3 + $0xc] sm:$0xf]
      %v3562 = vld [vmem:[%s3 + $0x10] sm:$0xf]
      %v3563 = vld [vmem:[%s3 + $0x14] sm:$0xf]
      %v3564 = vld [vmem:[%s3 + $0x18] sm:$0xf]
      %v3565 = vld [vmem:[%s3 + $0x1c] sm:$0xf]
      %v3566 = vld [vmem:[%s3 + $0x20] sm:$0xf]
      %v3567 = vld [vmem:[%s3 + $0x24] sm:$0xf]
      %v3568 = vld [vmem:[%s3 + $0x28] sm:$0xf]
      %v3569 = vld [vmem:[%s3 + $0x2c] sm:$0xf]
      %v3570 = vld [vmem:[%s3 + $0x30] sm:$0xf]
      %v3571 = vld [vmem:[%s3 + $0x34] sm:$0xf]
      %v3572 = vld [vmem:[%s3 + $0x38] sm:$0xf]
      %v3573 = vld [vmem:[%s3 + $0x3c] sm:$0xf]
      %v3574 = vld [vmem:[%s3 + $0x40] sm:$0xf]
      %v3575 = vld [vmem:[%s3 + $0x44] sm:$0xf]
      %v3576 = vld [vmem:[%s4] sm:$0x1]
      %v3578 = vlaneseq
      %v3579 = vshrl.u32 %v3578, 7
      %v3580 = vsub.s32 0, %v3579
      %v3581 = vrot.slane %v3576, %v3580
      %v3601 = vunpack.c.l.b16 %v3558
      %v3602 = vunpack.c.l.b16 %v3559
      %v3603 = vunpack.c.l.b16 %v3560
      %v3604 = vunpack.c.l.b16 %v3561
      %v3605 = vunpack.c.l.b16 %v3562
      %v3606 = vunpack.c.l.b16 %v3563
      %v3607 = vunpack.c.l.b16 %v3564
      %v3608 = vunpack.c.l.b16 %v3565
      %v3609 = vunpack.c.l.b16 %v3566
      %v3610 = vunpack.c.l.b16 %v3567
      %v3611 = vunpack.c.l.b16 %v3568
      %v3612 = vunpack.c.l.b16 %v3569
      %v3613 = vunpack.c.l.b16 %v3570
      %v3614 = vunpack.c.l.b16 %v3571
      %v3615 = vunpack.c.l.b16 %v3572
      %v3616 = vunpack.c.l.b16 %v3573
      %v3617 = vunpack.c.l.b16 %v3574
      %v3618 = vunpack.c.l.b16 %v3575
      %v3619 = vpack.c.b16 %v3602, %v3601
      %v3620 = vpack.c.b16 %v3604, %v3603
      %v3621 = vpack.c.b16 %v3606, %v3605
      %v3622 = vpack.c.b16 %v3608, %v3607
      %v3623 = vpack.c.b16 %v3610, %v3609
      %v3624 = vpack.c.b16 %v3612, %v3611
      %v3625 = vpack.c.b16 %v3614, %v3613
      %v3626 = vpack.c.b16 %v3616, %v3615
      %v3627 = vpack.c.b16 %v3618, %v3617
      %v3638 = vsel %vm927, %v3527, 0
      %v3641 = vsel %vm927, %v3529, 0
      %v3644 = vsel %vm927, %v3531, 0
      %v3647 = vsel %vm927, %v3533, 0
      %v3650 = vsel %vm927, %v3535, 0
      %v3653 = vsel %vm927, %v3537, 0
      %v3656 = vsel %vm927, %v3539, 0
      %v3659 = vsel %vm927, %v3541, 0
      %v3662 = vsel %vm927, %v3543, 0
      %v3665 = vsel %vm927, %v3545, 0
      %v3668 = vsel %vm927, %v3547, 0
      %v3671 = vsel %vm927, %v3549, 0
      %v3674 = vsel %vm927, %v3551, 0
      %v3677 = vsel %vm927, %v3553, 0
      %v3680 = vsel %vm927, %v3555, 0
      %v3683 = vsel %vm927, %v3557, 0
      %3685 = vmatprep.subr.bf16.mxu0 0
      %3686 = vmatpush1.bf16.msra.mxu0 %v3619
      %3687 = vmatprep.subr.bf16.mxu0 0
      %3688 = vmatpush1.bf16.msra.mxu0 %v3620
      %3689 = vmatprep.subr.bf16.mxu0 0
      %3690 = vmatpush1.bf16.msra.mxu0 %v3621
      %3691 = vmatprep.subr.bf16.mxu0 0
      %3692 = vmatpush1.bf16.msra.mxu0 %v3622
      %3693 = vmatprep.subr.bf16.mxu0 0
      %3694 = vmatpush1.bf16.msra.mxu0 %v3623
      %3695 = vmatprep.subr.bf16.mxu0 0
      %3696 = vmatpush1.bf16.msra.mxu0 %v3624
      %3697 = vmatprep.subr.bf16.mxu0 0
      %3698 = vmatpush1.bf16.msra.mxu0 %v3625
      %3699 = vmatprep.subr.bf16.mxu0 0
      %3700 = vmatpush1.bf16.msra.mxu0 %v3626
      %3701 = vmatprep.subr.bf16.mxu0 0
      %3702 = vmatpush1.bf16.msra.mxu0 %v3627
      %3703 = vmatprep.subr.bf16.mxu0 0
      %3704 = vmatpush1.bf16.msra.mxu0 0
      %3705 = vmatprep.subr.bf16.mxu0 0
      %3706 = vmatpush1.bf16.msra.mxu0 0
      %3707 = vmatprep.subr.bf16.mxu0 0
      %3708 = vmatpush1.bf16.msra.mxu0 0
      %3709 = vmatprep.subr.bf16.mxu0 0
      %3710 = vmatpush1.bf16.msra.mxu0 0
      %3711 = vmatprep.subr.bf16.mxu0 0
      %3712 = vmatpush1.bf16.msra.mxu0 0
      %3713 = vmatprep.subr.bf16.mxu0 0
      %3714 = vmatpush1.bf16.msra.mxu0 0
      %3715 = vmatprep.subr.bf16.mxu0 0
      %3716 = vmatpush1.bf16.msra.mxu0 0
      %3717 = vmatprep.mubr.bf16.mxu0 %v3638
      %3718 = vmatmul.mubr.bf16.gmra.mrb[0].mxu0 %v3526
      %v3719 = vpop.f32.mrb[0].mxu0
      %v3720 = vadd.f32 %v3581, %v3719
      %v3721 = vpop.f32.mrb[0].mxu0
      %v3722 = vpop.f32.mrb[0].mxu0
      %v3723 = vadd.f32 %v3581, %v3722
      %v3724 = vpop.f32.mrb[0].mxu0
      %3725 = vmatprep.mubr.bf16.mxu0 %v3641
      %3726 = vmatmul.mubr.bf16.gmra.mrb[0].mxu0 %v3528
      %v3727 = vpop.f32.mrb[0].mxu0
      %v3728 = vadd.f32 %v3581, %v3727
      %v3729 = vpop.f32.mrb[0].mxu0
      %v3730 = vpop.f32.mrb[0].mxu0
      %v3731 = vadd.f32 %v3581, %v3730
      %v3732 = vpop.f32.mrb[0].mxu0
      %3733 = vmatprep.mubr.bf16.mxu0 %v3644
      %3734 = vmatmul.mubr.bf16.gmra.mrb[0].mxu0 %v3530
      %v3735 = vpop.f32.mrb[0].mxu0
      %v3736 = vadd.f32 %v3581, %v3735
      %v3737 = vpop.f32.mrb[0].mxu0
      %v3738 = vpop.f32.mrb[0].mxu0
      %v3739 = vadd.f32 %v3581, %v3738
      %v3740 = vpop.f32.mrb[0].mxu0
      %3741 = vmatprep.mubr.bf16.mxu0 %v3647
      %3742 = vmatmul.mubr.bf16.gmra.mrb[0].mxu0 %v3532
      %v3743 = vpop.f32.mrb[0].mxu0
      %v3744 = vadd.f32 %v3581, %v3743
      %v3745 = vpop.f32.mrb[0].mxu0
      %v3746 = vpop.f32.mrb[0].mxu0
      %v3747 = vadd.f32 %v3581, %v3746
      %v3748 = vpop.f32.mrb[0].mxu0
      %3749 = vmatprep.mubr.bf16.mxu0 %v3650
      %3750 = vmatmul.mubr.bf16.gmra.mrb[0].mxu0 %v3534
      %v3751 = vpop.f32.mrb[0].mxu0
      %v3752 = vadd.f32 %v3581, %v3751
      %v3753 = vpop.f32.mrb[0].mxu0
      %v3754 = vpop.f32.mrb[0].mxu0
      %v3755 = vadd.f32 %v3581, %v3754
      %v3756 = vpop.f32.mrb[0].mxu0
      %3757 = vmatprep.mubr.bf16.mxu0 %v3653
      %3758 = vmatmul.mubr.bf16.gmra.mrb[0].mxu0 %v3536
      %v3759 = vpop.f32.mrb[0].mxu0
      %v3760 = vadd.f32 %v3581, %v3759
      %v3761 = vpop.f32.mrb[0].mxu0
      %v3762 = vpop.f32.mrb[0].mxu0
      %v3763 = vadd.f32 %v3581, %v3762
      %v3764 = vpop.f32.mrb[0].mxu0
      %3765 = vmatprep.mubr.bf16.mxu0 %v3656
      %3766 = vmatmul.mubr.bf16.gmra.mrb[0].mxu0 %v3538
      %v3767 = vpop.f32.mrb[0].mxu0
      %v3768 = vadd.f32 %v3581, %v3767
      %v3769 = vpop.f32.mrb[0].mxu0
      %v3770 = vpop.f32.mrb[0].mxu0
      %v3771 = vadd.f32 %v3581, %v3770
      %v3772 = vpop.f32.mrb[0].mxu0
      %3773 = vmatprep.mubr.bf16.mxu0 %v3659
      %3774 = vmatmul.mubr.bf16.gmra.mrb[0].mxu0 %v3540
      %v3775 = vpop.f32.mrb[0].mxu0
      %v3776 = vadd.f32 %v3581, %v3775
      %v3777 = vpop.f32.mrb[0].mxu0
      %v3778 = vpop.f32.mrb[0].mxu0
      %v3779 = vadd.f32 %v3581, %v3778
      %v3780 = vpop.f32.mrb[0].mxu0
      %3781 = vmatprep.mubr.bf16.mxu0 %v3662
      %3782 = vmatmul.mubr.bf16.gmra.mrb[0].mxu0 %v3542
      %v3783 = vpop.f32.mrb[0].mxu0
      %v3784 = vadd.f32 %v3581, %v3783
      %v3785 = vpop.f32.mrb[0].mxu0
      %v3786 = vpop.f32.mrb[0].mxu0
      %v3787 = vadd.f32 %v3581, %v3786
      %v3788 = vpop.f32.mrb[0].mxu0
      %3789 = vmatprep.mubr.bf16.mxu0 %v3665
      %3790 = vmatmul.mubr.bf16.gmra.mrb[0].mxu0 %v3544
      %v3791 = vpop.f32.mrb[0].mxu0
      %v3792 = vadd.f32 %v3581, %v3791
      %v3793 = vpop.f32.mrb[0].mxu0
      %v3794 = vpop.f32.mrb[0].mxu0
      %v3795 = vadd.f32 %v3581, %v3794
      %v3796 = vpop.f32.mrb[0].mxu0
      %3797 = vmatprep.mubr.bf16.mxu0 %v3668
      %3798 = vmatmul.mubr.bf16.gmra.mrb[0].mxu0 %v3546
      %v3799 = vpop.f32.mrb[0].mxu0
      %v3800 = vadd.f32 %v3581, %v3799
      %v3801 = vpop.f32.mrb[0].mxu0
      %v3802 = vpop.f32.mrb[0].mxu0
      %v3803 = vadd.f32 %v3581, %v3802
      %v3804 = vpop.f32.mrb[0].mxu0
      %3805 = vmatprep.mubr.bf16.mxu0 %v3671
      %3806 = vmatmul.mubr.bf16.gmra.mrb[0].mxu0 %v3548
      %v3807 = vpop.f32.mrb[0].mxu0
      %v3808 = vadd.f32 %v3581, %v3807
      %v3809 = vpop.f32.mrb[0].mxu0
      %v3810 = vpop.f32.mrb[0].mxu0
      %v3811 = vadd.f32 %v3581, %v3810
      %v3812 = vpop.f32.mrb[0].mxu0
      %3813 = vmatprep.mubr.bf16.mxu0 %v3674
      %3814 = vmatmul.mubr.bf16.gmra.mrb[0].mxu0 %v3550
      %v3815 = vpop.f32.mrb[0].mxu0
      %v3816 = vadd.f32 %v3581, %v3815
      %v3817 = vpop.f32.mrb[0].mxu0
      %v3818 = vpop.f32.mrb[0].mxu0
      %v3819 = vadd.f32 %v3581, %v3818
      %v3820 = vpop.f32.mrb[0].mxu0
      %3821 = vmatprep.mubr.bf16.mxu0 %v3677
      %3822 = vmatmul.mubr.bf16.gmra.mrb[0].mxu0 %v3552
      %v3823 = vpop.f32.mrb[0].mxu0
      %v3824 = vadd.f32 %v3581, %v3823
      %v3825 = vpop.f32.mrb[0].mxu0
      %v3826 = vpop.f32.mrb[0].mxu0
      %v3827 = vadd.f32 %v3581, %v3826
      %v3828 = vpop.f32.mrb[0].mxu0
      %3829 = vmatprep.mubr.bf16.mxu0 %v3680
      %3830 = vmatmul.mubr.bf16.gmra.mrb[0].mxu0 %v3554
      %v3831 = vpop.f32.mrb[0].mxu0
      %v3832 = vadd.f32 %v3581, %v3831
      %v3833 = vpop.f32.mrb[0].mxu0
      %v3834 = vpop.f32.mrb[0].mxu0
      %v3835 = vadd.f32 %v3581, %v3834
      %v3836 = vpop.f32.mrb[0].mxu0
      %3837 = vmatprep.mubr.bf16.mxu0 %v3683
      %3838 = vmatmul.mubr.bf16.gmra.mrb[0].mxu0 %v3556
      %v3839 = vpop.f32.mrb[0].mxu0
      %v3840 = vadd.f32 %v3581, %v3839
      %v3841 = vpop.f32.mrb[0].mxu0
      %v3842 = vpop.f32.mrb[0].mxu0
      %v3843 = vadd.f32 %v3581, %v3842
      %v3844 = vpop.f32.mrb[0].mxu0
      %3845 = vdwg.mxu0
      %v3846 = vmax.f32 %v3720, 0.0
      %v3847 = vmax.f32 %v3723, 0.0
      %v3848 = vmax.f32 %v3728, 0.0
      %v3849 = vmax.f32 %v3731, 0.0
      %v3850 = vmax.f32 %v3736, 0.0
      %v3851 = vmax.f32 %v3739, 0.0
      %v3852 = vmax.f32 %v3744, 0.0
      %v3853 = vmax.f32 %v3747, 0.0
      %v3854 = vmax.f32 %v3752, 0.0
      %v3855 = vmax.f32 %v3755, 0.0
      %v3856 = vmax.f32 %v3760, 0.0
      %v3857 = vmax.f32 %v3763, 0.0
      %v3858 = vmax.f32 %v3768, 0.0
      %v3859 = vmax.f32 %v3771, 0.0
      %v3860 = vmax.f32 %v3776, 0.0
      %v3861 = vmax.f32 %v3779, 0.0
      %v3862 = vmax.f32 %v3784, 0.0
      %v3863 = vmax.f32 %v3787, 0.0
      %v3864 = vmax.f32 %v3792, 0.0
      %v3865 = vmax.f32 %v3795, 0.0
      %v3866 = vmax.f32 %v3800, 0.0
      %v3867 = vmax.f32 %v3803, 0.0
      %v3868 = vmax.f32 %v3808, 0.0
      %v3869 = vmax.f32 %v3811, 0.0
      %v3870 = vmax.f32 %v3816, 0.0
      %v3871 = vmax.f32 %v3819, 0.0
      %v3872 = vmax.f32 %v3824, 0.0
      %v3873 = vmax.f32 %v3827, 0.0
      %v3874 = vmax.f32 %v3832, 0.0
      %v3875 = vmax.f32 %v3835, 0.0
      %v3876 = vmax.f32 %v3840, 0.0
      %v3877 = vmax.f32 %v3843, 0.0
      %v3878 = vpack.c.bf16 %v3847, %v3846
      %v3879 = vpack.c.bf16 %v3849, %v3848
      %v3880 = vpack.c.bf16 %v3851, %v3850
      %v3881 = vpack.c.bf16 %v3853, %v3852
      %v3882 = vpack.c.bf16 %v3855, %v3854
      %v3883 = vpack.c.bf16 %v3857, %v3856
      %v3884 = vpack.c.bf16 %v3859, %v3858
      %v3885 = vpack.c.bf16 %v3861, %v3860
      %v3886 = vpack.c.bf16 %v3863, %v3862
      %v3887 = vpack.c.bf16 %v3865, %v3864
      %v3888 = vpack.c.bf16 %v3867, %v3866
      %v3889 = vpack.c.bf16 %v3869, %v3868
      %v3890 = vpack.c.bf16 %v3871, %v3870
      %v3891 = vpack.c.bf16 %v3873, %v3872
      %v3892 = vpack.c.bf16 %v3875, %v3874
      %v3893 = vpack.c.bf16 %v3877, %v3876
      %v3894 = vld [vmem:[%s5] sm:$0xf]
      %v3895 = vld [vmem:[%s5 + $0x4] sm:$0xf]
      %v3896 = vld [vmem:[%s6] sm:$0x1]
      %v3898 = vlaneseq
      %v3899 = vshrl.u32 %v3898, 7
      %v3900 = vsub.s32 0, %v3899
      %v3901 = vrot.slane %v3896, %v3900
      %v3905 = vunpack.c.l.b16 %v3894
      %v3906 = vunpack.c.l.b16 %v3895
      %v3907 = vpack.c.b16 %v3906, %v3905
      %v3910 = vsel %vm927, %v3878, 0
      %v3913 = vsel %vm927, %v3879, 0
      %v3916 = vsel %vm927, %v3880, 0
      %v3919 = vsel %vm927, %v3881, 0
      %v3922 = vsel %vm927, %v3882, 0
      %v3925 = vsel %vm927, %v3883, 0
      %v3928 = vsel %vm927, %v3884, 0
      %v3931 = vsel %vm927, %v3885, 0
      %v3934 = vsel %vm927, %v3886, 0
      %v3937 = vsel %vm927, %v3887, 0
      %v3940 = vsel %vm927, %v3888, 0
      %v3943 = vsel %vm927, %v3889, 0
      %v3946 = vsel %vm927, %v3890, 0
      %v3949 = vsel %vm927, %v3891, 0
      %v3952 = vsel %vm927, %v3892, 0
      %v3955 = vsel %vm927, %v3893, 0
      %3957 = vmatprep.subr.bf16.mxu0 0
      %3958 = vmatpush1.bf16.msra.mxu0 %v3907
      %3959 = vmatprep.subr.bf16.mxu0 0
      %3960 = vmatpush1.bf16.msra.mxu0 0
      %3961 = vmatprep.subr.bf16.mxu0 0
      %3962 = vmatpush1.bf16.msra.mxu0 0
      %3963 = vmatprep.subr.bf16.mxu0 0
      %3964 = vmatpush1.bf16.msra.mxu0 0
      %3965 = vmatprep.subr.bf16.mxu0 0
      %3966 = vmatpush1.bf16.msra.mxu0 0
      %3967 = vmatprep.subr.bf16.mxu0 0
      %3968 = vmatpush1.bf16.msra.mxu0 0
      %3969 = vmatprep.subr.bf16.mxu0 0
      %3970 = vmatpush1.bf16.msra.mxu0 0
      %3971 = vmatprep.subr.bf16.mxu0 0
      %3972 = vmatpush1.bf16.msra.mxu0 0
      %3973 = vmatprep.subr.bf16.mxu0 0
      %3974 = vmatpush1.bf16.msra.mxu0 0
      %3975 = vmatprep.subr.bf16.mxu0 0
      %3976 = vmatpush1.bf16.msra.mxu0 0
      %3977 = vmatprep.subr.bf16.mxu0 0
      %3978 = vmatpush1.bf16.msra.mxu0 0
      %3979 = vmatprep.subr.bf16.mxu0 0
      %3980 = vmatpush1.bf16.msra.mxu0 0
      %3981 = vmatprep.subr.bf16.mxu0 0
      %3982 = vmatpush1.bf16.msra.mxu0 0
      %3983 = vmatprep.subr.bf16.mxu0 0
      %3984 = vmatpush1.bf16.msra.mxu0 0
      %3985 = vmatprep.subr.bf16.mxu0 0
      %3986 = vmatpush1.bf16.msra.mxu0 0
      %3987 = vmatprep.subr.bf16.mxu0 0
      %3988 = vmatpush1.bf16.msra.mxu0 0
      %3989 = vmatprep.mubr.bf16.mxu0 0
      %3990 = vmatmul.mubr.bf16.gmra.mrb[0].mxu0 %v3910
      %v3991 = vpop.f32.mrb[0].mxu0
      %v3992 = vadd.f32 %v3901, %v3991
      %v3993 = vpop.f32.mrb[0].mxu0
      %v3994 = vpop.f32.mrb[0].mxu0
      %v3995 = vadd.f32 %v3901, %v3994
      %v3996 = vpop.f32.mrb[0].mxu0
      %3997 = vmatprep.mubr.bf16.mxu0 0
      %3998 = vmatmul.mubr.bf16.gmra.mrb[0].mxu0 %v3913
      %v3999 = vpop.f32.mrb[0].mxu0
      %v4000 = vadd.f32 %v3901, %v3999
      %v4001 = vpop.f32.mrb[0].mxu0
      %v4002 = vpop.f32.mrb[0].mxu0
      %v4003 = vadd.f32 %v3901, %v4002
      %v4004 = vpop.f32.mrb[0].mxu0
      %4005 = vmatprep.mubr.bf16.mxu0 0
      %4006 = vmatmul.mubr.bf16.gmra.mrb[0].mxu0 %v3916
      %v4007 = vpop.f32.mrb[0].mxu0
      %v4008 = vadd.f32 %v3901, %v4007
      %v4009 = vpop.f32.mrb[0].mxu0
      %v4010 = vpop.f32.mrb[0].mxu0
      %v4011 = vadd.f32 %v3901, %v4010
      %v4012 = vpop.f32.mrb[0].mxu0
      %4013 = vmatprep.mubr.bf16.mxu0 0
      %4014 = vmatmul.mubr.bf16.gmra.mrb[0].mxu0 %v3919
      %v4015 = vpop.f32.mrb[0].mxu0
      %v4016 = vadd.f32 %v3901, %v4015
      %v4017 = vpop.f32.mrb[0].mxu0
      %v4018 = vpop.f32.mrb[0].mxu0
      %v4019 = vadd.f32 %v3901, %v4018
      %v4020 = vpop.f32.mrb[0].mxu0
      %4021 = vmatprep.mubr.bf16.mxu0 0
      %4022 = vmatmul.mubr.bf16.gmra.mrb[0].mxu0 %v3922
      %v4023 = vpop.f32.mrb[0].mxu0
      %v4024 = vadd.f32 %v3901, %v4023
      %v4025 = vpop.f32.mrb[0].mxu0
      %v4026 = vpop.f32.mrb[0].mxu0
      %v4027 = vadd.f32 %v3901, %v4026
      %v4028 = vpop.f32.mrb[0].mxu0
      %4029 = vmatprep.mubr.bf16.mxu0 0
      %4030 = vmatmul.mubr.bf16.gmra.mrb[0].mxu0 %v3925
      %v4031 = vpop.f32.mrb[0].mxu0
      %v4032 = vadd.f32 %v3901, %v4031
      %v4033 = vpop.f32.mrb[0].mxu0
      %v4034 = vpop.f32.mrb[0].mxu0
      %v4035 = vadd.f32 %v3901, %v4034
      %v4036 = vpop.f32.mrb[0].mxu0
      %4037 = vmatprep.mubr.bf16.mxu0 0
      %4038 = vmatmul.mubr.bf16.gmra.mrb[0].mxu0 %v3928
      %v4039 = vpop.f32.mrb[0].mxu0
      %v4040 = vadd.f32 %v3901, %v4039
      %v4041 = vpop.f32.mrb[0].mxu0
      %v4042 = vpop.f32.mrb[0].mxu0
      %v4043 = vadd.f32 %v3901, %v4042
      %v4044 = vpop.f32.mrb[0].mxu0
      %4045 = vmatprep.mubr.bf16.mxu0 0
      %4046 = vmatmul.mubr.bf16.gmra.mrb[0].mxu0 %v3931
      %v4047 = vpop.f32.mrb[0].mxu0
      %v4048 = vadd.f32 %v3901, %v4047
      %v4049 = vpop.f32.mrb[0].mxu0
      %v4050 = vpop.f32.mrb[0].mxu0
      %v4051 = vadd.f32 %v3901, %v4050
      %v4052 = vpop.f32.mrb[0].mxu0
      %4053 = vmatprep.mubr.bf16.mxu0 0
      %4054 = vmatmul.mubr.bf16.gmra.mrb[0].mxu0 %v3934
      %v4055 = vpop.f32.mrb[0].mxu0
      %v4056 = vadd.f32 %v3901, %v4055
      %v4057 = vpop.f32.mrb[0].mxu0
      %v4058 = vpop.f32.mrb[0].mxu0
      %v4059 = vadd.f32 %v3901, %v4058
      %v4060 = vpop.f32.mrb[0].mxu0
      %4061 = vmatprep.mubr.bf16.mxu0 0
      %4062 = vmatmul.mubr.bf16.gmra.mrb[0].mxu0 %v3937
      %v4063 = vpop.f32.mrb[0].mxu0
      %v4064 = vadd.f32 %v3901, %v4063
      %v4065 = vpop.f32.mrb[0].mxu0
      %v4066 = vpop.f32.mrb[0].mxu0
      %v4067 = vadd.f32 %v3901, %v4066
      %v4068 = vpop.f32.mrb[0].mxu0
      %4069 = vmatprep.mubr.bf16.mxu0 0
      %4070 = vmatmul.mubr.bf16.gmra.mrb[0].mxu0 %v3940
      %v4071 = vpop.f32.mrb[0].mxu0
      %v4072 = vadd.f32 %v3901, %v4071
      %v4073 = vpop.f32.mrb[0].mxu0
      %v4074 = vpop.f32.mrb[0].mxu0
      %v4075 = vadd.f32 %v3901, %v4074
      %v4076 = vpop.f32.mrb[0].mxu0
      %4077 = vmatprep.mubr.bf16.mxu0 0
      %4078 = vmatmul.mubr.bf16.gmra.mrb[0].mxu0 %v3943
      %v4079 = vpop.f32.mrb[0].mxu0
      %v4080 = vadd.f32 %v3901, %v4079
      %v4081 = vpop.f32.mrb[0].mxu0
      %v4082 = vpop.f32.mrb[0].mxu0
      %v4083 = vadd.f32 %v3901, %v4082
      %v4084 = vpop.f32.mrb[0].mxu0
      %4085 = vmatprep.mubr.bf16.mxu0 0
      %4086 = vmatmul.mubr.bf16.gmra.mrb[0].mxu0 %v3946
      %v4087 = vpop.f32.mrb[0].mxu0
      %v4088 = vadd.f32 %v3901, %v4087
      %v4089 = vpop.f32.mrb[0].mxu0
      %v4090 = vpop.f32.mrb[0].mxu0
      %v4091 = vadd.f32 %v3901, %v4090
      %v4092 = vpop.f32.mrb[0].mxu0
      %4093 = vmatprep.mubr.bf16.mxu0 0
      %4094 = vmatmul.mubr.bf16.gmra.mrb[0].mxu0 %v3949
      %v4095 = vpop.f32.mrb[0].mxu0
      %v4096 = vadd.f32 %v3901, %v4095
      %v4097 = vpop.f32.mrb[0].mxu0
      %v4098 = vpop.f32.mrb[0].mxu0
      %v4099 = vadd.f32 %v3901, %v4098
      %v4100 = vpop.f32.mrb[0].mxu0
      %4101 = vmatprep.mubr.bf16.mxu0 0
      %4102 = vmatmul.mubr.bf16.gmra.mrb[0].mxu0 %v3952
      %v4103 = vpop.f32.mrb[0].mxu0
      %v4104 = vadd.f32 %v3901, %v4103
      %v4105 = vpop.f32.mrb[0].mxu0
      %v4106 = vpop.f32.mrb[0].mxu0
      %v4107 = vadd.f32 %v3901, %v4106
      %v4108 = vpop.f32.mrb[0].mxu0
      %4109 = vmatprep.mubr.bf16.mxu0 0
      %4110 = vmatmul.mubr.bf16.gmra.mrb[0].mxu0 %v3955
      %v4111 = vpop.f32.mrb[0].mxu0
      %v4112 = vadd.f32 %v3901, %v4111
      %v4113 = vpop.f32.mrb[0].mxu0
      %v4114 = vpop.f32.mrb[0].mxu0
      %v4115 = vadd.f32 %v3901, %v4114
      %v4116 = vpop.f32.mrb[0].mxu0
      %4117 = vdwg.mxu0
      %v4118 = vld [vmem:[%s339] sm:$0xf]
      %v4119 = vld [vmem:[%s339 + $0x4] sm:$0xf]
      %v4120 = vld [vmem:[%s339 + $0x8] sm:$0xf]
      %v4121 = vld [vmem:[%s339 + $0xc] sm:$0xf]
      %v4122 = vld [vmem:[%s339 + $0x10] sm:$0xf]
      %v4123 = vld [vmem:[%s339 + $0x14] sm:$0xf]
      %v4124 = vld [vmem:[%s339 + $0x18] sm:$0xf]
      %v4125 = vld [vmem:[%s339 + $0x1c] sm:$0xf]
      %v4126 = vld [vmem:[%s339 + $0x20] sm:$0xf]
      %v4127 = vld [vmem:[%s339 + $0x24] sm:$0xf]
      %v4128 = vld [vmem:[%s339 + $0x28] sm:$0xf]
      %v4129 = vld [vmem:[%s339 + $0x2c] sm:$0xf]
      %v4130 = vld [vmem:[%s339 + $0x30] sm:$0xf]
      %v4131 = vld [vmem:[%s339 + $0x34] sm:$0xf]
      %v4132 = vld [vmem:[%s339 + $0x38] sm:$0xf]
      %v4133 = vld [vmem:[%s339 + $0x3c] sm:$0xf]
      %v4134 = vld [vmem:[%s339 + $0x40] sm:$0xf]
      %v4135 = vld [vmem:[%s339 + $0x44] sm:$0xf]
      %v4136 = vld [vmem:[%s339 + $0x48] sm:$0xf]
      %v4137 = vld [vmem:[%s339 + $0x4c] sm:$0xf]
      %v4138 = vld [vmem:[%s339 + $0x50] sm:$0xf]
      %v4139 = vld [vmem:[%s339 + $0x54] sm:$0xf]
      %v4140 = vld [vmem:[%s339 + $0x58] sm:$0xf]
      %v4141 = vld [vmem:[%s339 + $0x5c] sm:$0xf]
      %v4142 = vld [vmem:[%s339 + $0x60] sm:$0xf]
      %v4143 = vld [vmem:[%s339 + $0x64] sm:$0xf]
      %v4144 = vld [vmem:[%s339 + $0x68] sm:$0xf]
      %v4145 = vld [vmem:[%s339 + $0x6c] sm:$0xf]
      %v4146 = vld [vmem:[%s339 + $0x70] sm:$0xf]
      %v4147 = vld [vmem:[%s339 + $0x74] sm:$0xf]
      %v4148 = vld [vmem:[%s339 + $0x78] sm:$0xf]
      %v4149 = vld [vmem:[%s339 + $0x7c] sm:$0xf]
      %v4150 = vunpack.c.l.bf16 %v4118
      %v4151 = vunpack.c.l.bf16 %v4119
      %v4152 = vunpack.c.l.bf16 %v4120
      %v4153 = vunpack.c.l.bf16 %v4121
      %v4154 = vunpack.c.l.bf16 %v4122
      %v4155 = vunpack.c.l.bf16 %v4123
      %v4156 = vunpack.c.l.bf16 %v4124
      %v4157 = vunpack.c.l.bf16 %v4125
      %v4158 = vunpack.c.l.bf16 %v4126
      %v4159 = vunpack.c.l.bf16 %v4127
      %v4160 = vunpack.c.l.bf16 %v4128
      %v4161 = vunpack.c.l.bf16 %v4129
      %v4162 = vunpack.c.l.bf16 %v4130
      %v4163 = vunpack.c.l.bf16 %v4131
      %v4164 = vunpack.c.l.bf16 %v4132
      %v4165 = vunpack.c.l.bf16 %v4133
      %v4166 = vunpack.c.l.bf16 %v4134
      %v4167 = vunpack.c.l.bf16 %v4135
      %v4168 = vunpack.c.l.bf16 %v4136
      %v4169 = vunpack.c.l.bf16 %v4137
      %v4170 = vunpack.c.l.bf16 %v4138
      %v4171 = vunpack.c.l.bf16 %v4139
      %v4172 = vunpack.c.l.bf16 %v4140
      %v4173 = vunpack.c.l.bf16 %v4141
      %v4174 = vunpack.c.l.bf16 %v4142
      %v4175 = vunpack.c.l.bf16 %v4143
      %v4176 = vunpack.c.l.bf16 %v4144
      %v4177 = vunpack.c.l.bf16 %v4145
      %v4178 = vunpack.c.l.bf16 %v4146
      %v4179 = vunpack.c.l.bf16 %v4147
      %v4180 = vunpack.c.l.bf16 %v4148
      %v4181 = vunpack.c.l.bf16 %v4149
      %v4182 = vadd.f32 %v3992, %v4150
      %v4183 = vadd.f32 %v3995, %v4151
      %v4184 = vadd.f32 %v4000, %v4152
      %v4185 = vadd.f32 %v4003, %v4153
      %v4186 = vadd.f32 %v4008, %v4154
      %v4187 = vadd.f32 %v4011, %v4155
      %v4188 = vadd.f32 %v4016, %v4156
      %v4189 = vadd.f32 %v4019, %v4157
      %v4190 = vadd.f32 %v4024, %v4158
      %v4191 = vadd.f32 %v4027, %v4159
      %v4192 = vadd.f32 %v4032, %v4160
      %v4193 = vadd.f32 %v4035, %v4161
      %v4194 = vadd.f32 %v4040, %v4162
      %v4195 = vadd.f32 %v4043, %v4163
      %v4196 = vadd.f32 %v4048, %v4164
      %v4197 = vadd.f32 %v4051, %v4165
      %v4198 = vadd.f32 %v4056, %v4166
      %v4199 = vadd.f32 %v4059, %v4167
      %v4200 = vadd.f32 %v4064, %v4168
      %v4201 = vadd.f32 %v4067, %v4169
      %v4202 = vadd.f32 %v4072, %v4170
      %v4203 = vadd.f32 %v4075, %v4171
      %v4204 = vadd.f32 %v4080, %v4172
      %v4205 = vadd.f32 %v4083, %v4173
      %v4206 = vadd.f32 %v4088, %v4174
      %v4207 = vadd.f32 %v4091, %v4175
      %v4208 = vadd.f32 %v4096, %v4176
      %v4209 = vadd.f32 %v4099, %v4177
      %v4210 = vadd.f32 %v4104, %v4178
      %v4211 = vadd.f32 %v4107, %v4179
      %v4212 = vadd.f32 %v4112, %v4180
      %v4213 = vadd.f32 %v4115, %v4181
      %v4214 = vmax.f32 %v4182, 0.0
      %v4215 = vmax.f32 %v4183, 0.0
      %v4216 = vmax.f32 %v4184, 0.0
      %v4217 = vmax.f32 %v4185, 0.0
      %v4218 = vmax.f32 %v4186, 0.0
      %v4219 = vmax.f32 %v4187, 0.0
      %v4220 = vmax.f32 %v4188, 0.0
      %v4221 = vmax.f32 %v4189, 0.0
      %v4222 = vmax.f32 %v4190, 0.0
      %v4223 = vmax.f32 %v4191, 0.0
      %v4224 = vmax.f32 %v4192, 0.0
      %v4225 = vmax.f32 %v4193, 0.0
      %v4226 = vmax.f32 %v4194, 0.0
      %v4227 = vmax.f32 %v4195, 0.0
      %v4228 = vmax.f32 %v4196, 0.0
      %v4229 = vmax.f32 %v4197, 0.0
      %v4230 = vmax.f32 %v4198, 0.0
      %v4231 = vmax.f32 %v4199, 0.0
      %v4232 = vmax.f32 %v4200, 0.0
      %v4233 = vmax.f32 %v4201, 0.0
      %v4234 = vmax.f32 %v4202, 0.0
      %v4235 = vmax.f32 %v4203, 0.0
      %v4236 = vmax.f32 %v4204, 0.0
      %v4237 = vmax.f32 %v4205, 0.0
      %v4238 = vmax.f32 %v4206, 0.0
      %v4239 = vmax.f32 %v4207, 0.0
      %v4240 = vmax.f32 %v4208, 0.0
      %v4241 = vmax.f32 %v4209, 0.0
      %v4242 = vmax.f32 %v4210, 0.0
      %v4243 = vmax.f32 %v4211, 0.0
      %v4244 = vmax.f32 %v4212, 0.0
      %v4245 = vmax.f32 %v4213, 0.0
      %4246 = vxpose.xlu0.b32.start [1/16] %v4214, 128
      %4247 = vxpose.xlu0.b32.cont [2/16] %v4215, 128
      %4248 = vxpose.xlu0.b32.cont [3/16] %v4216, 128
      %4249 = vxpose.xlu0.b32.cont [4/16] %v4217, 128
      %4250 = vxpose.xlu0.b32.cont [5/16] %v4218, 128
      %4251 = vxpose.xlu0.b32.cont [6/16] %v4219, 128
      %4252 = vxpose.xlu0.b32.cont [7/16] %v4220, 128
      %4253 = vxpose.xlu0.b32.cont [8/16] %v4221, 128
      %4254 = vxpose.xlu0.b32.cont [9/16] %v4222, 128
      %4255 = vxpose.xlu0.b32.cont [10/16] %v4223, 128
      %4256 = vxpose.xlu0.b32.cont [11/16] %v4224, 128
      %4257 = vxpose.xlu0.b32.cont [12/16] %v4225, 128
      %4258 = vxpose.xlu0.b32.cont [13/16] %v4226, 128
      %4259 = vxpose.xlu0.b32.cont [14/16] %v4227, 128
      %4260 = vxpose.xlu0.b32.cont [15/16] %v4228, 128
      %4261 = vxpose.xlu0.b32.end [16/16] %v4229, 128
      %v4262 = vpop.trf.xlu0
      %v4263 = vpop.trf.xlu0
      %v4264 = vpop.trf.xlu0
      %v4265 = vpop.trf.xlu0
      %v4266 = vpop.trf.xlu0
      %v4267 = vpop.trf.xlu0
      %v4268 = vpop.trf.xlu0
      %v4269 = vpop.trf.xlu0
      %v4270 = vpop.trf.xlu0
      %v4271 = vpop.trf.xlu0
      %v4272 = vpop.trf.xlu0
      %v4273 = vpop.trf.xlu0
      %v4274 = vpop.trf.xlu0
      %v4275 = vpop.trf.xlu0
      %v4276 = vpop.trf.xlu0
      %v4277 = vpop.trf.xlu0
      %4278 = vxpose.xlu0.b32.start [1/16] %v4230, 128
      %4279 = vxpose.xlu0.b32.cont [2/16] %v4231, 128
      %4280 = vxpose.xlu0.b32.cont [3/16] %v4232, 128
      %4281 = vxpose.xlu0.b32.cont [4/16] %v4233, 128
      %4282 = vxpose.xlu0.b32.cont [5/16] %v4234, 128
      %4283 = vxpose.xlu0.b32.cont [6/16] %v4235, 128
      %4284 = vxpose.xlu0.b32.cont [7/16] %v4236, 128
      %4285 = vxpose.xlu0.b32.cont [8/16] %v4237, 128
      %4286 = vxpose.xlu0.b32.cont [9/16] %v4238, 128
      %4287 = vxpose.xlu0.b32.cont [10/16] %v4239, 128
      %4288 = vxpose.xlu0.b32.cont [11/16] %v4240, 128
      %4289 = vxpose.xlu0.b32.cont [12/16] %v4241, 128
      %4290 = vxpose.xlu0.b32.cont [13/16] %v4242, 128
      %4291 = vxpose.xlu0.b32.cont [14/16] %v4243, 128
      %4292 = vxpose.xlu0.b32.cont [15/16] %v4244, 128
      %4293 = vxpose.xlu0.b32.end [16/16] %v4245, 128
      %v4294 = vpop.trf.xlu0
      %v4295 = vpop.trf.xlu0
      %v4296 = vpop.trf.xlu0
      %v4297 = vpop.trf.xlu0
      %v4298 = vpop.trf.xlu0
      %v4299 = vpop.trf.xlu0
      %v4300 = vpop.trf.xlu0
      %v4301 = vpop.trf.xlu0
      %v4302 = vpop.trf.xlu0
      %v4303 = vpop.trf.xlu0
      %v4304 = vpop.trf.xlu0
      %v4305 = vpop.trf.xlu0
      %v4306 = vpop.trf.xlu0
      %v4307 = vpop.trf.xlu0
      %v4308 = vpop.trf.xlu0
      %v4309 = vpop.trf.xlu0
      %4310 = vst [vmem:[%s348] sm:$0xff] %v4262
      %4311 = vst [vmem:[%s348 + $0x8] sm:$0xff] %v4294
      %4312 = vst [vmem:[%s348 + $0x10] sm:$0xff] %v4263
      %4313 = vst [vmem:[%s348 + $0x18] sm:$0xff] %v4295
      %4314 = vst [vmem:[%s348 + $0x20] sm:$0xff] %v4264
      %4315 = vst [vmem:[%s348 + $0x28] sm:$0xff] %v4296
      %4316 = vst [vmem:[%s348 + $0x30] sm:$0xff] %v4265
      %4317 = vst [vmem:[%s348 + $0x38] sm:$0xff] %v4297
      %4318 = vst [vmem:[%s348 + $0x40] sm:$0xff] %v4266
      %4319 = vst [vmem:[%s348 + $0x48] sm:$0xff] %v4298
      %4320 = vst [vmem:[%s348 + $0x50] sm:$0xff] %v4267
      %4321 = vst [vmem:[%s348 + $0x58] sm:$0xff] %v4299
      %4322 = vst [vmem:[%s348 + $0x60] sm:$0xff] %v4268
      %4323 = vst [vmem:[%s348 + $0x68] sm:$0xff] %v4300
      %4324 = vst [vmem:[%s348 + $0x70] sm:$0xff] %v4269
      %4325 = vst [vmem:[%s348 + $0x78] sm:$0xff] %v4301
      %s4326 = smul.u32 2, %s23
      %p4327 = scmp.lt.s32.totalorder %s22, 1
      %s4328 = scalar_select %p4327, %s22, 1
      %p4329 = scmp.lt.s32.totalorder %s4326, 1
      %s4330 = scalar_select %p4329, %s4326, 1
      %s4331 = smul.addr %s4328, 16
      %s4332 = sadd.s32 %s4330, %s4331
      %s4333 = smul.addr %s4332, 8
      %s4334 = scalar_lea.vmem %s7, %s4333
      // Predicated region
      $region49: #{decoder_forward.3} parent=47 // pred_check
        %p4335 = pneg %p211
      $region50: #{decoder_forward.3} parent=47 // pred_check_branch
        %4337 = sbr.rel (%p4335) target = $region52
      $region51: #{decoder_forward.3} parent=47 // pred_region
        %s4338 = smul.u32 2, %s23
      $region52: #{decoder_forward.3} parent=47 // pred_fallthru
        _
    $region48: #{decoder_forward.3} parent=5 // pred_fallthru
      _
    %p4339 = scmp.le.s32.totalorder 2, %s13
    // Predicated region
    $region53: #{decoder_forward.3} parent=5 // pred_check
      %p4340 = pneg %p4339
    $region54: #{decoder_forward.3} parent=5 // pred_check_branch
      %4342 = sbr.rel (%p4340) target = $region56
    $region55: #{decoder_forward.3} parent=5 // pred_region
      %s4343 = ssub.s32 %s13, 2
      // Predicated region
      $region57: #{decoder_forward.3} parent=55 // pred_check
        %p4344 = pneg %p217
      $region58: #{decoder_forward.3} parent=55 // pred_check_branch
        %4346 = sbr.rel (%p4344) target = $region60
      $region59: #{decoder_forward.3} parent=55 // pred_region
        %s4347 = smul.u32 2, %s25
        %p4348 = scmp.lt.s32.totalorder %s24, 1
        %s4349 = scalar_select %p4348, %s24, 1
        %p4350 = scmp.lt.s32.totalorder %s4347, 1
        %s4351 = scalar_select %p4350, %s4347, 1
        %s4352 = smul.addr %s4349, 16
        %s4353 = sadd.s32 %s4351, %s4352
        %s4354 = smul.addr %s4353, 8
        %s4355 = scalar_lea.vmem %s7, %s4354
      $region60: #{decoder_forward.3} parent=55 // pred_fallthru
        _
    $region56: #{decoder_forward.3} parent=5 // pred_fallthru
      _
  $region6: #{decoder_forward.3} parent=0 // loop_footer
    %s17 = sadd.s32 1, %s13
  $region7: #{decoder_forward.3} parent=0 // loop_footer_branch
    %12 = sbr.rel target = $region3
  $region8: #{decoder_forward.3} parent=0 // loop_exit
    _

</llo_original>
